<compile_context>
chip_gen: v7x
topology: tpu7x:2x2x1
jax: 0.10.0
libtpu: 0.0.40
codegen_flags: <defaults>
</compile_context>

<pallas_src>
import functools

import jax
import jax.numpy as jnp
from jax.experimental import pallas as pl
from jax.experimental.pallas import tpu as pltpu

LN_EPS = 1e-5
NEG_INF = -1e30  # additive causal mask value


def _layernorm(x, w, b):
    mu = jnp.mean(x, axis=-1, keepdims=True)
    var = jnp.mean((x - mu) ** 2, axis=-1, keepdims=True)
    return (x - mu) * jax.lax.rsqrt(var + LN_EPS) * w + b


def _mm_bf16(x, w_bf16):
    """bf16 MXU inputs, f32 accumulation."""
    return jnp.dot(x.astype(jnp.bfloat16), w_bf16,
                   preferred_element_type=jnp.float32)


# --------------------------------------------------------------------------
# Pallas kernel: the full OPTDecoder forward (all layers + final LN), fused.
# --------------------------------------------------------------------------
def opt_decoder_kernel(h_ref,
                       ln1w_ref, ln1b_ref, wqkv_ref, bqkv_ref,
                       wout_ref, bout_ref, ln2w_ref, ln2b_ref,
                       wfc1_ref, bfc1_ref, wfc2_ref, bfc2_ref,
                       flnw_ref, flnb_ref,
                       o_ref,
                       attn_buf,
                       *, num_layers, num_heads, head_dim):
    x = h_ref[...]                                   # [S, H] f32
    S, H = x.shape
    scale = jnp.float32(head_dim ** -0.5)

    # Causal additive mask — built once per call (hoisted out of the layer loop).
    row = jax.lax.broadcasted_iota(jnp.int32, (S, S), 0)
    col = jax.lax.broadcasted_iota(jnp.int32, (S, S), 1)
    mask = jnp.where(row >= col, 0.0, NEG_INF).astype(jnp.float32)

    for l in range(num_layers):                      # static unroll
        # ---- self-attention block (do_layer_norm_before=True) ----
        residual = x
        ln1 = _layernorm(x, ln1w_ref[l], ln1b_ref[l])
        qkv = _mm_bf16(ln1, wqkv_ref[l]) + bqkv_ref[l]        # [S, 3H] f32
        q = qkv[:, 0 * H:1 * H] * scale              # fold 1/sqrt(hd) into q once
        k = qkv[:, 1 * H:2 * H]
        v = qkv[:, 2 * H:3 * H]

        # Per-head scores/softmax (static head loop); per-head outputs land in a
        # VMEM scratch at static lane offsets so the out-projection below is a
        # single K=H matmul instead of num_heads K=head_dim matmuls.
        for hidx in range(num_heads):
            lo = hidx * head_dim
            qh = q[:, lo:lo + head_dim]
            kh = k[:, lo:lo + head_dim]
            vh = v[:, lo:lo + head_dim]
            s = jnp.dot(qh, kh.T, preferred_element_type=jnp.float32) + mask
            m = jnp.max(s, axis=-1, keepdims=True)
            p = jnp.exp(s - m)
            p = p * pl.reciprocal(jnp.sum(p, axis=-1, keepdims=True), approx=True)
            attn_buf[:, lo:lo + head_dim] = jnp.dot(
                p, vh, preferred_element_type=jnp.float32)

        attn = attn_buf[...]                                     # [S, H]
        x = residual + _mm_bf16(attn, wout_ref[l]) + bout_ref[l]

        # ---- MLP block ----
        residual = x
        ln2 = _layernorm(x, ln2w_ref[l], ln2b_ref[l])
        f = jnp.maximum(_mm_bf16(ln2, wfc1_ref[l]) + bfc1_ref[l], 0.0)   # relu
        x = residual + _mm_bf16(f, wfc2_ref[l]) + bfc2_ref[l]

    # ---- final LayerNorm (do_layer_norm_before and not _remove_final_layer_norm) ----
    o_ref[...] = _layernorm(x, flnw_ref[...], flnb_ref[...])


def opt_decoder_forward(params, input_ids, positions, *,
                        num_layers, num_heads, head_dim):
    # Embedding gathers stay in plain JAX (glue); everything else is one kernel.
    inputs_embeds = jnp.take(params["embed_tokens"], input_ids, axis=0)      # [S, H]
    pos_embeds = jnp.take(params["embed_positions"], positions + 2, axis=0)  # [S, H]
    hidden = (inputs_embeds + pos_embeds).astype(jnp.float32)
    S, H = hidden.shape

    args = (hidden,
            params["ln1_w"], params["ln1_b"], params["w_qkv"], params["b_qkv"],
            params["w_out"], params["b_out"], params["ln2_w"], params["ln2_b"],
            params["w_fc1"], params["b_fc1"], params["w_fc2"], params["b_fc2"],
            params["final_ln_w"], params["final_ln_b"])
    vmem = pl.BlockSpec(memory_space=pltpu.MemorySpace.VMEM)
    return pl.pallas_call(
        functools.partial(opt_decoder_kernel, num_layers=num_layers,
                          num_heads=num_heads, head_dim=head_dim),
        out_shape=jax.ShapeDtypeStruct((S, H), jnp.float32),
        in_specs=[vmem] * len(args),
        out_specs=vmem,
        scratch_shapes=[pltpu.VMEM((S, H), jnp.float32)],   # per-head attn outputs
    )(*args)


# --------------------------------------------------------------------------
# Parameter construction (deterministic, synthetic; per-layer arrays stacked)
# --------------------------------------------------------------------------
def make_params(key, *, vocab_size, max_pos, hidden, ffn, num_layers):
    n_keys = 2 + 8 * num_layers
    it = iter(jax.random.split(key, n_keys))
    s = 0.02

    def nrm(k, shape, dtype=jnp.float32):
        return (jax.random.normal(k, shape, jnp.float32) * s).astype(dtype)

    embed_tokens = nrm(next(it), (vocab_size, hidden))
    # OPTLearnedPositionalEmbedding: num_embeddings + offset(2) rows
    embed_positions = nrm(next(it), (max_pos + 2, hidden))

    w_qkv, b_qkv, w_out, b_out, w_fc1, b_fc1, w_fc2, b_fc2 = ([] for _ in range(8))
    for _ in range(num_layers):
        w_qkv.append(nrm(next(it), (hidden, 3 * hidden), jnp.bfloat16))
        b_qkv.append(nrm(next(it), (1, 3 * hidden)))
        w_out.append(nrm(next(it), (hidden, hidden), jnp.bfloat16))
        b_out.append(nrm(next(it), (1, hidden)))
        w_fc1.append(nrm(next(it), (hidden, ffn), jnp.bfloat16))
        b_fc1.append(nrm(next(it), (1, ffn)))
        w_fc2.append(nrm(next(it), (ffn, hidden), jnp.bfloat16))
        b_fc2.append(nrm(next(it), (1, hidden)))

    L = num_layers
    return {
        "embed_tokens": embed_tokens,
        "embed_positions": embed_positions,
        "ln1_w": jnp.ones((L, 1, hidden), jnp.float32),
        "ln1_b": jnp.zeros((L, 1, hidden), jnp.float32),
        "w_qkv": jnp.stack(w_qkv), "b_qkv": jnp.stack(b_qkv),
        "w_out": jnp.stack(w_out), "b_out": jnp.stack(b_out),
        "ln2_w": jnp.ones((L, 1, hidden), jnp.float32),
        "ln2_b": jnp.zeros((L, 1, hidden), jnp.float32),
        "w_fc1": jnp.stack(w_fc1), "b_fc1": jnp.stack(b_fc1),
        "w_fc2": jnp.stack(w_fc2), "b_fc2": jnp.stack(b_fc2),
        "final_ln_w": jnp.ones((1, hidden), jnp.float32),
        "final_ln_b": jnp.zeros((1, hidden), jnp.float32),
    }


# --------------------------------------------------------------------------
# Pure-JAX reference (same mixed precision: bf16 matmul operands, f32 accum)
# --------------------------------------------------------------------------
def reference_forward(params, input_ids, positions, *, num_heads, head_dim):
    x = (jnp.take(params["embed_tokens"], input_ids, axis=0)
         + jnp.take(params["embed_positions"], positions + 2, axis=0)).astype(jnp.float32)
    S, H = x.shape
    causal = jnp.tril(jnp.ones((S, S), bool))
    L = params["w_qkv"].shape[0]
    for l in range(L):
        residual = x
        h = _layernorm(x, params["ln1_w"][l], params["ln1_b"][l])
        qkv = _mm_bf16(h, params["w_qkv"][l]) + params["b_qkv"][l]
        q, k, v = jnp.split(qkv, 3, axis=-1)
        q = q.reshape(S, num_heads, head_dim).transpose(1, 0, 2)
        k = k.reshape(S, num_heads, head_dim).transpose(1, 0, 2)
        v = v.reshape(S, num_heads, head_dim).transpose(1, 0, 2)
        s = jnp.einsum("hqd,hkd->hqk", q, k) * (head_dim ** -0.5)
        s = jnp.where(causal[None], s, -jnp.inf)
        pr = jax.nn.softmax(s, axis=-1)
        o = jnp.einsum("hqk,hkd->hqd", pr, v).transpose(1, 0, 2).reshape(S, H)
        x = residual + (_mm_bf16(o, params["w_out"][l]) + params["b_out"][l])
        residual = x
        h = _layernorm(x, params["ln2_w"][l], params["ln2_b"][l])
        h = jnp.maximum(_mm_bf16(h, params["w_fc1"][l]) + params["b_fc1"][l], 0.0)
        x = residual + (_mm_bf16(h, params["w_fc2"][l]) + params["b_fc2"][l])
    return _layernorm(x, params["final_ln_w"], params["final_ln_b"])


if __name__ == "__main__":
    # Small but lane/sublane-aligned config: S=8 (sublanes), H=128 (lanes),
    # ffn=512, head_dim=32 -> unmasked stores and MXU-aligned matmul dims.
    VOCAB = 256
    MAX_POS = 64
    HIDDEN = 128
    NUM_HEADS = 4
    HEAD_DIM = HIDDEN // NUM_HEADS
    FFN = 512
    NUM_LAYERS = 2
    SEQ = 8

    key = jax.random.PRNGKey(0)
    pkey, ikey = jax.random.split(key)
    params = make_params(pkey, vocab_size=VOCAB, max_pos=MAX_POS,
                         hidden=HIDDEN, ffn=FFN, num_layers=NUM_LAYERS)

    input_ids = jax.random.randint(ikey, (SEQ,), 0, VOCAB, dtype=jnp.int32)
    positions = jnp.arange(SEQ, dtype=jnp.int32)

    out = opt_decoder_forward(params, input_ids, positions,
                              num_layers=NUM_LAYERS, num_heads=NUM_HEADS,
                              head_dim=HEAD_DIM)
    out = jax.block_until_ready(out)

    ref = reference_forward(params, input_ids, positions,
                            num_heads=NUM_HEADS, head_dim=HEAD_DIM)
    assert out.shape == (SEQ, HIDDEN) and out.dtype == jnp.float32
    # Tolerance accounts for bf16 MXU operands and the approx softmax reciprocal.
    assert jnp.allclose(out, ref, atol=2e-2, rtol=2e-2), "mismatch vs reference"

    print("KERNEL_OK")
</pallas_src>

<mosaic_0001>
module attributes {stable_mosaic.version = 11 : i64} {
  func.func @opt_decoder_kernel(%arg0: memref<8x128xf32, #tpu.memory_space<vmem>>, %arg1: memref<2x1x128xf32, #tpu.memory_space<vmem>>, %arg2: memref<2x1x128xf32, #tpu.memory_space<vmem>>, %arg3: memref<2x128x384xbf16, #tpu.memory_space<vmem>>, %arg4: memref<2x1x384xf32, #tpu.memory_space<vmem>>, %arg5: memref<2x128x128xbf16, #tpu.memory_space<vmem>>, %arg6: memref<2x1x128xf32, #tpu.memory_space<vmem>>, %arg7: memref<2x1x128xf32, #tpu.memory_space<vmem>>, %arg8: memref<2x1x128xf32, #tpu.memory_space<vmem>>, %arg9: memref<2x128x512xbf16, #tpu.memory_space<vmem>>, %arg10: memref<2x1x512xf32, #tpu.memory_space<vmem>>, %arg11: memref<2x512x128xbf16, #tpu.memory_space<vmem>>, %arg12: memref<2x1x128xf32, #tpu.memory_space<vmem>>, %arg13: memref<1x128xf32, #tpu.memory_space<vmem>>, %arg14: memref<1x128xf32, #tpu.memory_space<vmem>>, %arg15: memref<8x128xf32, #tpu.memory_space<vmem>>, %arg16: memref<8x128xf32, #tpu.memory_space<vmem>>) attributes {dimension_semantics = [], scalar_prefetch = 0 : i64, scratch_operands = 1 : i64, tpu.core_type = #tpu.core_type<tc>} {
    %c0 = arith.constant 0 : index
    %c0_0 = arith.constant 0 : index
    %0 = vector.load %arg0[%c0, %c0_0] : memref<8x128xf32, #tpu.memory_space<vmem>>, vector<8x128xf32>
    %1 = tpu.iota {dimensions = array<i32: 0>} : vector<8x8xi32>
    %2 = tpu.iota {dimensions = array<i32: 1>} : vector<8x8xi32>
    %3 = arith.cmpi sge, %1, %2 : vector<8x8xi32>
    %cst = arith.constant 0.000000e+00 : f32
    %cst_1 = arith.constant -1.000000e+30 : f32
    %4 = vector.broadcast %cst : f32 to vector<8x8xf32>
    %5 = vector.broadcast %cst_1 : f32 to vector<8x8xf32>
    %6 = arith.select %3, %4, %5 : vector<8x8xi1>, vector<8x8xf32>
    %c0_2 = arith.constant 0 : index
    %c0_3 = arith.constant 0 : index
    %c0_4 = arith.constant 0 : index
    %7 = vector.load %arg1[%c0_2, %c0_3, %c0_4] : memref<2x1x128xf32, #tpu.memory_space<vmem>>, vector<1x1x128xf32>
    %8 = vector.shape_cast %7 : vector<1x1x128xf32> to vector<1x128xf32>
    %c0_5 = arith.constant 0 : index
    %c0_6 = arith.constant 0 : index
    %c0_7 = arith.constant 0 : index
    %9 = vector.load %arg2[%c0_5, %c0_6, %c0_7] : memref<2x1x128xf32, #tpu.memory_space<vmem>>, vector<1x1x128xf32>
    %10 = vector.shape_cast %9 : vector<1x1x128xf32> to vector<1x128xf32>
    %cst_8 = arith.constant dense<0.000000e+00> : vector<8xf32>
    %11 = vector.multi_reduction <add>, %0, %cst_8 [1] : vector<8x128xf32> to vector<8xf32>
    %12 = vector.shape_cast %11 : vector<8xf32> to vector<8x1xf32>
    %cst_9 = arith.constant 1.280000e+02 : f32
    %13 = vector.broadcast %cst_9 : f32 to vector<8x1xf32>
    %14 = arith.divf %12, %13 : vector<8x1xf32>
    %15 = vector.broadcast %14 : vector<8x1xf32> to vector<8x128xf32>
    %16 = arith.subf %0, %15 : vector<8x128xf32>
    %17 = arith.mulf %16, %16 : vector<8x128xf32>
    %cst_10 = arith.constant dense<0.000000e+00> : vector<8xf32>
    %18 = vector.multi_reduction <add>, %17, %cst_10 [1] : vector<8x128xf32> to vector<8xf32>
    %19 = vector.shape_cast %18 : vector<8xf32> to vector<8x1xf32>
    %cst_11 = arith.constant 1.280000e+02 : f32
    %20 = vector.broadcast %cst_11 : f32 to vector<8x1xf32>
    %21 = arith.divf %19, %20 : vector<8x1xf32>
    %22 = vector.broadcast %14 : vector<8x1xf32> to vector<8x128xf32>
    %23 = arith.subf %0, %22 : vector<8x128xf32>
    %cst_12 = arith.constant 9.99999974E-6 : f32
    %24 = vector.broadcast %cst_12 : f32 to vector<8x1xf32>
    %25 = arith.addf %21, %24 : vector<8x1xf32>
    %26 = math.rsqrt %25 : vector<8x1xf32>
    %27 = vector.broadcast %26 : vector<8x1xf32> to vector<8x128xf32>
    %28 = arith.mulf %23, %27 : vector<8x128xf32>
    %29 = vector.broadcast %8 : vector<1x128xf32> to vector<8x128xf32>
    %30 = arith.mulf %28, %29 : vector<8x128xf32>
    %31 = vector.broadcast %10 : vector<1x128xf32> to vector<8x128xf32>
    %32 = arith.addf %30, %31 : vector<8x128xf32>
    %c0_13 = arith.constant 0 : index
    %c0_14 = arith.constant 0 : index
    %c0_15 = arith.constant 0 : index
    %33 = vector.load %arg3[%c0_13, %c0_14, %c0_15] : memref<2x128x384xbf16, #tpu.memory_space<vmem>>, vector<1x128x384xbf16>
    %34 = vector.shape_cast %33 : vector<1x128x384xbf16> to vector<128x384xbf16>
    %35 = arith.truncf %32 : vector<8x128xf32> to vector<8x128xbf16>
    %cst_16 = arith.constant dense<0.000000e+00> : vector<8x384xf32>
    %36 = tpu.matmul %35, %34, %cst_16 {dimension_numbers = #tpu.dot_dimension_numbers<[1], [0], [0], [1], [0, 0, 1, 1], [], []>} : vector<8x128xbf16>, vector<128x384xbf16>, vector<8x384xf32> -> vector<8x384xf32>
    %c0_17 = arith.constant 0 : index
    %c0_18 = arith.constant 0 : index
    %c0_19 = arith.constant 0 : index
    %37 = vector.load %arg4[%c0_17, %c0_18, %c0_19] : memref<2x1x384xf32, #tpu.memory_space<vmem>>, vector<1x1x384xf32>
    %38 = vector.shape_cast %37 : vector<1x1x384xf32> to vector<1x384xf32>
    %39 = vector.broadcast %38 : vector<1x384xf32> to vector<8x384xf32>
    %40 = arith.addf %36, %39 : vector<8x384xf32>
    %41 = vector.extract_strided_slice %40 {offsets = [0, 0], sizes = [8, 128], strides = [1, 1]} : vector<8x384xf32> to vector<8x128xf32>
    %cst_20 = arith.constant 0.176776692 : f32
    %42 = vector.broadcast %cst_20 : f32 to vector<8x128xf32>
    %43 = arith.mulf %41, %42 : vector<8x128xf32>
    %44 = vector.extract_strided_slice %40 {offsets = [0, 128], sizes = [8, 128], strides = [1, 1]} : vector<8x384xf32> to vector<8x128xf32>
    %45 = vector.extract_strided_slice %40 {offsets = [0, 256], sizes = [8, 128], strides = [1, 1]} : vector<8x384xf32> to vector<8x128xf32>
    %46 = vector.extract_strided_slice %43 {offsets = [0, 0], sizes = [8, 32], strides = [1, 1]} : vector<8x128xf32> to vector<8x32xf32>
    %47 = vector.extract_strided_slice %44 {offsets = [0, 0], sizes = [8, 32], strides = [1, 1]} : vector<8x128xf32> to vector<8x32xf32>
    %48 = vector.extract_strided_slice %45 {offsets = [0, 0], sizes = [8, 32], strides = [1, 1]} : vector<8x128xf32> to vector<8x32xf32>
    %49 = tpu.transpose %47, [1, 0] : vector<8x32xf32> -> vector<32x8xf32>
    %cst_21 = arith.constant dense<0.000000e+00> : vector<8x8xf32>
    %50 = tpu.matmul %46, %49, %cst_21 {dimension_numbers = #tpu.dot_dimension_numbers<[1], [0], [0], [1], [0, 0, 1, 1], [], []>} : vector<8x32xf32>, vector<32x8xf32>, vector<8x8xf32> -> vector<8x8xf32>
    %51 = arith.addf %50, %6 : vector<8x8xf32>
    %cst_22 = arith.constant dense<0xFF800000> : vector<8xf32>
    %52 = vector.multi_reduction <maximumf>, %51, %cst_22 [1] : vector<8x8xf32> to vector<8xf32>
    %53 = vector.shape_cast %52 : vector<8xf32> to vector<8x1xf32>
    %54 = vector.broadcast %53 : vector<8x1xf32> to vector<8x8xf32>
    %55 = arith.subf %51, %54 : vector<8x8xf32>
    %56 = math.exp %55 : vector<8x8xf32>
    %cst_23 = arith.constant dense<0.000000e+00> : vector<8xf32>
    %57 = vector.multi_reduction <add>, %56, %cst_23 [1] : vector<8x8xf32> to vector<8xf32>
    %58 = vector.shape_cast %57 : vector<8xf32> to vector<8x1xf32>
    %59 = tpu.reciprocal %58 {approx = true} : vector<8x1xf32> -> vector<8x1xf32>
    %60 = vector.broadcast %59 : vector<8x1xf32> to vector<8x8xf32>
    %61 = arith.mulf %56, %60 : vector<8x8xf32>
    %cst_24 = arith.constant dense<0.000000e+00> : vector<8x32xf32>
    %62 = tpu.matmul %61, %48, %cst_24 {dimension_numbers = #tpu.dot_dimension_numbers<[1], [0], [0], [1], [0, 0, 1, 1], [], []>} : vector<8x8xf32>, vector<8x32xf32>, vector<8x32xf32> -> vector<8x32xf32>
    %c0_25 = arith.constant 0 : index
    %c0_26 = arith.constant 0 : index
    %63 = vector.load %arg16[%c0_25, %c0_26] : memref<8x128xf32, #tpu.memory_space<vmem>>, vector<8x32xf32>
    tpu.vector_store %arg16[%c0_25, %c0_26], %62 {strides = array<i32>} : memref<8x128xf32, #tpu.memory_space<vmem>>, vector<8x32xf32>,
    %64 = vector.extract_strided_slice %43 {offsets = [0, 32], sizes = [8, 32], strides = [1, 1]} : vector<8x128xf32> to vector<8x32xf32>
    %65 = vector.extract_strided_slice %44 {offsets = [0, 32], sizes = [8, 32], strides = [1, 1]} : vector<8x128xf32> to vector<8x32xf32>
    %66 = vector.extract_strided_slice %45 {offsets = [0, 32], sizes = [8, 32], strides = [1, 1]} : vector<8x128xf32> to vector<8x32xf32>
    %67 = tpu.transpose %65, [1, 0] : vector<8x32xf32> -> vector<32x8xf32>
    %cst_27 = arith.constant dense<0.000000e+00> : vector<8x8xf32>
    %68 = tpu.matmul %64, %67, %cst_27 {dimension_numbers = #tpu.dot_dimension_numbers<[1], [0], [0], [1], [0, 0, 1, 1], [], []>} : vector<8x32xf32>, vector<32x8xf32>, vector<8x8xf32> -> vector<8x8xf32>
    %69 = arith.addf %68, %6 : vector<8x8xf32>
    %cst_28 = arith.constant dense<0xFF800000> : vector<8xf32>
    %70 = vector.multi_reduction <maximumf>, %69, %cst_28 [1] : vector<8x8xf32> to vector<8xf32>
    %71 = vector.shape_cast %70 : vector<8xf32> to vector<8x1xf32>
    %72 = vector.broadcast %71 : vector<8x1xf32> to vector<8x8xf32>
    %73 = arith.subf %69, %72 : vector<8x8xf32>
    %74 = math.exp %73 : vector<8x8xf32>
    %cst_29 = arith.constant dense<0.000000e+00> : vector<8xf32>
    %75 = vector.multi_reduction <add>, %74, %cst_29 [1] : vector<8x8xf32> to vector<8xf32>
    %76 = vector.shape_cast %75 : vector<8xf32> to vector<8x1xf32>
    %77 = tpu.reciprocal %76 {approx = true} : vector<8x1xf32> -> vector<8x1xf32>
    %78 = vector.broadcast %77 : vector<8x1xf32> to vector<8x8xf32>
    %79 = arith.mulf %74, %78 : vector<8x8xf32>
    %cst_30 = arith.constant dense<0.000000e+00> : vector<8x32xf32>
    %80 = tpu.matmul %79, %66, %cst_30 {dimension_numbers = #tpu.dot_dimension_numbers<[1], [0], [0], [1], [0, 0, 1, 1], [], []>} : vector<8x8xf32>, vector<8x32xf32>, vector<8x32xf32> -> vector<8x32xf32>
    %c0_31 = arith.constant 0 : index
    %c32 = arith.constant 32 : index
    %81 = vector.load %arg16[%c0_31, %c32] : memref<8x128xf32, #tpu.memory_space<vmem>>, vector<8x32xf32>
    tpu.vector_store %arg16[%c0_31, %c32], %80 {strides = array<i32>} : memref<8x128xf32, #tpu.memory_space<vmem>>, vector<8x32xf32>,
    %82 = vector.extract_strided_slice %43 {offsets = [0, 64], sizes = [8, 32], strides = [1, 1]} : vector<8x128xf32> to vector<8x32xf32>
    %83 = vector.extract_strided_slice %44 {offsets = [0, 64], sizes = [8, 32], strides = [1, 1]} : vector<8x128xf32> to vector<8x32xf32>
    %84 = vector.extract_strided_slice %45 {offsets = [0, 64], sizes = [8, 32], strides = [1, 1]} : vector<8x128xf32> to vector<8x32xf32>
    %85 = tpu.transpose %83, [1, 0] : vector<8x32xf32> -> vector<32x8xf32>
    %cst_32 = arith.constant dense<0.000000e+00> : vector<8x8xf32>
    %86 = tpu.matmul %82, %85, %cst_32 {dimension_numbers = #tpu.dot_dimension_numbers<[1], [0], [0], [1], [0, 0, 1, 1], [], []>} : vector<8x32xf32>, vector<32x8xf32>, vector<8x8xf32> -> vector<8x8xf32>
    %87 = arith.addf %86, %6 : vector<8x8xf32>
    %cst_33 = arith.constant dense<0xFF800000> : vector<8xf32>
    %88 = vector.multi_reduction <maximumf>, %87, %cst_33 [1] : vector<8x8xf32> to vector<8xf32>
    %89 = vector.shape_cast %88 : vector<8xf32> to vector<8x1xf32>
    %90 = vector.broadcast %89 : vector<8x1xf32> to vector<8x8xf32>
    %91 = arith.subf %87, %90 : vector<8x8xf32>
    %92 = math.exp %91 : vector<8x8xf32>
    %cst_34 = arith.constant dense<0.000000e+00> : vector<8xf32>
    %93 = vector.multi_reduction <add>, %92, %cst_34 [1] : vector<8x8xf32> to vector<8xf32>
    %94 = vector.shape_cast %93 : vector<8xf32> to vector<8x1xf32>
    %95 = tpu.reciprocal %94 {approx = true} : vector<8x1xf32> -> vector<8x1xf32>
    %96 = vector.broadcast %95 : vector<8x1xf32> to vector<8x8xf32>
    %97 = arith.mulf %92, %96 : vector<8x8xf32>
    %cst_35 = arith.constant dense<0.000000e+00> : vector<8x32xf32>
    %98 = tpu.matmul %97, %84, %cst_35 {dimension_numbers = #tpu.dot_dimension_numbers<[1], [0], [0], [1], [0, 0, 1, 1], [], []>} : vector<8x8xf32>, vector<8x32xf32>, vector<8x32xf32> -> vector<8x32xf32>
    %c0_36 = arith.constant 0 : index
    %c64 = arith.constant 64 : index
    %99 = vector.load %arg16[%c0_36, %c64] : memref<8x128xf32, #tpu.memory_space<vmem>>, vector<8x32xf32>
    tpu.vector_store %arg16[%c0_36, %c64], %98 {strides = array<i32>} : memref<8x128xf32, #tpu.memory_space<vmem>>, vector<8x32xf32>,
    %100 = vector.extract_strided_slice %43 {offsets = [0, 96], sizes = [8, 32], strides = [1, 1]} : vector<8x128xf32> to vector<8x32xf32>
    %101 = vector.extract_strided_slice %44 {offsets = [0, 96], sizes = [8, 32], strides = [1, 1]} : vector<8x128xf32> to vector<8x32xf32>
    %102 = vector.extract_strided_slice %45 {offsets = [0, 96], sizes = [8, 32], strides = [1, 1]} : vector<8x128xf32> to vector<8x32xf32>
    %103 = tpu.transpose %101, [1, 0] : vector<8x32xf32> -> vector<32x8xf32>
    %cst_37 = arith.constant dense<0.000000e+00> : vector<8x8xf32>
    %104 = tpu.matmul %100, %103, %cst_37 {dimension_numbers = #tpu.dot_dimension_numbers<[1], [0], [0], [1], [0, 0, 1, 1], [], []>} : vector<8x32xf32>, vector<32x8xf32>, vector<8x8xf32> -> vector<8x8xf32>
    %105 = arith.addf %104, %6 : vector<8x8xf32>
    %cst_38 = arith.constant dense<0xFF800000> : vector<8xf32>
    %106 = vector.multi_reduction <maximumf>, %105, %cst_38 [1] : vector<8x8xf32> to vector<8xf32>
    %107 = vector.shape_cast %106 : vector<8xf32> to vector<8x1xf32>
    %108 = vector.broadcast %107 : vector<8x1xf32> to vector<8x8xf32>
    %109 = arith.subf %105, %108 : vector<8x8xf32>
    %110 = math.exp %109 : vector<8x8xf32>
    %cst_39 = arith.constant dense<0.000000e+00> : vector<8xf32>
    %111 = vector.multi_reduction <add>, %110, %cst_39 [1] : vector<8x8xf32> to vector<8xf32>
    %112 = vector.shape_cast %111 : vector<8xf32> to vector<8x1xf32>
    %113 = tpu.reciprocal %112 {approx = true} : vector<8x1xf32> -> vector<8x1xf32>
    %114 = vector.broadcast %113 : vector<8x1xf32> to vector<8x8xf32>
    %115 = arith.mulf %110, %114 : vector<8x8xf32>
    %cst_40 = arith.constant dense<0.000000e+00> : vector<8x32xf32>
    %116 = tpu.matmul %115, %102, %cst_40 {dimension_numbers = #tpu.dot_dimension_numbers<[1], [0], [0], [1], [0, 0, 1, 1], [], []>} : vector<8x8xf32>, vector<8x32xf32>, vector<8x32xf32> -> vector<8x32xf32>
    %c0_41 = arith.constant 0 : index
    %c96 = arith.constant 96 : index
    %117 = vector.load %arg16[%c0_41, %c96] : memref<8x128xf32, #tpu.memory_space<vmem>>, vector<8x32xf32>
    tpu.vector_store %arg16[%c0_41, %c96], %116 {strides = array<i32>} : memref<8x128xf32, #tpu.memory_space<vmem>>, vector<8x32xf32>,
    %c0_42 = arith.constant 0 : index
    %c0_43 = arith.constant 0 : index
    %118 = vector.load %arg16[%c0_42, %c0_43] : memref<8x128xf32, #tpu.memory_space<vmem>>, vector<8x128xf32>
    %c0_44 = arith.constant 0 : index
    %c0_45 = arith.constant 0 : index
    %c0_46 = arith.constant 0 : index
    %119 = vector.load %arg5[%c0_44, %c0_45, %c0_46] : memref<2x128x128xbf16, #tpu.memory_space<vmem>>, vector<1x128x128xbf16>
    %120 = vector.shape_cast %119 : vector<1x128x128xbf16> to vector<128x128xbf16>
    %121 = arith.truncf %118 : vector<8x128xf32> to vector<8x128xbf16>
    %cst_47 = arith.constant dense<0.000000e+00> : vector<8x128xf32>
    %122 = tpu.matmul %121, %120, %cst_47 {dimension_numbers = #tpu.dot_dimension_numbers<[1], [0], [0], [1], [0, 0, 1, 1], [], []>} : vector<8x128xbf16>, vector<128x128xbf16>, vector<8x128xf32> -> vector<8x128xf32>
    %123 = arith.addf %0, %122 : vector<8x128xf32>
    %c0_48 = arith.constant 0 : index
    %c0_49 = arith.constant 0 : index
    %c0_50 = arith.constant 0 : index
    %124 = vector.load %arg6[%c0_48, %c0_49, %c0_50] : memref<2x1x128xf32, #tpu.memory_space<vmem>>, vector<1x1x128xf32>
    %125 = vector.shape_cast %124 : vector<1x1x128xf32> to vector<1x128xf32>
    %126 = vector.broadcast %125 : vector<1x128xf32> to vector<8x128xf32>
    %127 = arith.addf %123, %126 : vector<8x128xf32>
    %c0_51 = arith.constant 0 : index
    %c0_52 = arith.constant 0 : index
    %c0_53 = arith.constant 0 : index
    %128 = vector.load %arg7[%c0_51, %c0_52, %c0_53] : memref<2x1x128xf32, #tpu.memory_space<vmem>>, vector<1x1x128xf32>
    %129 = vector.shape_cast %128 : vector<1x1x128xf32> to vector<1x128xf32>
    %c0_54 = arith.constant 0 : index
    %c0_55 = arith.constant 0 : index
    %c0_56 = arith.constant 0 : index
    %130 = vector.load %arg8[%c0_54, %c0_55, %c0_56] : memref<2x1x128xf32, #tpu.memory_space<vmem>>, vector<1x1x128xf32>
    %131 = vector.shape_cast %130 : vector<1x1x128xf32> to vector<1x128xf32>
    %cst_57 = arith.constant dense<0.000000e+00> : vector<8xf32>
    %132 = vector.multi_reduction <add>, %127, %cst_57 [1] : vector<8x128xf32> to vector<8xf32>
    %133 = vector.shape_cast %132 : vector<8xf32> to vector<8x1xf32>
    %cst_58 = arith.constant 1.280000e+02 : f32
    %134 = vector.broadcast %cst_58 : f32 to vector<8x1xf32>
    %135 = arith.divf %133, %134 : vector<8x1xf32>
    %136 = vector.broadcast %135 : vector<8x1xf32> to vector<8x128xf32>
    %137 = arith.subf %127, %136 : vector<8x128xf32>
    %138 = arith.mulf %137, %137 : vector<8x128xf32>
    %cst_59 = arith.constant dense<0.000000e+00> : vector<8xf32>
    %139 = vector.multi_reduction <add>, %138, %cst_59 [1] : vector<8x128xf32> to vector<8xf32>
    %140 = vector.shape_cast %139 : vector<8xf32> to vector<8x1xf32>
    %cst_60 = arith.constant 1.280000e+02 : f32
    %141 = vector.broadcast %cst_60 : f32 to vector<8x1xf32>
    %142 = arith.divf %140, %141 : vector<8x1xf32>
    %143 = vector.broadcast %135 : vector<8x1xf32> to vector<8x128xf32>
    %144 = arith.subf %127, %143 : vector<8x128xf32>
    %cst_61 = arith.constant 9.99999974E-6 : f32
    %145 = vector.broadcast %cst_61 : f32 to vector<8x1xf32>
    %146 = arith.addf %142, %145 : vector<8x1xf32>
    %147 = math.rsqrt %146 : vector<8x1xf32>
    %148 = vector.broadcast %147 : vector<8x1xf32> to vector<8x128xf32>
    %149 = arith.mulf %144, %148 : vector<8x128xf32>
    %150 = vector.broadcast %129 : vector<1x128xf32> to vector<8x128xf32>
    %151 = arith.mulf %149, %150 : vector<8x128xf32>
    %152 = vector.broadcast %131 : vector<1x128xf32> to vector<8x128xf32>
    %153 = arith.addf %151, %152 : vector<8x128xf32>
    %c0_62 = arith.constant 0 : index
    %c0_63 = arith.constant 0 : index
    %c0_64 = arith.constant 0 : index
    %154 = vector.load %arg9[%c0_62, %c0_63, %c0_64] : memref<2x128x512xbf16, #tpu.memory_space<vmem>>, vector<1x128x512xbf16>
    %155 = vector.shape_cast %154 : vector<1x128x512xbf16> to vector<128x512xbf16>
    %156 = arith.truncf %153 : vector<8x128xf32> to vector<8x128xbf16>
    %cst_65 = arith.constant dense<0.000000e+00> : vector<8x512xf32>
    %157 = tpu.matmul %156, %155, %cst_65 {dimension_numbers = #tpu.dot_dimension_numbers<[1], [0], [0], [1], [0, 0, 1, 1], [], []>} : vector<8x128xbf16>, vector<128x512xbf16>, vector<8x512xf32> -> vector<8x512xf32>
    %c0_66 = arith.constant 0 : index
    %c0_67 = arith.constant 0 : index
    %c0_68 = arith.constant 0 : index
    %158 = vector.load %arg10[%c0_66, %c0_67, %c0_68] : memref<2x1x512xf32, #tpu.memory_space<vmem>>, vector<1x1x512xf32>
    %159 = vector.shape_cast %158 : vector<1x1x512xf32> to vector<1x512xf32>
    %160 = vector.broadcast %159 : vector<1x512xf32> to vector<8x512xf32>
    %161 = arith.addf %157, %160 : vector<8x512xf32>
    %cst_69 = arith.constant 0.000000e+00 : f32
    %162 = vector.broadcast %cst_69 : f32 to vector<8x512xf32>
    %163 = arith.maximumf %161, %162 : vector<8x512xf32>
    %c0_70 = arith.constant 0 : index
    %c0_71 = arith.constant 0 : index
    %c0_72 = arith.constant 0 : index
    %164 = vector.load %arg11[%c0_70, %c0_71, %c0_72] : memref<2x512x128xbf16, #tpu.memory_space<vmem>>, vector<1x512x128xbf16>
    %165 = vector.shape_cast %164 : vector<1x512x128xbf16> to vector<512x128xbf16>
    %166 = arith.truncf %163 : vector<8x512xf32> to vector<8x512xbf16>
    %cst_73 = arith.constant dense<0.000000e+00> : vector<8x128xf32>
    %167 = tpu.matmul %166, %165, %cst_73 {dimension_numbers = #tpu.dot_dimension_numbers<[1], [0], [0], [1], [0, 0, 1, 1], [], []>} : vector<8x512xbf16>, vector<512x128xbf16>, vector<8x128xf32> -> vector<8x128xf32>
    %168 = arith.addf %127, %167 : vector<8x128xf32>
    %c0_74 = arith.constant 0 : index
    %c0_75 = arith.constant 0 : index
    %c0_76 = arith.constant 0 : index
    %169 = vector.load %arg12[%c0_74, %c0_75, %c0_76] : memref<2x1x128xf32, #tpu.memory_space<vmem>>, vector<1x1x128xf32>
    %170 = vector.shape_cast %169 : vector<1x1x128xf32> to vector<1x128xf32>
    %171 = vector.broadcast %170 : vector<1x128xf32> to vector<8x128xf32>
    %172 = arith.addf %168, %171 : vector<8x128xf32>
    %c1 = arith.constant 1 : index
    %c0_77 = arith.constant 0 : index
    %c0_78 = arith.constant 0 : index
    %173 = vector.load %arg1[%c1, %c0_77, %c0_78] : memref<2x1x128xf32, #tpu.memory_space<vmem>>, vector<1x1x128xf32>
    %174 = vector.shape_cast %173 : vector<1x1x128xf32> to vector<1x128xf32>
    %c1_79 = arith.constant 1 : index
    %c0_80 = arith.constant 0 : index
    %c0_81 = arith.constant 0 : index
    %175 = vector.load %arg2[%c1_79, %c0_80, %c0_81] : memref<2x1x128xf32, #tpu.memory_space<vmem>>, vector<1x1x128xf32>
    %176 = vector.shape_cast %175 : vector<1x1x128xf32> to vector<1x128xf32>
    %cst_82 = arith.constant dense<0.000000e+00> : vector<8xf32>
    %177 = vector.multi_reduction <add>, %172, %cst_82 [1] : vector<8x128xf32> to vector<8xf32>
    %178 = vector.shape_cast %177 : vector<8xf32> to vector<8x1xf32>
    %cst_83 = arith.constant 1.280000e+02 : f32
    %179 = vector.broadcast %cst_83 : f32 to vector<8x1xf32>
    %180 = arith.divf %178, %179 : vector<8x1xf32>
    %181 = vector.broadcast %180 : vector<8x1xf32> to vector<8x128xf32>
    %182 = arith.subf %172, %181 : vector<8x128xf32>
    %183 = arith.mulf %182, %182 : vector<8x128xf32>
    %cst_84 = arith.constant dense<0.000000e+00> : vector<8xf32>
    %184 = vector.multi_reduction <add>, %183, %cst_84 [1] : vector<8x128xf32> to vector<8xf32>
    %185 = vector.shape_cast %184 : vector<8xf32> to vector<8x1xf32>
    %cst_85 = arith.constant 1.280000e+02 : f32
    %186 = vector.broadcast %cst_85 : f32 to vector<8x1xf32>
    %187 = arith.divf %185, %186 : vector<8x1xf32>
    %188 = vector.broadcast %180 : vector<8x1xf32> to vector<8x128xf32>
    %189 = arith.subf %172, %188 : vector<8x128xf32>
    %cst_86 = arith.constant 9.99999974E-6 : f32
    %190 = vector.broadcast %cst_86 : f32 to vector<8x1xf32>
    %191 = arith.addf %187, %190 : vector<8x1xf32>
    %192 = math.rsqrt %191 : vector<8x1xf32>
    %193 = vector.broadcast %192 : vector<8x1xf32> to vector<8x128xf32>
    %194 = arith.mulf %189, %193 : vector<8x128xf32>
    %195 = vector.broadcast %174 : vector<1x128xf32> to vector<8x128xf32>
    %196 = arith.mulf %194, %195 : vector<8x128xf32>
    %197 = vector.broadcast %176 : vector<1x128xf32> to vector<8x128xf32>
    %198 = arith.addf %196, %197 : vector<8x128xf32>
    %c1_87 = arith.constant 1 : index
    %c0_88 = arith.constant 0 : index
    %c0_89 = arith.constant 0 : index
    %199 = vector.load %arg3[%c1_87, %c0_88, %c0_89] : memref<2x128x384xbf16, #tpu.memory_space<vmem>>, vector<1x128x384xbf16>
    %200 = vector.shape_cast %199 : vector<1x128x384xbf16> to vector<128x384xbf16>
    %201 = arith.truncf %198 : vector<8x128xf32> to vector<8x128xbf16>
    %cst_90 = arith.constant dense<0.000000e+00> : vector<8x384xf32>
    %202 = tpu.matmul %201, %200, %cst_90 {dimension_numbers = #tpu.dot_dimension_numbers<[1], [0], [0], [1], [0, 0, 1, 1], [], []>} : vector<8x128xbf16>, vector<128x384xbf16>, vector<8x384xf32> -> vector<8x384xf32>
    %c1_91 = arith.constant 1 : index
    %c0_92 = arith.constant 0 : index
    %c0_93 = arith.constant 0 : index
    %203 = vector.load %arg4[%c1_91, %c0_92, %c0_93] : memref<2x1x384xf32, #tpu.memory_space<vmem>>, vector<1x1x384xf32>
    %204 = vector.shape_cast %203 : vector<1x1x384xf32> to vector<1x384xf32>
    %205 = vector.broadcast %204 : vector<1x384xf32> to vector<8x384xf32>
    %206 = arith.addf %202, %205 : vector<8x384xf32>
    %207 = vector.extract_strided_slice %206 {offsets = [0, 0], sizes = [8, 128], strides = [1, 1]} : vector<8x384xf32> to vector<8x128xf32>
    %cst_94 = arith.constant 0.176776692 : f32
    %208 = vector.broadcast %cst_94 : f32 to vector<8x128xf32>
    %209 = arith.mulf %207, %208 : vector<8x128xf32>
    %210 = vector.extract_strided_slice %206 {offsets = [0, 128], sizes = [8, 128], strides = [1, 1]} : vector<8x384xf32> to vector<8x128xf32>
    %211 = vector.extract_strided_slice %206 {offsets = [0, 256], sizes = [8, 128], strides = [1, 1]} : vector<8x384xf32> to vector<8x128xf32>
    %212 = vector.extract_strided_slice %209 {offsets = [0, 0], sizes = [8, 32], strides = [1, 1]} : vector<8x128xf32> to vector<8x32xf32>
    %213 = vector.extract_strided_slice %210 {offsets = [0, 0], sizes = [8, 32], strides = [1, 1]} : vector<8x128xf32> to vector<8x32xf32>
    %214 = vector.extract_strided_slice %211 {offsets = [0, 0], sizes = [8, 32], strides = [1, 1]} : vector<8x128xf32> to vector<8x32xf32>
    %215 = tpu.transpose %213, [1, 0] : vector<8x32xf32> -> vector<32x8xf32>
    %cst_95 = arith.constant dense<0.000000e+00> : vector<8x8xf32>
    %216 = tpu.matmul %212, %215, %cst_95 {dimension_numbers = #tpu.dot_dimension_numbers<[1], [0], [0], [1], [0, 0, 1, 1], [], []>} : vector<8x32xf32>, vector<32x8xf32>, vector<8x8xf32> -> vector<8x8xf32>
    %217 = arith.addf %216, %6 : vector<8x8xf32>
    %cst_96 = arith.constant dense<0xFF800000> : vector<8xf32>
    %218 = vector.multi_reduction <maximumf>, %217, %cst_96 [1] : vector<8x8xf32> to vector<8xf32>
    %219 = vector.shape_cast %218 : vector<8xf32> to vector<8x1xf32>
    %220 = vector.broadcast %219 : vector<8x1xf32> to vector<8x8xf32>
    %221 = arith.subf %217, %220 : vector<8x8xf32>
    %222 = math.exp %221 : vector<8x8xf32>
    %cst_97 = arith.constant dense<0.000000e+00> : vector<8xf32>
    %223 = vector.multi_reduction <add>, %222, %cst_97 [1] : vector<8x8xf32> to vector<8xf32>
    %224 = vector.shape_cast %223 : vector<8xf32> to vector<8x1xf32>
    %225 = tpu.reciprocal %224 {approx = true} : vector<8x1xf32> -> vector<8x1xf32>
    %226 = vector.broadcast %225 : vector<8x1xf32> to vector<8x8xf32>
    %227 = arith.mulf %222, %226 : vector<8x8xf32>
    %cst_98 = arith.constant dense<0.000000e+00> : vector<8x32xf32>
    %228 = tpu.matmul %227, %214, %cst_98 {dimension_numbers = #tpu.dot_dimension_numbers<[1], [0], [0], [1], [0, 0, 1, 1], [], []>} : vector<8x8xf32>, vector<8x32xf32>, vector<8x32xf32> -> vector<8x32xf32>
    %c0_99 = arith.constant 0 : index
    %c0_100 = arith.constant 0 : index
    %229 = vector.load %arg16[%c0_99, %c0_100] : memref<8x128xf32, #tpu.memory_space<vmem>>, vector<8x32xf32>
    tpu.vector_store %arg16[%c0_99, %c0_100], %228 {strides = array<i32>} : memref<8x128xf32, #tpu.memory_space<vmem>>, vector<8x32xf32>,
    %230 = vector.extract_strided_slice %209 {offsets = [0, 32], sizes = [8, 32], strides = [1, 1]} : vector<8x128xf32> to vector<8x32xf32>
    %231 = vector.extract_strided_slice %210 {offsets = [0, 32], sizes = [8, 32], strides = [1, 1]} : vector<8x128xf32> to vector<8x32xf32>
    %232 = vector.extract_strided_slice %211 {offsets = [0, 32], sizes = [8, 32], strides = [1, 1]} : vector<8x128xf32> to vector<8x32xf32>
    %233 = tpu.transpose %231, [1, 0] : vector<8x32xf32> -> vector<32x8xf32>
    %cst_101 = arith.constant dense<0.000000e+00> : vector<8x8xf32>
    %234 = tpu.matmul %230, %233, %cst_101 {dimension_numbers = #tpu.dot_dimension_numbers<[1], [0], [0], [1], [0, 0, 1, 1], [], []>} : vector<8x32xf32>, vector<32x8xf32>, vector<8x8xf32> -> vector<8x8xf32>
    %235 = arith.addf %234, %6 : vector<8x8xf32>
    %cst_102 = arith.constant dense<0xFF800000> : vector<8xf32>
    %236 = vector.multi_reduction <maximumf>, %235, %cst_102 [1] : vector<8x8xf32> to vector<8xf32>
    %237 = vector.shape_cast %236 : vector<8xf32> to vector<8x1xf32>
    %238 = vector.broadcast %237 : vector<8x1xf32> to vector<8x8xf32>
    %239 = arith.subf %235, %238 : vector<8x8xf32>
    %240 = math.exp %239 : vector<8x8xf32>
    %cst_103 = arith.constant dense<0.000000e+00> : vector<8xf32>
    %241 = vector.multi_reduction <add>, %240, %cst_103 [1] : vector<8x8xf32> to vector<8xf32>
    %242 = vector.shape_cast %241 : vector<8xf32> to vector<8x1xf32>
    %243 = tpu.reciprocal %242 {approx = true} : vector<8x1xf32> -> vector<8x1xf32>
    %244 = vector.broadcast %243 : vector<8x1xf32> to vector<8x8xf32>
    %245 = arith.mulf %240, %244 : vector<8x8xf32>
    %cst_104 = arith.constant dense<0.000000e+00> : vector<8x32xf32>
    %246 = tpu.matmul %245, %232, %cst_104 {dimension_numbers = #tpu.dot_dimension_numbers<[1], [0], [0], [1], [0, 0, 1, 1], [], []>} : vector<8x8xf32>, vector<8x32xf32>, vector<8x32xf32> -> vector<8x32xf32>
    %c0_105 = arith.constant 0 : index
    %c32_106 = arith.constant 32 : index
    %247 = vector.load %arg16[%c0_105, %c32_106] : memref<8x128xf32, #tpu.memory_space<vmem>>, vector<8x32xf32>
    tpu.vector_store %arg16[%c0_105, %c32_106], %246 {strides = array<i32>} : memref<8x128xf32, #tpu.memory_space<vmem>>, vector<8x32xf32>,
    %248 = vector.extract_strided_slice %209 {offsets = [0, 64], sizes = [8, 32], strides = [1, 1]} : vector<8x128xf32> to vector<8x32xf32>
    %249 = vector.extract_strided_slice %210 {offsets = [0, 64], sizes = [8, 32], strides = [1, 1]} : vector<8x128xf32> to vector<8x32xf32>
    %250 = vector.extract_strided_slice %211 {offsets = [0, 64], sizes = [8, 32], strides = [1, 1]} : vector<8x128xf32> to vector<8x32xf32>
    %251 = tpu.transpose %249, [1, 0] : vector<8x32xf32> -> vector<32x8xf32>
    %cst_107 = arith.constant dense<0.000000e+00> : vector<8x8xf32>
    %252 = tpu.matmul %248, %251, %cst_107 {dimension_numbers = #tpu.dot_dimension_numbers<[1], [0], [0], [1], [0, 0, 1, 1], [], []>} : vector<8x32xf32>, vector<32x8xf32>, vector<8x8xf32> -> vector<8x8xf32>
    %253 = arith.addf %252, %6 : vector<8x8xf32>
    %cst_108 = arith.constant dense<0xFF800000> : vector<8xf32>
    %254 = vector.multi_reduction <maximumf>, %253, %cst_108 [1] : vector<8x8xf32> to vector<8xf32>
    %255 = vector.shape_cast %254 : vector<8xf32> to vector<8x1xf32>
    %256 = vector.broadcast %255 : vector<8x1xf32> to vector<8x8xf32>
    %257 = arith.subf %253, %256 : vector<8x8xf32>
    %258 = math.exp %257 : vector<8x8xf32>
    %cst_109 = arith.constant dense<0.000000e+00> : vector<8xf32>
    %259 = vector.multi_reduction <add>, %258, %cst_109 [1] : vector<8x8xf32> to vector<8xf32>
    %260 = vector.shape_cast %259 : vector<8xf32> to vector<8x1xf32>
    %261 = tpu.reciprocal %260 {approx = true} : vector<8x1xf32> -> vector<8x1xf32>
    %262 = vector.broadcast %261 : vector<8x1xf32> to vector<8x8xf32>
    %263 = arith.mulf %258, %262 : vector<8x8xf32>
    %cst_110 = arith.constant dense<0.000000e+00> : vector<8x32xf32>
    %264 = tpu.matmul %263, %250, %cst_110 {dimension_numbers = #tpu.dot_dimension_numbers<[1], [0], [0], [1], [0, 0, 1, 1], [], []>} : vector<8x8xf32>, vector<8x32xf32>, vector<8x32xf32> -> vector<8x32xf32>
    %c0_111 = arith.constant 0 : index
    %c64_112 = arith.constant 64 : index
    %265 = vector.load %arg16[%c0_111, %c64_112] : memref<8x128xf32, #tpu.memory_space<vmem>>, vector<8x32xf32>
    tpu.vector_store %arg16[%c0_111, %c64_112], %264 {strides = array<i32>} : memref<8x128xf32, #tpu.memory_space<vmem>>, vector<8x32xf32>,
    %266 = vector.extract_strided_slice %209 {offsets = [0, 96], sizes = [8, 32], strides = [1, 1]} : vector<8x128xf32> to vector<8x32xf32>
    %267 = vector.extract_strided_slice %210 {offsets = [0, 96], sizes = [8, 32], strides = [1, 1]} : vector<8x128xf32> to vector<8x32xf32>
    %268 = vector.extract_strided_slice %211 {offsets = [0, 96], sizes = [8, 32], strides = [1, 1]} : vector<8x128xf32> to vector<8x32xf32>
    %269 = tpu.transpose %267, [1, 0] : vector<8x32xf32> -> vector<32x8xf32>
    %cst_113 = arith.constant dense<0.000000e+00> : vector<8x8xf32>
    %270 = tpu.matmul %266, %269, %cst_113 {dimension_numbers = #tpu.dot_dimension_numbers<[1], [0], [0], [1], [0, 0, 1, 1], [], []>} : vector<8x32xf32>, vector<32x8xf32>, vector<8x8xf32> -> vector<8x8xf32>
    %271 = arith.addf %270, %6 : vector<8x8xf32>
    %cst_114 = arith.constant dense<0xFF800000> : vector<8xf32>
    %272 = vector.multi_reduction <maximumf>, %271, %cst_114 [1] : vector<8x8xf32> to vector<8xf32>
    %273 = vector.shape_cast %272 : vector<8xf32> to vector<8x1xf32>
    %274 = vector.broadcast %273 : vector<8x1xf32> to vector<8x8xf32>
    %275 = arith.subf %271, %274 : vector<8x8xf32>
    %276 = math.exp %275 : vector<8x8xf32>
    %cst_115 = arith.constant dense<0.000000e+00> : vector<8xf32>
    %277 = vector.multi_reduction <add>, %276, %cst_115 [1] : vector<8x8xf32> to vector<8xf32>
    %278 = vector.shape_cast %277 : vector<8xf32> to vector<8x1xf32>
    %279 = tpu.reciprocal %278 {approx = true} : vector<8x1xf32> -> vector<8x1xf32>
    %280 = vector.broadcast %279 : vector<8x1xf32> to vector<8x8xf32>
    %281 = arith.mulf %276, %280 : vector<8x8xf32>
    %cst_116 = arith.constant dense<0.000000e+00> : vector<8x32xf32>
    %282 = tpu.matmul %281, %268, %cst_116 {dimension_numbers = #tpu.dot_dimension_numbers<[1], [0], [0], [1], [0, 0, 1, 1], [], []>} : vector<8x8xf32>, vector<8x32xf32>, vector<8x32xf32> -> vector<8x32xf32>
    %c0_117 = arith.constant 0 : index
    %c96_118 = arith.constant 96 : index
    %283 = vector.load %arg16[%c0_117, %c96_118] : memref<8x128xf32, #tpu.memory_space<vmem>>, vector<8x32xf32>
    tpu.vector_store %arg16[%c0_117, %c96_118], %282 {strides = array<i32>} : memref<8x128xf32, #tpu.memory_space<vmem>>, vector<8x32xf32>,
    %c0_119 = arith.constant 0 : index
    %c0_120 = arith.constant 0 : index
    %284 = vector.load %arg16[%c0_119, %c0_120] : memref<8x128xf32, #tpu.memory_space<vmem>>, vector<8x128xf32>
    %c1_121 = arith.constant 1 : index
    %c0_122 = arith.constant 0 : index
    %c0_123 = arith.constant 0 : index
    %285 = vector.load %arg5[%c1_121, %c0_122, %c0_123] : memref<2x128x128xbf16, #tpu.memory_space<vmem>>, vector<1x128x128xbf16>
    %286 = vector.shape_cast %285 : vector<1x128x128xbf16> to vector<128x128xbf16>
    %287 = arith.truncf %284 : vector<8x128xf32> to vector<8x128xbf16>
    %cst_124 = arith.constant dense<0.000000e+00> : vector<8x128xf32>
    %288 = tpu.matmul %287, %286, %cst_124 {dimension_numbers = #tpu.dot_dimension_numbers<[1], [0], [0], [1], [0, 0, 1, 1], [], []>} : vector<8x128xbf16>, vector<128x128xbf16>, vector<8x128xf32> -> vector<8x128xf32>
    %289 = arith.addf %172, %288 : vector<8x128xf32>
    %c1_125 = arith.constant 1 : index
    %c0_126 = arith.constant 0 : index
    %c0_127 = arith.constant 0 : index
    %290 = vector.load %arg6[%c1_125, %c0_126, %c0_127] : memref<2x1x128xf32, #tpu.memory_space<vmem>>, vector<1x1x128xf32>
    %291 = vector.shape_cast %290 : vector<1x1x128xf32> to vector<1x128xf32>
    %292 = vector.broadcast %291 : vector<1x128xf32> to vector<8x128xf32>
    %293 = arith.addf %289, %292 : vector<8x128xf32>
    %c1_128 = arith.constant 1 : index
    %c0_129 = arith.constant 0 : index
    %c0_130 = arith.constant 0 : index
    %294 = vector.load %arg7[%c1_128, %c0_129, %c0_130] : memref<2x1x128xf32, #tpu.memory_space<vmem>>, vector<1x1x128xf32>
    %295 = vector.shape_cast %294 : vector<1x1x128xf32> to vector<1x128xf32>
    %c1_131 = arith.constant 1 : index
    %c0_132 = arith.constant 0 : index
    %c0_133 = arith.constant 0 : index
    %296 = vector.load %arg8[%c1_131, %c0_132, %c0_133] : memref<2x1x128xf32, #tpu.memory_space<vmem>>, vector<1x1x128xf32>
    %297 = vector.shape_cast %296 : vector<1x1x128xf32> to vector<1x128xf32>
    %cst_134 = arith.constant dense<0.000000e+00> : vector<8xf32>
    %298 = vector.multi_reduction <add>, %293, %cst_134 [1] : vector<8x128xf32> to vector<8xf32>
    %299 = vector.shape_cast %298 : vector<8xf32> to vector<8x1xf32>
    %cst_135 = arith.constant 1.280000e+02 : f32
    %300 = vector.broadcast %cst_135 : f32 to vector<8x1xf32>
    %301 = arith.divf %299, %300 : vector<8x1xf32>
    %302 = vector.broadcast %301 : vector<8x1xf32> to vector<8x128xf32>
    %303 = arith.subf %293, %302 : vector<8x128xf32>
    %304 = arith.mulf %303, %303 : vector<8x128xf32>
    %cst_136 = arith.constant dense<0.000000e+00> : vector<8xf32>
    %305 = vector.multi_reduction <add>, %304, %cst_136 [1] : vector<8x128xf32> to vector<8xf32>
    %306 = vector.shape_cast %305 : vector<8xf32> to vector<8x1xf32>
    %cst_137 = arith.constant 1.280000e+02 : f32
    %307 = vector.broadcast %cst_137 : f32 to vector<8x1xf32>
    %308 = arith.divf %306, %307 : vector<8x1xf32>
    %309 = vector.broadcast %301 : vector<8x1xf32> to vector<8x128xf32>
    %310 = arith.subf %293, %309 : vector<8x128xf32>
    %cst_138 = arith.constant 9.99999974E-6 : f32
    %311 = vector.broadcast %cst_138 : f32 to vector<8x1xf32>
    %312 = arith.addf %308, %311 : vector<8x1xf32>
    %313 = math.rsqrt %312 : vector<8x1xf32>
    %314 = vector.broadcast %313 : vector<8x1xf32> to vector<8x128xf32>
    %315 = arith.mulf %310, %314 : vector<8x128xf32>
    %316 = vector.broadcast %295 : vector<1x128xf32> to vector<8x128xf32>
    %317 = arith.mulf %315, %316 : vector<8x128xf32>
    %318 = vector.broadcast %297 : vector<1x128xf32> to vector<8x128xf32>
    %319 = arith.addf %317, %318 : vector<8x128xf32>
    %c1_139 = arith.constant 1 : index
    %c0_140 = arith.constant 0 : index
    %c0_141 = arith.constant 0 : index
    %320 = vector.load %arg9[%c1_139, %c0_140, %c0_141] : memref<2x128x512xbf16, #tpu.memory_space<vmem>>, vector<1x128x512xbf16>
    %321 = vector.shape_cast %320 : vector<1x128x512xbf16> to vector<128x512xbf16>
    %322 = arith.truncf %319 : vector<8x128xf32> to vector<8x128xbf16>
    %cst_142 = arith.constant dense<0.000000e+00> : vector<8x512xf32>
    %323 = tpu.matmul %322, %321, %cst_142 {dimension_numbers = #tpu.dot_dimension_numbers<[1], [0], [0], [1], [0, 0, 1, 1], [], []>} : vector<8x128xbf16>, vector<128x512xbf16>, vector<8x512xf32> -> vector<8x512xf32>
    %c1_143 = arith.constant 1 : index
    %c0_144 = arith.constant 0 : index
    %c0_145 = arith.constant 0 : index
    %324 = vector.load %arg10[%c1_143, %c0_144, %c0_145] : memref<2x1x512xf32, #tpu.memory_space<vmem>>, vector<1x1x512xf32>
    %325 = vector.shape_cast %324 : vector<1x1x512xf32> to vector<1x512xf32>
    %326 = vector.broadcast %325 : vector<1x512xf32> to vector<8x512xf32>
    %327 = arith.addf %323, %326 : vector<8x512xf32>
    %cst_146 = arith.constant 0.000000e+00 : f32
    %328 = vector.broadcast %cst_146 : f32 to vector<8x512xf32>
    %329 = arith.maximumf %327, %328 : vector<8x512xf32>
    %c1_147 = arith.constant 1 : index
    %c0_148 = arith.constant 0 : index
    %c0_149 = arith.constant 0 : index
    %330 = vector.load %arg11[%c1_147, %c0_148, %c0_149] : memref<2x512x128xbf16, #tpu.memory_space<vmem>>, vector<1x512x128xbf16>
    %331 = vector.shape_cast %330 : vector<1x512x128xbf16> to vector<512x128xbf16>
    %332 = arith.truncf %329 : vector<8x512xf32> to vector<8x512xbf16>
    %cst_150 = arith.constant dense<0.000000e+00> : vector<8x128xf32>
    %333 = tpu.matmul %332, %331, %cst_150 {dimension_numbers = #tpu.dot_dimension_numbers<[1], [0], [0], [1], [0, 0, 1, 1], [], []>} : vector<8x512xbf16>, vector<512x128xbf16>, vector<8x128xf32> -> vector<8x128xf32>
    %334 = arith.addf %293, %333 : vector<8x128xf32>
    %c1_151 = arith.constant 1 : index
    %c0_152 = arith.constant 0 : index
    %c0_153 = arith.constant 0 : index
    %335 = vector.load %arg12[%c1_151, %c0_152, %c0_153] : memref<2x1x128xf32, #tpu.memory_space<vmem>>, vector<1x1x128xf32>
    %336 = vector.shape_cast %335 : vector<1x1x128xf32> to vector<1x128xf32>
    %337 = vector.broadcast %336 : vector<1x128xf32> to vector<8x128xf32>
    %338 = arith.addf %334, %337 : vector<8x128xf32>
    %c0_154 = arith.constant 0 : index
    %c0_155 = arith.constant 0 : index
    %339 = vector.load %arg13[%c0_154, %c0_155] : memref<1x128xf32, #tpu.memory_space<vmem>>, vector<1x128xf32>
    %c0_156 = arith.constant 0 : index
    %c0_157 = arith.constant 0 : index
    %340 = vector.load %arg14[%c0_156, %c0_157] : memref<1x128xf32, #tpu.memory_space<vmem>>, vector<1x128xf32>
    %cst_158 = arith.constant dense<0.000000e+00> : vector<8xf32>
    %341 = vector.multi_reduction <add>, %338, %cst_158 [1] : vector<8x128xf32> to vector<8xf32>
    %342 = vector.shape_cast %341 : vector<8xf32> to vector<8x1xf32>
    %cst_159 = arith.constant 1.280000e+02 : f32
    %343 = vector.broadcast %cst_159 : f32 to vector<8x1xf32>
    %344 = arith.divf %342, %343 : vector<8x1xf32>
    %345 = vector.broadcast %344 : vector<8x1xf32> to vector<8x128xf32>
    %346 = arith.subf %338, %345 : vector<8x128xf32>
    %347 = arith.mulf %346, %346 : vector<8x128xf32>
    %cst_160 = arith.constant dense<0.000000e+00> : vector<8xf32>
    %348 = vector.multi_reduction <add>, %347, %cst_160 [1] : vector<8x128xf32> to vector<8xf32>
    %349 = vector.shape_cast %348 : vector<8xf32> to vector<8x1xf32>
    %cst_161 = arith.constant 1.280000e+02 : f32
    %350 = vector.broadcast %cst_161 : f32 to vector<8x1xf32>
    %351 = arith.divf %349, %350 : vector<8x1xf32>
    %352 = vector.broadcast %344 : vector<8x1xf32> to vector<8x128xf32>
    %353 = arith.subf %338, %352 : vector<8x128xf32>
    %cst_162 = arith.constant 9.99999974E-6 : f32
    %354 = vector.broadcast %cst_162 : f32 to vector<8x1xf32>
    %355 = arith.addf %351, %354 : vector<8x1xf32>
    %356 = math.rsqrt %355 : vector<8x1xf32>
    %357 = vector.broadcast %356 : vector<8x1xf32> to vector<8x128xf32>
    %358 = arith.mulf %353, %357 : vector<8x128xf32>
    %359 = vector.broadcast %339 : vector<1x128xf32> to vector<8x128xf32>
    %360 = arith.mulf %358, %359 : vector<8x128xf32>
    %361 = vector.broadcast %340 : vector<1x128xf32> to vector<8x128xf32>
    %362 = arith.addf %360, %361 : vector<8x128xf32>
    %c0_163 = arith.constant 0 : index
    %c0_164 = arith.constant 0 : index
    %363 = vector.load %arg15[%c0_163, %c0_164] : memref<8x128xf32, #tpu.memory_space<vmem>>, vector<8x128xf32>
    tpu.vector_store %arg15[%c0_163, %c0_164], %362 {strides = array<i32>} : memref<8x128xf32, #tpu.memory_space<vmem>>, vector<8x128xf32>,
    return
  }
}

</mosaic_0001>

<llo_original>
// kernel: tpu_custom_call.1
$region0: #{tpu_custom_call.1}
  #allocation0 [shape = 'u32[]', space=smem, size = 0x4, offset = 0x4, fixed_abs, tag = 'smem constant byte address 0x4 - core index']
  #allocation1 [shape = 'u32[144,128]{1,0:T(1,128)}', space=vmem, size = 0x12000, scoped, tag = 'internal scratch']
  #allocation2 [shape = 'f32[8,128]{1,0:T(8,128)}', space=vmem, size = 0x1000, scoped, tag = 'scratch operand']
  %s0 = inlined_call_operand.hbm [shape: f32[8,128], index: 0, kind: input, shape index: {}]
  %s1 = inlined_call_operand.hbm [shape: f32[2,1,128], index: 1, kind: input, shape index: {}]
  %s2 = inlined_call_operand.hbm [shape: f32[2,1,128], index: 2, kind: input, shape index: {}]
  %s3 = inlined_call_operand.hbm [shape: bf16[2,128,384], index: 3, kind: input, shape index: {}]
  %s4 = inlined_call_operand.vmem [shape: f32[2,1,384], index: 4, kind: input, shape index: {}]
  %s5 = inlined_call_operand.hbm [shape: bf16[2,128,128], index: 5, kind: input, shape index: {}]
  %s6 = inlined_call_operand.vmem [shape: f32[2,1,128], index: 6, kind: input, shape index: {}]
  %s7 = inlined_call_operand.vmem [shape: f32[2,1,128], index: 7, kind: input, shape index: {}]
  %s8 = inlined_call_operand.vmem [shape: f32[2,1,128], index: 8, kind: input, shape index: {}]
  %s9 = inlined_call_operand.hbm [shape: bf16[2,128,512], index: 9, kind: input, shape index: {}]
  %s10 = inlined_call_operand.vmem [shape: f32[2,1,512], index: 10, kind: input, shape index: {}]
  %s11 = inlined_call_operand.hbm [shape: bf16[2,512,128], index: 11, kind: input, shape index: {}]
  %s12 = inlined_call_operand.vmem [shape: f32[2,1,128], index: 12, kind: input, shape index: {}]
  %s13 = inlined_call_operand.vmem [shape: f32[1,128], index: 13, kind: input, shape index: {}]
  %s14 = inlined_call_operand.vmem [shape: f32[1,128], index: 14, kind: input, shape index: {}]
  %s15 = inlined_call_operand.hbm [shape: f32[8,128], index: 15, kind: output, shape index: {}]
  %s16 = sld [smem:[#allocation0]]
  $region98: #{tpu_custom_call.1} parent=0
    _
  %s18 = ssub.s32 1, %s16
  %s19 = scalar_select 0, %s18, %s16
  $region1: #{tpu_custom_call.1} parent=0
    #allocation3 [shape = 'u8[4096]{0}', space=vmem, size = 0x1000, scoped, tag = 'input window, operand 0, single buffered']
    #allocation4 [shape = 's32[1]{0}', space=sflag, size = 0x4, scoped, tag = 'scoped memory for tpu_custom_call.1']
    #allocation5 [shape = 's32[1]{0}', space=sflag, size = 0x4, scoped, tag = 'scoped memory for tpu_custom_call.1']
    #allocation6 [shape = 'u8[1024]{0}', space=vmem, size = 0x400, scoped, tag = 'input window, operand 1, single buffered']
    #allocation7 [shape = 's32[1]{0}', space=sflag, size = 0x4, scoped, tag = 'scoped memory for tpu_custom_call.1']
    #allocation8 [shape = 'u8[1024]{0}', space=vmem, size = 0x400, scoped, tag = 'input window, operand 2, single buffered']
    #allocation9 [shape = 'u8[196608]{0}', space=vmem, size = 0x30000, scoped, tag = 'input window, operand 3, single buffered']
    #allocation10 [shape = 's32[1]{0}', space=sflag, size = 0x4, scoped, tag = 'scoped memory for tpu_custom_call.1']
    #allocation11 [shape = 'u8[65536]{0}', space=vmem, size = 0x10000, scoped, tag = 'input window, operand 5, single buffered']
    #allocation12 [shape = 'u8[262144]{0}', space=vmem, size = 0x40000, scoped, tag = 'input window, operand 9, single buffered']
    #allocation13 [shape = 's32[1]{0}', space=sflag, size = 0x4, scoped, tag = 'scoped memory for tpu_custom_call.1']
    #allocation14 [shape = 'u8[262144]{0}', space=vmem, size = 0x40000, scoped, tag = 'input window, operand 11, single buffered']
    #allocation15 [shape = 'u8[4096]{0}', space=vmem, size = 0x1000, scoped, tag = 'output window, operand 0, single buffered']
    %20 = vsyncpa [#allocation4], 0
    %21 = vsyncpa [#allocation7], 0
    %22 = vsyncpa [#allocation10], 0
    %23 = vsyncpa [#allocation13], 0
    %24 = vsyncpa [#allocation5], 0
    // Predicated region
    $region2: #{tpu_custom_call.1} parent=1 // pred_check
      _
    $region3: #{tpu_custom_call.1} parent=1 // pred_check_branch
      %26 = sbr.rel (0) target = $region5
    $region4: #{tpu_custom_call.1} parent=1 // pred_region
      %s28 = ssub.s32 128, 128
      %29 = vsyncadd [#allocation4], %s28
      %s31 = sshll.u32 [#allocation3], 4
      %s32 = int_to_ptr.vmem [resolvable:$true] %s31
      %34 = dma.hbm_to_vmem [thread:$0]  %s0, 128, %s32, [#allocation4]
    $region5: #{tpu_custom_call.1} parent=1 // pred_fallthru
      _
    // Predicated region
    $region6: #{tpu_custom_call.1} parent=1 // pred_check
      _
    $region7: #{tpu_custom_call.1} parent=1 // pred_check_branch
      %36 = sbr.rel (0) target = $region9
    $region8: #{tpu_custom_call.1} parent=1 // pred_region
      %s38 = ssub.s32 32, 32
      %39 = vsyncadd [#allocation7], %s38
      %s40 = sshll.u32 [#allocation6], 4
      %s41 = int_to_ptr.vmem [resolvable:$true] %s40
      %46 = dma.hbm_to_vmem [thread:$0]  %s1, 32, %s41, [#allocation7], 16, 16, 1
    $region9: #{tpu_custom_call.1} parent=1 // pred_fallthru
      _
    // Predicated region
    $region10: #{tpu_custom_call.1} parent=1 // pred_check
      _
    $region11: #{tpu_custom_call.1} parent=1 // pred_check_branch
      %48 = sbr.rel (0) target = $region13
    $region12: #{tpu_custom_call.1} parent=1 // pred_region
      %s50 = ssub.s32 32, 32
      %51 = vsyncadd [#allocation7], %s50
      %s52 = sshll.u32 [#allocation8], 4
      %s53 = int_to_ptr.vmem [resolvable:$true] %s52
      %58 = dma.hbm_to_vmem [thread:$0]  %s2, 32, %s53, [#allocation7], 16, 16, 1
    $region13: #{tpu_custom_call.1} parent=1 // pred_fallthru
      _
    // Predicated region
    $region14: #{tpu_custom_call.1} parent=1 // pred_check
      _
    $region15: #{tpu_custom_call.1} parent=1 // pred_check_branch
      %60 = sbr.rel (0) target = $region17
    $region16: #{tpu_custom_call.1} parent=1 // pred_region
      %s62 = ssub.s32 6144, 6144
      %63 = vsyncadd [#allocation10], %s62
      %s64 = sshll.u32 [#allocation9], 4
      %s65 = int_to_ptr.vmem [resolvable:$true] %s64
      %70 = dma.hbm_to_vmem [thread:$0]  %s3, 6144, %s65, [#allocation10], 192, 192, 12
    $region17: #{tpu_custom_call.1} parent=1 // pred_fallthru
      _
    // Predicated region
    $region18: #{tpu_custom_call.1} parent=1 // pred_check
      _
    $region19: #{tpu_custom_call.1} parent=1 // pred_check_branch
      %72 = sbr.rel (0) target = $region21
    $region20: #{tpu_custom_call.1} parent=1 // pred_region
      _
    $region21: #{tpu_custom_call.1} parent=1 // pred_fallthru
      _
    // Predicated region
    $region22: #{tpu_custom_call.1} parent=1 // pred_check
      _
    $region23: #{tpu_custom_call.1} parent=1 // pred_check_branch
      %74 = sbr.rel (0) target = $region25
    $region24: #{tpu_custom_call.1} parent=1 // pred_region
      %s76 = ssub.s32 2048, 2048
      %77 = vsyncadd [#allocation10], %s76
      %s78 = sshll.u32 [#allocation11], 4
      %s79 = int_to_ptr.vmem [resolvable:$true] %s78
      %84 = dma.hbm_to_vmem [thread:$0]  %s5, 2048, %s79, [#allocation10], 64, 64, 4
    $region25: #{tpu_custom_call.1} parent=1 // pred_fallthru
      _
    // Predicated region
    $region26: #{tpu_custom_call.1} parent=1 // pred_check
      _
    $region27: #{tpu_custom_call.1} parent=1 // pred_check_branch
      %86 = sbr.rel (0) target = $region29
    $region28: #{tpu_custom_call.1} parent=1 // pred_region
      _
    $region29: #{tpu_custom_call.1} parent=1 // pred_fallthru
      _
    // Predicated region
    $region30: #{tpu_custom_call.1} parent=1 // pred_check
      _
    $region31: #{tpu_custom_call.1} parent=1 // pred_check_branch
      %88 = sbr.rel (0) target = $region33
    $region32: #{tpu_custom_call.1} parent=1 // pred_region
      _
    $region33: #{tpu_custom_call.1} parent=1 // pred_fallthru
      _
    // Predicated region
    $region34: #{tpu_custom_call.1} parent=1 // pred_check
      _
    $region35: #{tpu_custom_call.1} parent=1 // pred_check_branch
      %90 = sbr.rel (0) target = $region37
    $region36: #{tpu_custom_call.1} parent=1 // pred_region
      _
    $region37: #{tpu_custom_call.1} parent=1 // pred_fallthru
      _
    // Predicated region
    $region38: #{tpu_custom_call.1} parent=1 // pred_check
      _
    $region39: #{tpu_custom_call.1} parent=1 // pred_check_branch
      %92 = sbr.rel (0) target = $region41
    $region40: #{tpu_custom_call.1} parent=1 // pred_region
      %s94 = ssub.s32 8192, 8192
      %95 = vsyncadd [#allocation13], %s94
      %s96 = sshll.u32 [#allocation12], 4
      %s97 = int_to_ptr.vmem [resolvable:$true] %s96
      %102 = dma.hbm_to_vmem [thread:$0]  %s9, 8192, %s97, [#allocation13], 256, 256, 16
    $region41: #{tpu_custom_call.1} parent=1 // pred_fallthru
      _
    // Predicated region
    $region42: #{tpu_custom_call.1} parent=1 // pred_check
      _
    $region43: #{tpu_custom_call.1} parent=1 // pred_check_branch
      %104 = sbr.rel (0) target = $region45
    $region44: #{tpu_custom_call.1} parent=1 // pred_region
      _
    $region45: #{tpu_custom_call.1} parent=1 // pred_fallthru
      _
    // Predicated region
    $region46: #{tpu_custom_call.1} parent=1 // pred_check
      _
    $region47: #{tpu_custom_call.1} parent=1 // pred_check_branch
      %106 = sbr.rel (0) target = $region49
    $region48: #{tpu_custom_call.1} parent=1 // pred_region
      %s108 = ssub.s32 8192, 8192
      %109 = vsyncadd [#allocation13], %s108
      %s110 = sshll.u32 [#allocation14], 4
      %s111 = int_to_ptr.vmem [resolvable:$true] %s110
      %116 = dma.hbm_to_vmem [thread:$0]  %s11, 8192, %s111, [#allocation13], 64, 64, 4
    $region49: #{tpu_custom_call.1} parent=1 // pred_fallthru
      _
    // Predicated region
    $region50: #{tpu_custom_call.1} parent=1 // pred_check
      _
    $region51: #{tpu_custom_call.1} parent=1 // pred_check_branch
      %118 = sbr.rel (0) target = $region53
    $region52: #{tpu_custom_call.1} parent=1 // pred_region
      _
    $region53: #{tpu_custom_call.1} parent=1 // pred_fallthru
      _
    // Predicated region
    $region54: #{tpu_custom_call.1} parent=1 // pred_check
      _
    $region55: #{tpu_custom_call.1} parent=1 // pred_check_branch
      %120 = sbr.rel (0) target = $region57
    $region56: #{tpu_custom_call.1} parent=1 // pred_region
      _
    $region57: #{tpu_custom_call.1} parent=1 // pred_fallthru
      _
    // Predicated region
    $region58: #{tpu_custom_call.1} parent=1 // pred_check
      _
    $region59: #{tpu_custom_call.1} parent=1 // pred_check_branch
      %122 = sbr.rel (0) target = $region61
    $region60: #{tpu_custom_call.1} parent=1 // pred_region
      _
    $region61: #{tpu_custom_call.1} parent=1 // pred_fallthru
      _
    // Predicated region
    $region62: #{tpu_custom_call.1} parent=1 // pred_check
      _
    $region63: #{tpu_custom_call.1} parent=1 // pred_check_branch
      %124 = sbr.rel (0) target = $region65
    $region64: #{tpu_custom_call.1} parent=1 // pred_region
      %125 = dma.done [#allocation4], 128
    $region65: #{tpu_custom_call.1} parent=1 // pred_fallthru
      _
    // Predicated region
    $region66: #{tpu_custom_call.1} parent=1 // pred_check
      _
    $region67: #{tpu_custom_call.1} parent=1 // pred_check_branch
      %127 = sbr.rel (0) target = $region69
    $region68: #{tpu_custom_call.1} parent=1 // pred_region
      %128 = dma.done [#allocation7], 32
    $region69: #{tpu_custom_call.1} parent=1 // pred_fallthru
      _
    // Predicated region
    $region70: #{tpu_custom_call.1} parent=1 // pred_check
      _
    $region71: #{tpu_custom_call.1} parent=1 // pred_check_branch
      %130 = sbr.rel (0) target = $region73
    $region72: #{tpu_custom_call.1} parent=1 // pred_region
      %131 = dma.done [#allocation7], 32
    $region73: #{tpu_custom_call.1} parent=1 // pred_fallthru
      _
    // Predicated region
    $region74: #{tpu_custom_call.1} parent=1 // pred_check
      _
    $region75: #{tpu_custom_call.1} parent=1 // pred_check_branch
      %133 = sbr.rel (0) target = $region77
    $region76: #{tpu_custom_call.1} parent=1 // pred_region
      %134 = dma.done [#allocation10], 6144
    $region77: #{tpu_custom_call.1} parent=1 // pred_fallthru
      _
    // Predicated region
    $region78: #{tpu_custom_call.1} parent=1 // pred_check
      _
    $region79: #{tpu_custom_call.1} parent=1 // pred_check_branch
      %136 = sbr.rel (0) target = $region81
    $region80: #{tpu_custom_call.1} parent=1 // pred_region
      %137 = dma.done [#allocation10], 2048
    $region81: #{tpu_custom_call.1} parent=1 // pred_fallthru
      _
    // Predicated region
    $region82: #{tpu_custom_call.1} parent=1 // pred_check
      _
    $region83: #{tpu_custom_call.1} parent=1 // pred_check_branch
      %139 = sbr.rel (0) target = $region85
    $region84: #{tpu_custom_call.1} parent=1 // pred_region
      %140 = dma.done [#allocation13], 8192
    $region85: #{tpu_custom_call.1} parent=1 // pred_fallthru
      _
    // Predicated region
    $region86: #{tpu_custom_call.1} parent=1 // pred_check
      _
    $region87: #{tpu_custom_call.1} parent=1 // pred_check_branch
      %142 = sbr.rel (0) target = $region89
    $region88: #{tpu_custom_call.1} parent=1 // pred_region
      %143 = dma.done [#allocation13], 8192
    $region89: #{tpu_custom_call.1} parent=1 // pred_fallthru
      _
    %v145 = vld [vmem:[#allocation3] sm:$0xff]
    %v146 = vlaneseq
    %v147 = vshrl.u32 %v146, 7
    %v148 = vlaneseq
    %v149 = vand.u32 %v148, 127
    %vm150 = vcmp.ge.s32.totalorder %v147, %v149
    %v151 = vsel %vm150, 0.0, -1e+30
    %v152 = vld [vmem:[#allocation6] sm:$0x1]
    %v153 = vld [vmem:[#allocation8] sm:$0x1]
    %154 = vadd.xlane.f32.xlu0 %v145
    %v155 = vpop.xlane.xlu0 %154
    %v156 = vrcp.pop 128.0
    %v157 = vmul.f32 %v155, %v156
    %v158 = vsub.f32 %v145, %v157
    %v159 = vmul.f32 %v158, %v158
    %160 = vadd.xlane.f32.xlu0 %v159
    %v161 = vpop.xlane.xlu0 %160
    %v162 = vmul.f32 %v161, %v156
    %v163 = vadd.f32 %v162, 1e-05
    %v164 = vrsqrt.pop %v163
    %v165 = vmul.f32 %v158, %v164
    %v167 = vlaneseq
    %v168 = vshrl.u32 %v167, 7
    %v169 = vsub.s32 0, %v168
    %v170 = vrot.slane %v152, %v169
    %v172 = vmul.f32 %v165, %v170
    %v174 = vlaneseq
    %v175 = vshrl.u32 %v174, 7
    %v176 = vsub.s32 0, %v175
    %v177 = vrot.slane %v153, %v176
    %v179 = vadd.f32 %v172, %v177
    %v180 = vld [vmem:[#allocation9] sm:$0xff]
    %v181 = vld [vmem:[#allocation9 + $0x8] sm:$0xf]
    %v182 = vld [vmem:[#allocation9 + $0xc] sm:$0xff]
    %v183 = vld [vmem:[#allocation9 + $0x14] sm:$0xf]
    %v184 = vld [vmem:[#allocation9 + $0x18] sm:$0xff]
    %v185 = vld [vmem:[#allocation9 + $0x20] sm:$0xf]
    %v186 = vld [vmem:[#allocation9 + $0x24] sm:$0xff]
    %v187 = vld [vmem:[#allocation9 + $0x2c] sm:$0xf]
    %v188 = vld [vmem:[#allocation9 + $0x30] sm:$0xff]
    %v189 = vld [vmem:[#allocation9 + $0x38] sm:$0xf]
    %v190 = vld [vmem:[#allocation9 + $0x3c] sm:$0xff]
    %v191 = vld [vmem:[#allocation9 + $0x44] sm:$0xf]
    %v192 = vld [vmem:[#allocation9 + $0x48] sm:$0xff]
    %v193 = vld [vmem:[#allocation9 + $0x50] sm:$0xf]
    %v194 = vld [vmem:[#allocation9 + $0x54] sm:$0xff]
    %v195 = vld [vmem:[#allocation9 + $0x5c] sm:$0xf]
    %v196 = vld [vmem:[#allocation9 + $0x60] sm:$0xff]
    %v197 = vld [vmem:[#allocation9 + $0x68] sm:$0xf]
    %v198 = vld [vmem:[#allocation9 + $0x6c] sm:$0xff]
    %v199 = vld [vmem:[#allocation9 + $0x74] sm:$0xf]
    %v200 = vld [vmem:[#allocation9 + $0x78] sm:$0xff]
    %v201 = vld [vmem:[#allocation9 + $0x80] sm:$0xf]
    %v202 = vld [vmem:[#allocation9 + $0x84] sm:$0xff]
    %v203 = vld [vmem:[#allocation9 + $0x8c] sm:$0xf]
    %v204 = vld [vmem:[#allocation9 + $0x90] sm:$0xff]
    %v205 = vld [vmem:[#allocation9 + $0x98] sm:$0xf]
    %v206 = vld [vmem:[#allocation9 + $0x9c] sm:$0xff]
    %v207 = vld [vmem:[#allocation9 + $0xa4] sm:$0xf]
    %v208 = vld [vmem:[#allocation9 + $0xa8] sm:$0xff]
    %v209 = vld [vmem:[#allocation9 + $0xb0] sm:$0xf]
    %v210 = vld [vmem:[#allocation9 + $0xb4] sm:$0xff]
    %v211 = vld [vmem:[#allocation9 + $0xbc] sm:$0xf]
    %v212 = vpack.c.bf16 %v179, %v179
    %v213 = vld [vmem:[%s4] sm:$0x7]
    %v215 = vlaneseq
    %v216 = vshrl.u32 %v215, 7
    %v217 = vsub.s32 0, %v216
    %v218 = vrot.slane %v213, %v217
    %v219 = vlaneseq
    %v220 = vshrl.u32 %v219, 7
    %v221 = vsub.s32 1, %v220
    %v222 = vrot.slane %v213, %v221
    %v223 = vlaneseq
    %v224 = vshrl.u32 %v223, 7
    %v225 = vsub.s32 2, %v224
    %v226 = vrot.slane %v213, %v225
    %v262 = vunpack.c.l.b16 %v180
    %v263 = vunpack.c.h.b16 %v180
    %v264 = vunpack.c.l.b16 %v181
    %v265 = vunpack.c.l.b16 %v182
    %v266 = vunpack.c.h.b16 %v182
    %v267 = vunpack.c.l.b16 %v183
    %v268 = vunpack.c.l.b16 %v184
    %v269 = vunpack.c.h.b16 %v184
    %v270 = vunpack.c.l.b16 %v185
    %v271 = vunpack.c.l.b16 %v186
    %v272 = vunpack.c.h.b16 %v186
    %v273 = vunpack.c.l.b16 %v187
    %v274 = vunpack.c.l.b16 %v188
    %v275 = vunpack.c.h.b16 %v188
    %v276 = vunpack.c.l.b16 %v189
    %v277 = vunpack.c.l.b16 %v190
    %v278 = vunpack.c.h.b16 %v190
    %v279 = vunpack.c.l.b16 %v191
    %v280 = vunpack.c.l.b16 %v192
    %v281 = vunpack.c.h.b16 %v192
    %v282 = vunpack.c.l.b16 %v193
    %v283 = vunpack.c.l.b16 %v194
    %v284 = vunpack.c.h.b16 %v194
    %v285 = vunpack.c.l.b16 %v195
    %v286 = vunpack.c.l.b16 %v196
    %v287 = vunpack.c.h.b16 %v196
    %v288 = vunpack.c.l.b16 %v197
    %v289 = vunpack.c.l.b16 %v198
    %v290 = vunpack.c.h.b16 %v198
    %v291 = vunpack.c.l.b16 %v199
    %v292 = vunpack.c.l.b16 %v200
    %v293 = vunpack.c.h.b16 %v200
    %v294 = vunpack.c.l.b16 %v201
    %v295 = vunpack.c.l.b16 %v202
    %v296 = vunpack.c.h.b16 %v202
    %v297 = vunpack.c.l.b16 %v203
    %v298 = vunpack.c.l.b16 %v204
    %v299 = vunpack.c.h.b16 %v204
    %v300 = vunpack.c.l.b16 %v205
    %v301 = vunpack.c.l.b16 %v206
    %v302 = vunpack.c.h.b16 %v206
    %v303 = vunpack.c.l.b16 %v207
    %v304 = vunpack.c.l.b16 %v208
    %v305 = vunpack.c.h.b16 %v208
    %v306 = vunpack.c.l.b16 %v209
    %v307 = vunpack.c.l.b16 %v210
    %v308 = vunpack.c.h.b16 %v210
    %v309 = vunpack.c.l.b16 %v211
    %v310 = vpack.c.b16 %v265, %v262
    %v311 = vpack.c.b16 %v266, %v263
    %v312 = vpack.c.b16 %v267, %v264
    %v313 = vpack.c.b16 %v271, %v268
    %v314 = vpack.c.b16 %v272, %v269
    %v315 = vpack.c.b16 %v273, %v270
    %v316 = vpack.c.b16 %v277, %v274
    %v317 = vpack.c.b16 %v278, %v275
    %v318 = vpack.c.b16 %v279, %v276
    %v319 = vpack.c.b16 %v283, %v280
    %v320 = vpack.c.b16 %v284, %v281
    %v321 = vpack.c.b16 %v285, %v282
    %v322 = vpack.c.b16 %v289, %v286
    %v323 = vpack.c.b16 %v290, %v287
    %v324 = vpack.c.b16 %v291, %v288
    %v325 = vpack.c.b16 %v295, %v292
    %v326 = vpack.c.b16 %v296, %v293
    %v327 = vpack.c.b16 %v297, %v294
    %v328 = vpack.c.b16 %v301, %v298
    %v329 = vpack.c.b16 %v302, %v299
    %v330 = vpack.c.b16 %v303, %v300
    %v331 = vpack.c.b16 %v307, %v304
    %v332 = vpack.c.b16 %v308, %v305
    %v333 = vpack.c.b16 %v309, %v306
    %358 = vmatprep.subr.bf16.mxu0 %v311
    %359 = vmatpush1.bf16.msra.mxu0 %v310
    %360 = vmatprep.subr.bf16.mxu0 %v314
    %361 = vmatpush1.bf16.msra.mxu0 %v313
    %362 = vmatprep.subr.bf16.mxu0 %v317
    %363 = vmatpush1.bf16.msra.mxu0 %v316
    %364 = vmatprep.subr.bf16.mxu0 %v320
    %365 = vmatpush1.bf16.msra.mxu0 %v319
    %366 = vmatprep.subr.bf16.mxu0 %v323
    %367 = vmatpush1.bf16.msra.mxu0 %v322
    %368 = vmatprep.subr.bf16.mxu0 %v326
    %369 = vmatpush1.bf16.msra.mxu0 %v325
    %370 = vmatprep.subr.bf16.mxu0 %v329
    %371 = vmatpush1.bf16.msra.mxu0 %v328
    %372 = vmatprep.subr.bf16.mxu0 %v332
    %373 = vmatpush1.bf16.msra.mxu0 %v331
    %374 = vmatprep.subr.bf16.mxu0 0
    %375 = vmatpush1.bf16.msra.mxu0 0
    %376 = vmatprep.subr.bf16.mxu0 0
    %377 = vmatpush1.bf16.msra.mxu0 0
    %378 = vmatprep.subr.bf16.mxu0 0
    %379 = vmatpush1.bf16.msra.mxu0 0
    %380 = vmatprep.subr.bf16.mxu0 0
    %381 = vmatpush1.bf16.msra.mxu0 0
    %382 = vmatprep.subr.bf16.mxu0 0
    %383 = vmatpush1.bf16.msra.mxu0 0
    %384 = vmatprep.subr.bf16.mxu0 0
    %385 = vmatpush1.bf16.msra.mxu0 0
    %386 = vmatprep.subr.bf16.mxu0 0
    %387 = vmatpush1.bf16.msra.mxu0 0
    %388 = vmatprep.subr.bf16.mxu0 0
    %389 = vmatpush1.bf16.msra.mxu0 0
    %390 = vmatprep.mubr.bf16.mxu0 0
    %391 = vmatmul.mubr.bf16.gmra.mrb[0].mxu0 %v212
    %v392 = vpop.f32.mrb[0].mxu0
    %v393 = vadd.f32 %v218, %v392
    %v394 = vpop.f32.mrb[0].mxu0
    %v395 = vadd.f32 %v222, %v394
    %v396 = vpop.f32.mrb[0].mxu0
    %v397 = vpop.f32.mrb[0].mxu0
    %398 = vdwg.mxu0
    %399 = vmatprep.subr.bf16.mxu0 0
    %400 = vmatpush1.bf16.msra.mxu0 %v312
    %401 = vmatprep.subr.bf16.mxu0 0
    %402 = vmatpush1.bf16.msra.mxu0 %v315
    %403 = vmatprep.subr.bf16.mxu0 0
    %404 = vmatpush1.bf16.msra.mxu0 %v318
    %405 = vmatprep.subr.bf16.mxu0 0
    %406 = vmatpush1.bf16.msra.mxu0 %v321
    %407 = vmatprep.subr.bf16.mxu0 0
    %408 = vmatpush1.bf16.msra.mxu0 %v324
    %409 = vmatprep.subr.bf16.mxu0 0
    %410 = vmatpush1.bf16.msra.mxu0 %v327
    %411 = vmatprep.subr.bf16.mxu0 0
    %412 = vmatpush1.bf16.msra.mxu0 %v330
    %413 = vmatprep.subr.bf16.mxu0 0
    %414 = vmatpush1.bf16.msra.mxu0 %v333
    %415 = vmatprep.subr.bf16.mxu0 0
    %416 = vmatpush1.bf16.msra.mxu0 0
    %417 = vmatprep.subr.bf16.mxu0 0
    %418 = vmatpush1.bf16.msra.mxu0 0
    %419 = vmatprep.subr.bf16.mxu0 0
    %420 = vmatpush1.bf16.msra.mxu0 0
    %421 = vmatprep.subr.bf16.mxu0 0
    %422 = vmatpush1.bf16.msra.mxu0 0
    %423 = vmatprep.subr.bf16.mxu0 0
    %424 = vmatpush1.bf16.msra.mxu0 0
    %425 = vmatprep.subr.bf16.mxu0 0
    %426 = vmatpush1.bf16.msra.mxu0 0
    %427 = vmatprep.subr.bf16.mxu0 0
    %428 = vmatpush1.bf16.msra.mxu0 0
    %429 = vmatprep.subr.bf16.mxu0 0
    %430 = vmatpush1.bf16.msra.mxu0 0
    %431 = vmatprep.mubr.bf16.mxu0 0
    %432 = vmatmul.mubr.bf16.gmra.mrb[0].mxu0 %v212
    %v433 = vpop.f32.mrb[0].mxu0
    %v434 = vadd.f32 %v226, %v433
    %v435 = vpop.f32.mrb[0].mxu0
    %v436 = vpop.f32.mrb[0].mxu0
    %v437 = vpop.f32.mrb[0].mxu0
    %438 = vdwg.mxu0
    %v439 = vmul.f32 %v393, 0.17677669
    %vm440 = vcmask 261120
    %v442 = vsel %vm440, %v439, 0
    %v445 = vsel %vm440, %v395, 0
    %447 = vmatprep.subr.mxu0 0.0
    %448 = vmatpush1.xpose.msra.mxu0 %v445
    %449 = vmatprep.subr.mxu0 0.0
    %450 = vmatpush1.xpose.msra.mxu0 0.0
    %451 = vmatprep.subr.mxu0 0.0
    %452 = vmatpush1.xpose.msra.mxu0 0.0
    %453 = vmatprep.subr.mxu0 0.0
    %454 = vmatpush1.xpose.msra.mxu0 0.0
    %455 = vmatprep.subr.mxu0 0.0
    %456 = vmatpush1.xpose.msra.mxu0 0.0
    %457 = vmatprep.subr.mxu0 0.0
    %458 = vmatpush1.xpose.msra.mxu0 0.0
    %459 = vmatprep.subr.mxu0 0.0
    %460 = vmatpush1.xpose.msra.mxu0 0.0
    %461 = vmatprep.subr.mxu0 0.0
    %462 = vmatpush1.xpose.msra.mxu0 0.0
    %463 = vmatprep.subr.mxu0 0.0
    %464 = vmatpush1.xpose.msra.mxu0 0.0
    %465 = vmatprep.subr.mxu0 0.0
    %466 = vmatpush1.xpose.msra.mxu0 0.0
    %467 = vmatprep.subr.mxu0 0.0
    %468 = vmatpush1.xpose.msra.mxu0 0.0
    %469 = vmatprep.subr.mxu0 0.0
    %470 = vmatpush1.xpose.msra.mxu0 0.0
    %471 = vmatprep.subr.mxu0 0.0
    %472 = vmatpush1.xpose.msra.mxu0 0.0
    %473 = vmatprep.subr.mxu0 0.0
    %474 = vmatpush1.xpose.msra.mxu0 0.0
    %475 = vmatprep.subr.mxu0 0.0
    %476 = vmatpush1.xpose.msra.mxu0 0.0
    %477 = vmatprep.subr.mxu0 0.0
    %478 = vmatpush1.xpose.msra.mxu0 0.0
    %479 = vmatprep.subr.mxu0 0.0
    %480 = vmatpush1.xpose.msra.mxu0 0.0
    %481 = vmatprep.subr.mxu0 0.0
    %482 = vmatpush1.xpose.msra.mxu0 0.0
    %483 = vmatprep.subr.mxu0 0.0
    %484 = vmatpush1.xpose.msra.mxu0 0.0
    %485 = vmatprep.subr.mxu0 0.0
    %486 = vmatpush1.xpose.msra.mxu0 0.0
    %487 = vmatprep.subr.mxu0 0.0
    %488 = vmatpush1.xpose.msra.mxu0 0.0
    %489 = vmatprep.subr.mxu0 0.0
    %490 = vmatpush1.xpose.msra.mxu0 0.0
    %491 = vmatprep.subr.mxu0 0.0
    %492 = vmatpush1.xpose.msra.mxu0 0.0
    %493 = vmatprep.subr.mxu0 0.0
    %494 = vmatpush1.xpose.msra.mxu0 0.0
    %495 = vmatprep.subr.mxu0 0.0
    %496 = vmatpush1.xpose.msra.mxu0 0.0
    %497 = vmatprep.subr.mxu0 0.0
    %498 = vmatpush1.xpose.msra.mxu0 0.0
    %499 = vmatprep.subr.mxu0 0.0
    %500 = vmatpush1.xpose.msra.mxu0 0.0
    %501 = vmatprep.subr.mxu0 0.0
    %502 = vmatpush1.xpose.msra.mxu0 0.0
    %503 = vmatprep.subr.mxu0 0.0
    %504 = vmatpush1.xpose.msra.mxu0 0.0
    %505 = vmatprep.subr.mxu0 0.0
    %506 = vmatpush1.xpose.msra.mxu0 0.0
    %507 = vmatprep.subr.mxu0 0.0
    %508 = vmatpush1.xpose.msra.mxu0 0.0
    %509 = vmatprep.subr.mxu0 0.0
    %510 = vmatpush1.xpose.msra.mxu0 0.0
    %511 = vmatprep.mubr.f32.mxu0 0.0
    %512 = vmatmul.mubr.f32.gmra.mrb[0].mxu0 %v442
    %v513 = vpop.f32.mrb[0].mxu0
    %v514 = vadd.f32 %v151, %v513
    %v515 = vpop.f32.mrb[0].mxu0
    %516 = vdwg.mxu0
    %vm517 = vcmask 64512
    %v518 = vsel %vm517, %v514, -inf
    %519 = vmax.xlane.f32.xlu0 %v518
    %v520 = vpop.xlane.xlu0 %519
    %v521 = vsub.f32 %v514, %v520
    %v522 = vmul.f32 %v521, 1.442695
    %v523 = vpow.pop %v522
    %v524 = vsel %vm517, %v523, 0.0
    %525 = vadd.xlane.f32.xlu0 %v524
    %v526 = vpop.xlane.xlu0 %525
    %v527 = vrcp.pop %v526
    %v528 = vmul.f32 %v523, %v527
    %v530 = vsel %vm517, %v528, 0
    %532 = vmatprep.subr.mxu0 0.0
    %533 = vmatpush1.msra.mxu0 %v434
    %534 = vmatprep.subr.mxu0 0.0
    %535 = vmatpush1.msra.mxu0 0.0
    %536 = vmatprep.subr.mxu0 0.0
    %537 = vmatpush1.msra.mxu0 0.0
    %538 = vmatprep.subr.mxu0 0.0
    %539 = vmatpush1.msra.mxu0 0.0
    %540 = vmatprep.subr.mxu0 0.0
    %541 = vmatpush1.msra.mxu0 0.0
    %542 = vmatprep.subr.mxu0 0.0
    %543 = vmatpush1.msra.mxu0 0.0
    %544 = vmatprep.subr.mxu0 0.0
    %545 = vmatpush1.msra.mxu0 0.0
    %546 = vmatprep.subr.mxu0 0.0
    %547 = vmatpush1.msra.mxu0 0.0
    %548 = vmatprep.subr.mxu0 0.0
    %549 = vmatpush1.msra.mxu0 0.0
    %550 = vmatprep.subr.mxu0 0.0
    %551 = vmatpush1.msra.mxu0 0.0
    %552 = vmatprep.subr.mxu0 0.0
    %553 = vmatpush1.msra.mxu0 0.0
    %554 = vmatprep.subr.mxu0 0.0
    %555 = vmatpush1.msra.mxu0 0.0
    %556 = vmatprep.subr.mxu0 0.0
    %557 = vmatpush1.msra.mxu0 0.0
    %558 = vmatprep.subr.mxu0 0.0
    %559 = vmatpush1.msra.mxu0 0.0
    %560 = vmatprep.subr.mxu0 0.0
    %561 = vmatpush1.msra.mxu0 0.0
    %562 = vmatprep.subr.mxu0 0.0
    %563 = vmatpush1.msra.mxu0 0.0
    %564 = vmatprep.subr.mxu0 0.0
    %565 = vmatpush1.msra.mxu0 0.0
    %566 = vmatprep.subr.mxu0 0.0
    %567 = vmatpush1.msra.mxu0 0.0
    %568 = vmatprep.subr.mxu0 0.0
    %569 = vmatpush1.msra.mxu0 0.0
    %570 = vmatprep.subr.mxu0 0.0
    %571 = vmatpush1.msra.mxu0 0.0
    %572 = vmatprep.subr.mxu0 0.0
    %573 = vmatpush1.msra.mxu0 0.0
    %574 = vmatprep.subr.mxu0 0.0
    %575 = vmatpush1.msra.mxu0 0.0
    %576 = vmatprep.subr.mxu0 0.0
    %577 = vmatpush1.msra.mxu0 0.0
    %578 = vmatprep.subr.mxu0 0.0
    %579 = vmatpush1.msra.mxu0 0.0
    %580 = vmatprep.subr.mxu0 0.0
    %581 = vmatpush1.msra.mxu0 0.0
    %582 = vmatprep.subr.mxu0 0.0
    %583 = vmatpush1.msra.mxu0 0.0
    %584 = vmatprep.subr.mxu0 0.0
    %585 = vmatpush1.msra.mxu0 0.0
    %586 = vmatprep.subr.mxu0 0.0
    %587 = vmatpush1.msra.mxu0 0.0
    %588 = vmatprep.subr.mxu0 0.0
    %589 = vmatpush1.msra.mxu0 0.0
    %590 = vmatprep.subr.mxu0 0.0
    %591 = vmatpush1.msra.mxu0 0.0
    %592 = vmatprep.subr.mxu0 0.0
    %593 = vmatpush1.msra.mxu0 0.0
    %594 = vmatprep.subr.mxu0 0.0
    %595 = vmatpush1.msra.mxu0 0.0
    %596 = vmatprep.mubr.f32.mxu0 0.0
    %597 = vmatmul.mubr.f32.gmra.mrb[0].mxu0 %v530
    %v598 = vpop.f32.mrb[0].mxu0
    %v599 = vadd.f32 0.0, %v598
    %v600 = vpop.f32.mrb[0].mxu0
    %601 = vdwg.mxu0
    %602 = vst.msk [vmem:[#allocation2] sm:$0xff] %vm440, %v599
    %603 = vrot.lane.b32.xlu0 %v439, 96
    %v604 = vpop.permute.xlu0 %603
    %605 = vrot.lane.b32.xlu0 %v395, 96
    %v606 = vpop.permute.xlu0 %605
    %v607 = vsel %vm440, %v604, 0
    %v609 = vsel %vm440, %v606, 0
    %611 = vmatprep.subr.mxu0 0.0
    %612 = vmatpush1.xpose.msra.mxu0 %v609
    %613 = vmatprep.subr.mxu0 0.0
    %614 = vmatpush1.xpose.msra.mxu0 0.0
    %615 = vmatprep.subr.mxu0 0.0
    %616 = vmatpush1.xpose.msra.mxu0 0.0
    %617 = vmatprep.subr.mxu0 0.0
    %618 = vmatpush1.xpose.msra.mxu0 0.0
    %619 = vmatprep.subr.mxu0 0.0
    %620 = vmatpush1.xpose.msra.mxu0 0.0
    %621 = vmatprep.subr.mxu0 0.0
    %622 = vmatpush1.xpose.msra.mxu0 0.0
    %623 = vmatprep.subr.mxu0 0.0
    %624 = vmatpush1.xpose.msra.mxu0 0.0
    %625 = vmatprep.subr.mxu0 0.0
    %626 = vmatpush1.xpose.msra.mxu0 0.0
    %627 = vmatprep.subr.mxu0 0.0
    %628 = vmatpush1.xpose.msra.mxu0 0.0
    %629 = vmatprep.subr.mxu0 0.0
    %630 = vmatpush1.xpose.msra.mxu0 0.0
    %631 = vmatprep.subr.mxu0 0.0
    %632 = vmatpush1.xpose.msra.mxu0 0.0
    %633 = vmatprep.subr.mxu0 0.0
    %634 = vmatpush1.xpose.msra.mxu0 0.0
    %635 = vmatprep.subr.mxu0 0.0
    %636 = vmatpush1.xpose.msra.mxu0 0.0
    %637 = vmatprep.subr.mxu0 0.0
    %638 = vmatpush1.xpose.msra.mxu0 0.0
    %639 = vmatprep.subr.mxu0 0.0
    %640 = vmatpush1.xpose.msra.mxu0 0.0
    %641 = vmatprep.subr.mxu0 0.0
    %642 = vmatpush1.xpose.msra.mxu0 0.0
    %643 = vmatprep.subr.mxu0 0.0
    %644 = vmatpush1.xpose.msra.mxu0 0.0
    %645 = vmatprep.subr.mxu0 0.0
    %646 = vmatpush1.xpose.msra.mxu0 0.0
    %647 = vmatprep.subr.mxu0 0.0
    %648 = vmatpush1.xpose.msra.mxu0 0.0
    %649 = vmatprep.subr.mxu0 0.0
    %650 = vmatpush1.xpose.msra.mxu0 0.0
    %651 = vmatprep.subr.mxu0 0.0
    %652 = vmatpush1.xpose.msra.mxu0 0.0
    %653 = vmatprep.subr.mxu0 0.0
    %654 = vmatpush1.xpose.msra.mxu0 0.0
    %655 = vmatprep.subr.mxu0 0.0
    %656 = vmatpush1.xpose.msra.mxu0 0.0
    %657 = vmatprep.subr.mxu0 0.0
    %658 = vmatpush1.xpose.msra.mxu0 0.0
    %659 = vmatprep.subr.mxu0 0.0
    %660 = vmatpush1.xpose.msra.mxu0 0.0
    %661 = vmatprep.subr.mxu0 0.0
    %662 = vmatpush1.xpose.msra.mxu0 0.0
    %663 = vmatprep.subr.mxu0 0.0
    %664 = vmatpush1.xpose.msra.mxu0 0.0
    %665 = vmatprep.subr.mxu0 0.0
    %666 = vmatpush1.xpose.msra.mxu0 0.0
    %667 = vmatprep.subr.mxu0 0.0
    %668 = vmatpush1.xpose.msra.mxu0 0.0
    %669 = vmatprep.subr.mxu0 0.0
    %670 = vmatpush1.xpose.msra.mxu0 0.0
    %671 = vmatprep.subr.mxu0 0.0
    %672 = vmatpush1.xpose.msra.mxu0 0.0
    %673 = vmatprep.subr.mxu0 0.0
    %674 = vmatpush1.xpose.msra.mxu0 0.0
    %675 = vmatprep.mubr.f32.mxu0 0.0
    %676 = vmatmul.mubr.f32.gmra.mrb[0].mxu0 %v607
    %v677 = vpop.f32.mrb[0].mxu0
    %v678 = vadd.f32 %v151, %v677
    %v679 = vpop.f32.mrb[0].mxu0
    %680 = vdwg.mxu0
    %v681 = vsel %vm517, %v678, -inf
    %682 = vmax.xlane.f32.xlu0 %v681
    %v683 = vpop.xlane.xlu0 %682
    %v684 = vsub.f32 %v678, %v683
    %v685 = vmul.f32 %v684, 1.442695
    %v686 = vpow.pop %v685
    %v687 = vsel %vm517, %v686, 0.0
    %688 = vadd.xlane.f32.xlu0 %v687
    %v689 = vpop.xlane.xlu0 %688
    %v690 = vrcp.pop %v689
    %v691 = vmul.f32 %v686, %v690
    %693 = vrot.lane.b32.xlu0 %v434, 96
    %v694 = vpop.permute.xlu0 %693
    %v697 = vsel %vm517, %v691, 0
    %699 = vmatprep.subr.mxu0 0.0
    %700 = vmatpush1.msra.mxu0 %v694
    %701 = vmatprep.subr.mxu0 0.0
    %702 = vmatpush1.msra.mxu0 0.0
    %703 = vmatprep.subr.mxu0 0.0
    %704 = vmatpush1.msra.mxu0 0.0
    %705 = vmatprep.subr.mxu0 0.0
    %706 = vmatpush1.msra.mxu0 0.0
    %707 = vmatprep.subr.mxu0 0.0
    %708 = vmatpush1.msra.mxu0 0.0
    %709 = vmatprep.subr.mxu0 0.0
    %710 = vmatpush1.msra.mxu0 0.0
    %711 = vmatprep.subr.mxu0 0.0
    %712 = vmatpush1.msra.mxu0 0.0
    %713 = vmatprep.subr.mxu0 0.0
    %714 = vmatpush1.msra.mxu0 0.0
    %715 = vmatprep.subr.mxu0 0.0
    %716 = vmatpush1.msra.mxu0 0.0
    %717 = vmatprep.subr.mxu0 0.0
    %718 = vmatpush1.msra.mxu0 0.0
    %719 = vmatprep.subr.mxu0 0.0
    %720 = vmatpush1.msra.mxu0 0.0
    %721 = vmatprep.subr.mxu0 0.0
    %722 = vmatpush1.msra.mxu0 0.0
    %723 = vmatprep.subr.mxu0 0.0
    %724 = vmatpush1.msra.mxu0 0.0
    %725 = vmatprep.subr.mxu0 0.0
    %726 = vmatpush1.msra.mxu0 0.0
    %727 = vmatprep.subr.mxu0 0.0
    %728 = vmatpush1.msra.mxu0 0.0
    %729 = vmatprep.subr.mxu0 0.0
    %730 = vmatpush1.msra.mxu0 0.0
    %731 = vmatprep.subr.mxu0 0.0
    %732 = vmatpush1.msra.mxu0 0.0
    %733 = vmatprep.subr.mxu0 0.0
    %734 = vmatpush1.msra.mxu0 0.0
    %735 = vmatprep.subr.mxu0 0.0
    %736 = vmatpush1.msra.mxu0 0.0
    %737 = vmatprep.subr.mxu0 0.0
    %738 = vmatpush1.msra.mxu0 0.0
    %739 = vmatprep.subr.mxu0 0.0
    %740 = vmatpush1.msra.mxu0 0.0
    %741 = vmatprep.subr.mxu0 0.0
    %742 = vmatpush1.msra.mxu0 0.0
    %743 = vmatprep.subr.mxu0 0.0
    %744 = vmatpush1.msra.mxu0 0.0
    %745 = vmatprep.subr.mxu0 0.0
    %746 = vmatpush1.msra.mxu0 0.0
    %747 = vmatprep.subr.mxu0 0.0
    %748 = vmatpush1.msra.mxu0 0.0
    %749 = vmatprep.subr.mxu0 0.0
    %750 = vmatpush1.msra.mxu0 0.0
    %751 = vmatprep.subr.mxu0 0.0
    %752 = vmatpush1.msra.mxu0 0.0
    %753 = vmatprep.subr.mxu0 0.0
    %754 = vmatpush1.msra.mxu0 0.0
    %755 = vmatprep.subr.mxu0 0.0
    %756 = vmatpush1.msra.mxu0 0.0
    %757 = vmatprep.subr.mxu0 0.0
    %758 = vmatpush1.msra.mxu0 0.0
    %759 = vmatprep.subr.mxu0 0.0
    %760 = vmatpush1.msra.mxu0 0.0
    %761 = vmatprep.subr.mxu0 0.0
    %762 = vmatpush1.msra.mxu0 0.0
    %763 = vmatprep.mubr.f32.mxu0 0.0
    %764 = vmatmul.mubr.f32.gmra.mrb[0].mxu0 %v697
    %v765 = vpop.f32.mrb[0].mxu0
    %v766 = vadd.f32 0.0, %v765
    %v767 = vpop.f32.mrb[0].mxu0
    %768 = vdwg.mxu0
    %770 = vrot.lane.b32.xlu0 %v766, 32
    %v771 = vpop.permute.xlu0 %770
    %vm773 = vcmask 523520
    %774 = vst.msk [vmem:[#allocation2] sm:$0xff] %vm773, %v771
    %775 = vrot.lane.b32.xlu0 %v439, 64
    %v776 = vpop.permute.xlu0 %775
    %777 = vrot.lane.b32.xlu0 %v395, 64
    %v778 = vpop.permute.xlu0 %777
    %v779 = vsel %vm440, %v776, 0
    %v781 = vsel %vm440, %v778, 0
    %783 = vmatprep.subr.mxu0 0.0
    %784 = vmatpush1.xpose.msra.mxu0 %v781
    %785 = vmatprep.subr.mxu0 0.0
    %786 = vmatpush1.xpose.msra.mxu0 0.0
    %787 = vmatprep.subr.mxu0 0.0
    %788 = vmatpush1.xpose.msra.mxu0 0.0
    %789 = vmatprep.subr.mxu0 0.0
    %790 = vmatpush1.xpose.msra.mxu0 0.0
    %791 = vmatprep.subr.mxu0 0.0
    %792 = vmatpush1.xpose.msra.mxu0 0.0
    %793 = vmatprep.subr.mxu0 0.0
    %794 = vmatpush1.xpose.msra.mxu0 0.0
    %795 = vmatprep.subr.mxu0 0.0
    %796 = vmatpush1.xpose.msra.mxu0 0.0
    %797 = vmatprep.subr.mxu0 0.0
    %798 = vmatpush1.xpose.msra.mxu0 0.0
    %799 = vmatprep.subr.mxu0 0.0
    %800 = vmatpush1.xpose.msra.mxu0 0.0
    %801 = vmatprep.subr.mxu0 0.0
    %802 = vmatpush1.xpose.msra.mxu0 0.0
    %803 = vmatprep.subr.mxu0 0.0
    %804 = vmatpush1.xpose.msra.mxu0 0.0
    %805 = vmatprep.subr.mxu0 0.0
    %806 = vmatpush1.xpose.msra.mxu0 0.0
    %807 = vmatprep.subr.mxu0 0.0
    %808 = vmatpush1.xpose.msra.mxu0 0.0
    %809 = vmatprep.subr.mxu0 0.0
    %810 = vmatpush1.xpose.msra.mxu0 0.0
    %811 = vmatprep.subr.mxu0 0.0
    %812 = vmatpush1.xpose.msra.mxu0 0.0
    %813 = vmatprep.subr.mxu0 0.0
    %814 = vmatpush1.xpose.msra.mxu0 0.0
    %815 = vmatprep.subr.mxu0 0.0
    %816 = vmatpush1.xpose.msra.mxu0 0.0
    %817 = vmatprep.subr.mxu0 0.0
    %818 = vmatpush1.xpose.msra.mxu0 0.0
    %819 = vmatprep.subr.mxu0 0.0
    %820 = vmatpush1.xpose.msra.mxu0 0.0
    %821 = vmatprep.subr.mxu0 0.0
    %822 = vmatpush1.xpose.msra.mxu0 0.0
    %823 = vmatprep.subr.mxu0 0.0
    %824 = vmatpush1.xpose.msra.mxu0 0.0
    %825 = vmatprep.subr.mxu0 0.0
    %826 = vmatpush1.xpose.msra.mxu0 0.0
    %827 = vmatprep.subr.mxu0 0.0
    %828 = vmatpush1.xpose.msra.mxu0 0.0
    %829 = vmatprep.subr.mxu0 0.0
    %830 = vmatpush1.xpose.msra.mxu0 0.0
    %831 = vmatprep.subr.mxu0 0.0
    %832 = vmatpush1.xpose.msra.mxu0 0.0
    %833 = vmatprep.subr.mxu0 0.0
    %834 = vmatpush1.xpose.msra.mxu0 0.0
    %835 = vmatprep.subr.mxu0 0.0
    %836 = vmatpush1.xpose.msra.mxu0 0.0
    %837 = vmatprep.subr.mxu0 0.0
    %838 = vmatpush1.xpose.msra.mxu0 0.0
    %839 = vmatprep.subr.mxu0 0.0
    %840 = vmatpush1.xpose.msra.mxu0 0.0
    %841 = vmatprep.subr.mxu0 0.0
    %842 = vmatpush1.xpose.msra.mxu0 0.0
    %843 = vmatprep.subr.mxu0 0.0
    %844 = vmatpush1.xpose.msra.mxu0 0.0
    %845 = vmatprep.subr.mxu0 0.0
    %846 = vmatpush1.xpose.msra.mxu0 0.0
    %847 = vmatprep.mubr.f32.mxu0 0.0
    %848 = vmatmul.mubr.f32.gmra.mrb[0].mxu0 %v779
    %v849 = vpop.f32.mrb[0].mxu0
    %v850 = vadd.f32 %v151, %v849
    %v851 = vpop.f32.mrb[0].mxu0
    %852 = vdwg.mxu0
    %v853 = vsel %vm517, %v850, -inf
    %854 = vmax.xlane.f32.xlu0 %v853
    %v855 = vpop.xlane.xlu0 %854
    %v856 = vsub.f32 %v850, %v855
    %v857 = vmul.f32 %v856, 1.442695
    %v858 = vpow.pop %v857
    %v859 = vsel %vm517, %v858, 0.0
    %860 = vadd.xlane.f32.xlu0 %v859
    %v861 = vpop.xlane.xlu0 %860
    %v862 = vrcp.pop %v861
    %v863 = vmul.f32 %v858, %v862
    %864 = vrot.lane.b32.xlu0 %v434, 64
    %v865 = vpop.permute.xlu0 %864
    %v868 = vsel %vm517, %v863, 0
    %870 = vmatprep.subr.mxu0 0.0
    %871 = vmatpush1.msra.mxu0 %v865
    %872 = vmatprep.subr.mxu0 0.0
    %873 = vmatpush1.msra.mxu0 0.0
    %874 = vmatprep.subr.mxu0 0.0
    %875 = vmatpush1.msra.mxu0 0.0
    %876 = vmatprep.subr.mxu0 0.0
    %877 = vmatpush1.msra.mxu0 0.0
    %878 = vmatprep.subr.mxu0 0.0
    %879 = vmatpush1.msra.mxu0 0.0
    %880 = vmatprep.subr.mxu0 0.0
    %881 = vmatpush1.msra.mxu0 0.0
    %882 = vmatprep.subr.mxu0 0.0
    %883 = vmatpush1.msra.mxu0 0.0
    %884 = vmatprep.subr.mxu0 0.0
    %885 = vmatpush1.msra.mxu0 0.0
    %886 = vmatprep.subr.mxu0 0.0
    %887 = vmatpush1.msra.mxu0 0.0
    %888 = vmatprep.subr.mxu0 0.0
    %889 = vmatpush1.msra.mxu0 0.0
    %890 = vmatprep.subr.mxu0 0.0
    %891 = vmatpush1.msra.mxu0 0.0
    %892 = vmatprep.subr.mxu0 0.0
    %893 = vmatpush1.msra.mxu0 0.0
    %894 = vmatprep.subr.mxu0 0.0
    %895 = vmatpush1.msra.mxu0 0.0
    %896 = vmatprep.subr.mxu0 0.0
    %897 = vmatpush1.msra.mxu0 0.0
    %898 = vmatprep.subr.mxu0 0.0
    %899 = vmatpush1.msra.mxu0 0.0
    %900 = vmatprep.subr.mxu0 0.0
    %901 = vmatpush1.msra.mxu0 0.0
    %902 = vmatprep.subr.mxu0 0.0
    %903 = vmatpush1.msra.mxu0 0.0
    %904 = vmatprep.subr.mxu0 0.0
    %905 = vmatpush1.msra.mxu0 0.0
    %906 = vmatprep.subr.mxu0 0.0
    %907 = vmatpush1.msra.mxu0 0.0
    %908 = vmatprep.subr.mxu0 0.0
    %909 = vmatpush1.msra.mxu0 0.0
    %910 = vmatprep.subr.mxu0 0.0
    %911 = vmatpush1.msra.mxu0 0.0
    %912 = vmatprep.subr.mxu0 0.0
    %913 = vmatpush1.msra.mxu0 0.0
    %914 = vmatprep.subr.mxu0 0.0
    %915 = vmatpush1.msra.mxu0 0.0
    %916 = vmatprep.subr.mxu0 0.0
    %917 = vmatpush1.msra.mxu0 0.0
    %918 = vmatprep.subr.mxu0 0.0
    %919 = vmatpush1.msra.mxu0 0.0
    %920 = vmatprep.subr.mxu0 0.0
    %921 = vmatpush1.msra.mxu0 0.0
    %922 = vmatprep.subr.mxu0 0.0
    %923 = vmatpush1.msra.mxu0 0.0
    %924 = vmatprep.subr.mxu0 0.0
    %925 = vmatpush1.msra.mxu0 0.0
    %926 = vmatprep.subr.mxu0 0.0
    %927 = vmatpush1.msra.mxu0 0.0
    %928 = vmatprep.subr.mxu0 0.0
    %929 = vmatpush1.msra.mxu0 0.0
    %930 = vmatprep.subr.mxu0 0.0
    %931 = vmatpush1.msra.mxu0 0.0
    %932 = vmatprep.subr.mxu0 0.0
    %933 = vmatpush1.msra.mxu0 0.0
    %934 = vmatprep.mubr.f32.mxu0 0.0
    %935 = vmatmul.mubr.f32.gmra.mrb[0].mxu0 %v868
    %v936 = vpop.f32.mrb[0].mxu0
    %v937 = vadd.f32 0.0, %v936
    %v938 = vpop.f32.mrb[0].mxu0
    %939 = vdwg.mxu0
    %941 = vrot.lane.b32.xlu0 %v937, 64
    %v942 = vpop.permute.xlu0 %941
    %vm944 = vcmask 785920
    %945 = vst.msk [vmem:[#allocation2] sm:$0xff] %vm944, %v942
    %946 = vrot.lane.b32.xlu0 %v439, 32
    %v947 = vpop.permute.xlu0 %946
    %948 = vrot.lane.b32.xlu0 %v395, 32
    %v949 = vpop.permute.xlu0 %948
    %v950 = vsel %vm440, %v947, 0
    %v952 = vsel %vm440, %v949, 0
    %954 = vmatprep.subr.mxu0 0.0
    %955 = vmatpush1.xpose.msra.mxu0 %v952
    %956 = vmatprep.subr.mxu0 0.0
    %957 = vmatpush1.xpose.msra.mxu0 0.0
    %958 = vmatprep.subr.mxu0 0.0
    %959 = vmatpush1.xpose.msra.mxu0 0.0
    %960 = vmatprep.subr.mxu0 0.0
    %961 = vmatpush1.xpose.msra.mxu0 0.0
    %962 = vmatprep.subr.mxu0 0.0
    %963 = vmatpush1.xpose.msra.mxu0 0.0
    %964 = vmatprep.subr.mxu0 0.0
    %965 = vmatpush1.xpose.msra.mxu0 0.0
    %966 = vmatprep.subr.mxu0 0.0
    %967 = vmatpush1.xpose.msra.mxu0 0.0
    %968 = vmatprep.subr.mxu0 0.0
    %969 = vmatpush1.xpose.msra.mxu0 0.0
    %970 = vmatprep.subr.mxu0 0.0
    %971 = vmatpush1.xpose.msra.mxu0 0.0
    %972 = vmatprep.subr.mxu0 0.0
    %973 = vmatpush1.xpose.msra.mxu0 0.0
    %974 = vmatprep.subr.mxu0 0.0
    %975 = vmatpush1.xpose.msra.mxu0 0.0
    %976 = vmatprep.subr.mxu0 0.0
    %977 = vmatpush1.xpose.msra.mxu0 0.0
    %978 = vmatprep.subr.mxu0 0.0
    %979 = vmatpush1.xpose.msra.mxu0 0.0
    %980 = vmatprep.subr.mxu0 0.0
    %981 = vmatpush1.xpose.msra.mxu0 0.0
    %982 = vmatprep.subr.mxu0 0.0
    %983 = vmatpush1.xpose.msra.mxu0 0.0
    %984 = vmatprep.subr.mxu0 0.0
    %985 = vmatpush1.xpose.msra.mxu0 0.0
    %986 = vmatprep.subr.mxu0 0.0
    %987 = vmatpush1.xpose.msra.mxu0 0.0
    %988 = vmatprep.subr.mxu0 0.0
    %989 = vmatpush1.xpose.msra.mxu0 0.0
    %990 = vmatprep.subr.mxu0 0.0
    %991 = vmatpush1.xpose.msra.mxu0 0.0
    %992 = vmatprep.subr.mxu0 0.0
    %993 = vmatpush1.xpose.msra.mxu0 0.0
    %994 = vmatprep.subr.mxu0 0.0
    %995 = vmatpush1.xpose.msra.mxu0 0.0
    %996 = vmatprep.subr.mxu0 0.0
    %997 = vmatpush1.xpose.msra.mxu0 0.0
    %998 = vmatprep.subr.mxu0 0.0
    %999 = vmatpush1.xpose.msra.mxu0 0.0
    %1000 = vmatprep.subr.mxu0 0.0
    %1001 = vmatpush1.xpose.msra.mxu0 0.0
    %1002 = vmatprep.subr.mxu0 0.0
    %1003 = vmatpush1.xpose.msra.mxu0 0.0
    %1004 = vmatprep.subr.mxu0 0.0
    %1005 = vmatpush1.xpose.msra.mxu0 0.0
    %1006 = vmatprep.subr.mxu0 0.0
    %1007 = vmatpush1.xpose.msra.mxu0 0.0
    %1008 = vmatprep.subr.mxu0 0.0
    %1009 = vmatpush1.xpose.msra.mxu0 0.0
    %1010 = vmatprep.subr.mxu0 0.0
    %1011 = vmatpush1.xpose.msra.mxu0 0.0
    %1012 = vmatprep.subr.mxu0 0.0
    %1013 = vmatpush1.xpose.msra.mxu0 0.0
    %1014 = vmatprep.subr.mxu0 0.0
    %1015 = vmatpush1.xpose.msra.mxu0 0.0
    %1016 = vmatprep.subr.mxu0 0.0
    %1017 = vmatpush1.xpose.msra.mxu0 0.0
    %1018 = vmatprep.mubr.f32.mxu0 0.0
    %1019 = vmatmul.mubr.f32.gmra.mrb[0].mxu0 %v950
    %v1020 = vpop.f32.mrb[0].mxu0
    %v1021 = vadd.f32 %v151, %v1020
    %v1022 = vpop.f32.mrb[0].mxu0
    %1023 = vdwg.mxu0
    %v1024 = vsel %vm517, %v1021, -inf
    %1025 = vmax.xlane.f32.xlu0 %v1024
    %v1026 = vpop.xlane.xlu0 %1025
    %v1027 = vsub.f32 %v1021, %v1026
    %v1028 = vmul.f32 %v1027, 1.442695
    %v1029 = vpow.pop %v1028
    %v1030 = vsel %vm517, %v1029, 0.0
    %1031 = vadd.xlane.f32.xlu0 %v1030
    %v1032 = vpop.xlane.xlu0 %1031
    %v1033 = vrcp.pop %v1032
    %v1034 = vmul.f32 %v1029, %v1033
    %1035 = vrot.lane.b32.xlu0 %v434, 32
    %v1036 = vpop.permute.xlu0 %1035
    %v1039 = vsel %vm517, %v1034, 0
    %1041 = vmatprep.subr.mxu0 0.0
    %1042 = vmatpush1.msra.mxu0 %v1036
    %1043 = vmatprep.subr.mxu0 0.0
    %1044 = vmatpush1.msra.mxu0 0.0
    %1045 = vmatprep.subr.mxu0 0.0
    %1046 = vmatpush1.msra.mxu0 0.0
    %1047 = vmatprep.subr.mxu0 0.0
    %1048 = vmatpush1.msra.mxu0 0.0
    %1049 = vmatprep.subr.mxu0 0.0
    %1050 = vmatpush1.msra.mxu0 0.0
    %1051 = vmatprep.subr.mxu0 0.0
    %1052 = vmatpush1.msra.mxu0 0.0
    %1053 = vmatprep.subr.mxu0 0.0
    %1054 = vmatpush1.msra.mxu0 0.0
    %1055 = vmatprep.subr.mxu0 0.0
    %1056 = vmatpush1.msra.mxu0 0.0
    %1057 = vmatprep.subr.mxu0 0.0
    %1058 = vmatpush1.msra.mxu0 0.0
    %1059 = vmatprep.subr.mxu0 0.0
    %1060 = vmatpush1.msra.mxu0 0.0
    %1061 = vmatprep.subr.mxu0 0.0
    %1062 = vmatpush1.msra.mxu0 0.0
    %1063 = vmatprep.subr.mxu0 0.0
    %1064 = vmatpush1.msra.mxu0 0.0
    %1065 = vmatprep.subr.mxu0 0.0
    %1066 = vmatpush1.msra.mxu0 0.0
    %1067 = vmatprep.subr.mxu0 0.0
    %1068 = vmatpush1.msra.mxu0 0.0
    %1069 = vmatprep.subr.mxu0 0.0
    %1070 = vmatpush1.msra.mxu0 0.0
    %1071 = vmatprep.subr.mxu0 0.0
    %1072 = vmatpush1.msra.mxu0 0.0
    %1073 = vmatprep.subr.mxu0 0.0
    %1074 = vmatpush1.msra.mxu0 0.0
    %1075 = vmatprep.subr.mxu0 0.0
    %1076 = vmatpush1.msra.mxu0 0.0
    %1077 = vmatprep.subr.mxu0 0.0
    %1078 = vmatpush1.msra.mxu0 0.0
    %1079 = vmatprep.subr.mxu0 0.0
    %1080 = vmatpush1.msra.mxu0 0.0
    %1081 = vmatprep.subr.mxu0 0.0
    %1082 = vmatpush1.msra.mxu0 0.0
    %1083 = vmatprep.subr.mxu0 0.0
    %1084 = vmatpush1.msra.mxu0 0.0
    %1085 = vmatprep.subr.mxu0 0.0
    %1086 = vmatpush1.msra.mxu0 0.0
    %1087 = vmatprep.subr.mxu0 0.0
    %1088 = vmatpush1.msra.mxu0 0.0
    %1089 = vmatprep.subr.mxu0 0.0
    %1090 = vmatpush1.msra.mxu0 0.0
    %1091 = vmatprep.subr.mxu0 0.0
    %1092 = vmatpush1.msra.mxu0 0.0
    %1093 = vmatprep.subr.mxu0 0.0
    %1094 = vmatpush1.msra.mxu0 0.0
    %1095 = vmatprep.subr.mxu0 0.0
    %1096 = vmatpush1.msra.mxu0 0.0
    %1097 = vmatprep.subr.mxu0 0.0
    %1098 = vmatpush1.msra.mxu0 0.0
    %1099 = vmatprep.subr.mxu0 0.0
    %1100 = vmatpush1.msra.mxu0 0.0
    %1101 = vmatprep.subr.mxu0 0.0
    %1102 = vmatpush1.msra.mxu0 0.0
    %1103 = vmatprep.subr.mxu0 0.0
    %1104 = vmatpush1.msra.mxu0 0.0
    %1105 = vmatprep.mubr.f32.mxu0 0.0
    %1106 = vmatmul.mubr.f32.gmra.mrb[0].mxu0 %v1039
    %v1107 = vpop.f32.mrb[0].mxu0
    %v1108 = vadd.f32 0.0, %v1107
    %v1109 = vpop.f32.mrb[0].mxu0
    %1110 = vdwg.mxu0
    %1112 = vrot.lane.b32.xlu0 %v1108, 96
    %v1113 = vpop.permute.xlu0 %1112
    %vm1115 = vcmask 1048320
    %1116 = vst.msk [vmem:[#allocation2] sm:$0xff] %vm1115, %v1113
    %v1117 = vld [vmem:[#allocation2] sm:$0xff]
    %v1118 = vld [vmem:[#allocation11] sm:$0xf]
    %v1119 = vld [vmem:[#allocation11 + $0x4] sm:$0xf]
    %v1120 = vld [vmem:[#allocation11 + $0x8] sm:$0xf]
    %v1121 = vld [vmem:[#allocation11 + $0xc] sm:$0xf]
    %v1122 = vld [vmem:[#allocation11 + $0x10] sm:$0xf]
    %v1123 = vld [vmem:[#allocation11 + $0x14] sm:$0xf]
    %v1124 = vld [vmem:[#allocation11 + $0x18] sm:$0xf]
    %v1125 = vld [vmem:[#allocation11 + $0x1c] sm:$0xf]
    %v1126 = vld [vmem:[#allocation11 + $0x20] sm:$0xf]
    %v1127 = vld [vmem:[#allocation11 + $0x24] sm:$0xf]
    %v1128 = vld [vmem:[#allocation11 + $0x28] sm:$0xf]
    %v1129 = vld [vmem:[#allocation11 + $0x2c] sm:$0xf]
    %v1130 = vld [vmem:[#allocation11 + $0x30] sm:$0xf]
    %v1131 = vld [vmem:[#allocation11 + $0x34] sm:$0xf]
    %v1132 = vld [vmem:[#allocation11 + $0x38] sm:$0xf]
    %v1133 = vld [vmem:[#allocation11 + $0x3c] sm:$0xf]
    %v1134 = vpack.c.bf16 %v1117, %v1117
    %v1151 = vunpack.c.l.b16 %v1118
    %v1152 = vunpack.c.l.b16 %v1119
    %v1153 = vunpack.c.l.b16 %v1120
    %v1154 = vunpack.c.l.b16 %v1121
    %v1155 = vunpack.c.l.b16 %v1122
    %v1156 = vunpack.c.l.b16 %v1123
    %v1157 = vunpack.c.l.b16 %v1124
    %v1158 = vunpack.c.l.b16 %v1125
    %v1159 = vunpack.c.l.b16 %v1126
    %v1160 = vunpack.c.l.b16 %v1127
    %v1161 = vunpack.c.l.b16 %v1128
    %v1162 = vunpack.c.l.b16 %v1129
    %v1163 = vunpack.c.l.b16 %v1130
    %v1164 = vunpack.c.l.b16 %v1131
    %v1165 = vunpack.c.l.b16 %v1132
    %v1166 = vunpack.c.l.b16 %v1133
    %v1167 = vpack.c.b16 %v1152, %v1151
    %v1168 = vpack.c.b16 %v1154, %v1153
    %v1169 = vpack.c.b16 %v1156, %v1155
    %v1170 = vpack.c.b16 %v1158, %v1157
    %v1171 = vpack.c.b16 %v1160, %v1159
    %v1172 = vpack.c.b16 %v1162, %v1161
    %v1173 = vpack.c.b16 %v1164, %v1163
    %v1174 = vpack.c.b16 %v1166, %v1165
    %1183 = vmatprep.subr.bf16.mxu0 0
    %1184 = vmatpush1.bf16.msra.mxu0 %v1167
    %1185 = vmatprep.subr.bf16.mxu0 0
    %1186 = vmatpush1.bf16.msra.mxu0 %v1168
    %1187 = vmatprep.subr.bf16.mxu0 0
    %1188 = vmatpush1.bf16.msra.mxu0 %v1169
    %1189 = vmatprep.subr.bf16.mxu0 0
    %1190 = vmatpush1.bf16.msra.mxu0 %v1170
    %1191 = vmatprep.subr.bf16.mxu0 0
    %1192 = vmatpush1.bf16.msra.mxu0 %v1171
    %1193 = vmatprep.subr.bf16.mxu0 0
    %1194 = vmatpush1.bf16.msra.mxu0 %v1172
    %1195 = vmatprep.subr.bf16.mxu0 0
    %1196 = vmatpush1.bf16.msra.mxu0 %v1173
    %1197 = vmatprep.subr.bf16.mxu0 0
    %1198 = vmatpush1.bf16.msra.mxu0 %v1174
    %1199 = vmatprep.subr.bf16.mxu0 0
    %1200 = vmatpush1.bf16.msra.mxu0 0
    %1201 = vmatprep.subr.bf16.mxu0 0
    %1202 = vmatpush1.bf16.msra.mxu0 0
    %1203 = vmatprep.subr.bf16.mxu0 0
    %1204 = vmatpush1.bf16.msra.mxu0 0
    %1205 = vmatprep.subr.bf16.mxu0 0
    %1206 = vmatpush1.bf16.msra.mxu0 0
    %1207 = vmatprep.subr.bf16.mxu0 0
    %1208 = vmatpush1.bf16.msra.mxu0 0
    %1209 = vmatprep.subr.bf16.mxu0 0
    %1210 = vmatpush1.bf16.msra.mxu0 0
    %1211 = vmatprep.subr.bf16.mxu0 0
    %1212 = vmatpush1.bf16.msra.mxu0 0
    %1213 = vmatprep.subr.bf16.mxu0 0
    %1214 = vmatpush1.bf16.msra.mxu0 0
    %1215 = vmatprep.mubr.bf16.mxu0 0
    %1216 = vmatmul.mubr.bf16.gmra.mrb[0].mxu0 %v1134
    %v1217 = vpop.f32.mrb[0].mxu0
    %v1218 = vadd.f32 0.0, %v1217
    %v1219 = vpop.f32.mrb[0].mxu0
    %v1220 = vpop.f32.mrb[0].mxu0
    %v1221 = vpop.f32.mrb[0].mxu0
    %1222 = vdwg.mxu0
    %v1223 = vadd.f32 %v145, %v1218
    %v1224 = vld [vmem:[%s6] sm:$0x1]
    %v1226 = vlaneseq
    %v1227 = vshrl.u32 %v1226, 7
    %v1228 = vsub.s32 0, %v1227
    %v1229 = vrot.slane %v1224, %v1228
    %v1231 = vadd.f32 %v1223, %v1229
    %v1232 = vld [vmem:[%s7] sm:$0x1]
    %v1233 = vld [vmem:[%s8] sm:$0x1]
    %1234 = vadd.xlane.f32.xlu0 %v1231
    %v1235 = vpop.xlane.xlu0 %1234
    %v1236 = vmul.f32 %v1235, %v156
    %v1237 = vsub.f32 %v1231, %v1236
    %v1238 = vmul.f32 %v1237, %v1237
    %1239 = vadd.xlane.f32.xlu0 %v1238
    %v1240 = vpop.xlane.xlu0 %1239
    %v1241 = vmul.f32 %v1240, %v156
    %v1242 = vadd.f32 %v1241, 1e-05
    %v1243 = vrsqrt.pop %v1242
    %v1244 = vmul.f32 %v1237, %v1243
    %v1246 = vlaneseq
    %v1247 = vshrl.u32 %v1246, 7
    %v1248 = vsub.s32 0, %v1247
    %v1249 = vrot.slane %v1232, %v1248
    %v1251 = vmul.f32 %v1244, %v1249
    %v1253 = vlaneseq
    %v1254 = vshrl.u32 %v1253, 7
    %v1255 = vsub.s32 0, %v1254
    %v1256 = vrot.slane %v1233, %v1255
    %v1258 = vadd.f32 %v1251, %v1256
    %v1259 = vld [vmem:[#allocation12] sm:$0xff]
    %v1260 = vld [vmem:[#allocation12 + $0x8] sm:$0xff]
    %v1261 = vld [vmem:[#allocation12 + $0x10] sm:$0xff]
    %v1262 = vld [vmem:[#allocation12 + $0x18] sm:$0xff]
    %v1263 = vld [vmem:[#allocation12 + $0x20] sm:$0xff]
    %v1264 = vld [vmem:[#allocation12 + $0x28] sm:$0xff]
    %v1265 = vld [vmem:[#allocation12 + $0x30] sm:$0xff]
    %v1266 = vld [vmem:[#allocation12 + $0x38] sm:$0xff]
    %v1267 = vld [vmem:[#allocation12 + $0x40] sm:$0xff]
    %v1268 = vld [vmem:[#allocation12 + $0x48] sm:$0xff]
    %v1269 = vld [vmem:[#allocation12 + $0x50] sm:$0xff]
    %v1270 = vld [vmem:[#allocation12 + $0x58] sm:$0xff]
    %v1271 = vld [vmem:[#allocation12 + $0x60] sm:$0xff]
    %v1272 = vld [vmem:[#allocation12 + $0x68] sm:$0xff]
    %v1273 = vld [vmem:[#allocation12 + $0x70] sm:$0xff]
    %v1274 = vld [vmem:[#allocation12 + $0x78] sm:$0xff]
    %v1275 = vld [vmem:[#allocation12 + $0x80] sm:$0xff]
    %v1276 = vld [vmem:[#allocation12 + $0x88] sm:$0xff]
    %v1277 = vld [vmem:[#allocation12 + $0x90] sm:$0xff]
    %v1278 = vld [vmem:[#allocation12 + $0x98] sm:$0xff]
    %v1279 = vld [vmem:[#allocation12 + $0xa0] sm:$0xff]
    %v1280 = vld [vmem:[#allocation12 + $0xa8] sm:$0xff]
    %v1281 = vld [vmem:[#allocation12 + $0xb0] sm:$0xff]
    %v1282 = vld [vmem:[#allocation12 + $0xb8] sm:$0xff]
    %v1283 = vld [vmem:[#allocation12 + $0xc0] sm:$0xff]
    %v1284 = vld [vmem:[#allocation12 + $0xc8] sm:$0xff]
    %v1285 = vld [vmem:[#allocation12 + $0xd0] sm:$0xff]
    %v1286 = vld [vmem:[#allocation12 + $0xd8] sm:$0xff]
    %v1287 = vld [vmem:[#allocation12 + $0xe0] sm:$0xff]
    %v1288 = vld [vmem:[#allocation12 + $0xe8] sm:$0xff]
    %v1289 = vld [vmem:[#allocation12 + $0xf0] sm:$0xff]
    %v1290 = vld [vmem:[#allocation12 + $0xf8] sm:$0xff]
    %v1291 = vpack.c.bf16 %v1258, %v1258
    %v1292 = vld [vmem:[%s10] sm:$0xf]
    %v1294 = vlaneseq
    %v1295 = vshrl.u32 %v1294, 7
    %v1296 = vsub.s32 0, %v1295
    %v1297 = vrot.slane %v1292, %v1296
    %v1298 = vlaneseq
    %v1299 = vshrl.u32 %v1298, 7
    %v1300 = vsub.s32 1, %v1299
    %v1301 = vrot.slane %v1292, %v1300
    %v1302 = vlaneseq
    %v1303 = vshrl.u32 %v1302, 7
    %v1304 = vsub.s32 2, %v1303
    %v1305 = vrot.slane %v1292, %v1304
    %v1306 = vlaneseq
    %v1307 = vshrl.u32 %v1306, 7
    %v1308 = vsub.s32 3, %v1307
    %v1309 = vrot.slane %v1292, %v1308
    %v1346 = vunpack.c.l.b16 %v1259
    %v1347 = vunpack.c.h.b16 %v1259
    %v1348 = vunpack.c.l.b16 %v1260
    %v1349 = vunpack.c.h.b16 %v1260
    %v1350 = vunpack.c.l.b16 %v1261
    %v1351 = vunpack.c.h.b16 %v1261
    %v1352 = vunpack.c.l.b16 %v1262
    %v1353 = vunpack.c.h.b16 %v1262
    %v1354 = vunpack.c.l.b16 %v1263
    %v1355 = vunpack.c.h.b16 %v1263
    %v1356 = vunpack.c.l.b16 %v1264
    %v1357 = vunpack.c.h.b16 %v1264
    %v1358 = vunpack.c.l.b16 %v1265
    %v1359 = vunpack.c.h.b16 %v1265
    %v1360 = vunpack.c.l.b16 %v1266
    %v1361 = vunpack.c.h.b16 %v1266
    %v1362 = vunpack.c.l.b16 %v1267
    %v1363 = vunpack.c.h.b16 %v1267
    %v1364 = vunpack.c.l.b16 %v1268
    %v1365 = vunpack.c.h.b16 %v1268
    %v1366 = vunpack.c.l.b16 %v1269
    %v1367 = vunpack.c.h.b16 %v1269
    %v1368 = vunpack.c.l.b16 %v1270
    %v1369 = vunpack.c.h.b16 %v1270
    %v1370 = vunpack.c.l.b16 %v1271
    %v1371 = vunpack.c.h.b16 %v1271
    %v1372 = vunpack.c.l.b16 %v1272
    %v1373 = vunpack.c.h.b16 %v1272
    %v1374 = vunpack.c.l.b16 %v1273
    %v1375 = vunpack.c.h.b16 %v1273
    %v1376 = vunpack.c.l.b16 %v1274
    %v1377 = vunpack.c.h.b16 %v1274
    %v1378 = vunpack.c.l.b16 %v1275
    %v1379 = vunpack.c.h.b16 %v1275
    %v1380 = vunpack.c.l.b16 %v1276
    %v1381 = vunpack.c.h.b16 %v1276
    %v1382 = vunpack.c.l.b16 %v1277
    %v1383 = vunpack.c.h.b16 %v1277
    %v1384 = vunpack.c.l.b16 %v1278
    %v1385 = vunpack.c.h.b16 %v1278
    %v1386 = vunpack.c.l.b16 %v1279
    %v1387 = vunpack.c.h.b16 %v1279
    %v1388 = vunpack.c.l.b16 %v1280
    %v1389 = vunpack.c.h.b16 %v1280
    %v1390 = vunpack.c.l.b16 %v1281
    %v1391 = vunpack.c.h.b16 %v1281
    %v1392 = vunpack.c.l.b16 %v1282
    %v1393 = vunpack.c.h.b16 %v1282
    %v1394 = vunpack.c.l.b16 %v1283
    %v1395 = vunpack.c.h.b16 %v1283
    %v1396 = vunpack.c.l.b16 %v1284
    %v1397 = vunpack.c.h.b16 %v1284
    %v1398 = vunpack.c.l.b16 %v1285
    %v1399 = vunpack.c.h.b16 %v1285
    %v1400 = vunpack.c.l.b16 %v1286
    %v1401 = vunpack.c.h.b16 %v1286
    %v1402 = vunpack.c.l.b16 %v1287
    %v1403 = vunpack.c.h.b16 %v1287
    %v1404 = vunpack.c.l.b16 %v1288
    %v1405 = vunpack.c.h.b16 %v1288
    %v1406 = vunpack.c.l.b16 %v1289
    %v1407 = vunpack.c.h.b16 %v1289
    %v1408 = vunpack.c.l.b16 %v1290
    %v1409 = vunpack.c.h.b16 %v1290
    %v1410 = vpack.c.b16 %v1350, %v1346
    %v1411 = vpack.c.b16 %v1351, %v1347
    %v1412 = vpack.c.b16 %v1352, %v1348
    %v1413 = vpack.c.b16 %v1353, %v1349
    %v1414 = vpack.c.b16 %v1358, %v1354
    %v1415 = vpack.c.b16 %v1359, %v1355
    %v1416 = vpack.c.b16 %v1360, %v1356
    %v1417 = vpack.c.b16 %v1361, %v1357
    %v1418 = vpack.c.b16 %v1366, %v1362
    %v1419 = vpack.c.b16 %v1367, %v1363
    %v1420 = vpack.c.b16 %v1368, %v1364
    %v1421 = vpack.c.b16 %v1369, %v1365
    %v1422 = vpack.c.b16 %v1374, %v1370
    %v1423 = vpack.c.b16 %v1375, %v1371
    %v1424 = vpack.c.b16 %v1376, %v1372
    %v1425 = vpack.c.b16 %v1377, %v1373
    %v1426 = vpack.c.b16 %v1382, %v1378
    %v1427 = vpack.c.b16 %v1383, %v1379
    %v1428 = vpack.c.b16 %v1384, %v1380
    %v1429 = vpack.c.b16 %v1385, %v1381
    %v1430 = vpack.c.b16 %v1390, %v1386
    %v1431 = vpack.c.b16 %v1391, %v1387
    %v1432 = vpack.c.b16 %v1392, %v1388
    %v1433 = vpack.c.b16 %v1393, %v1389
    %v1434 = vpack.c.b16 %v1398, %v1394
    %v1435 = vpack.c.b16 %v1399, %v1395
    %v1436 = vpack.c.b16 %v1400, %v1396
    %v1437 = vpack.c.b16 %v1401, %v1397
    %v1438 = vpack.c.b16 %v1406, %v1402
    %v1439 = vpack.c.b16 %v1407, %v1403
    %v1440 = vpack.c.b16 %v1408, %v1404
    %v1441 = vpack.c.b16 %v1409, %v1405
    %1474 = vmatprep.subr.bf16.mxu0 %v1411
    %1475 = vmatpush1.bf16.msra.mxu0 %v1410
    %1476 = vmatprep.subr.bf16.mxu0 %v1415
    %1477 = vmatpush1.bf16.msra.mxu0 %v1414
    %1478 = vmatprep.subr.bf16.mxu0 %v1419
    %1479 = vmatpush1.bf16.msra.mxu0 %v1418
    %1480 = vmatprep.subr.bf16.mxu0 %v1423
    %1481 = vmatpush1.bf16.msra.mxu0 %v1422
    %1482 = vmatprep.subr.bf16.mxu0 %v1427
    %1483 = vmatpush1.bf16.msra.mxu0 %v1426
    %1484 = vmatprep.subr.bf16.mxu0 %v1431
    %1485 = vmatpush1.bf16.msra.mxu0 %v1430
    %1486 = vmatprep.subr.bf16.mxu0 %v1435
    %1487 = vmatpush1.bf16.msra.mxu0 %v1434
    %1488 = vmatprep.subr.bf16.mxu0 %v1439
    %1489 = vmatpush1.bf16.msra.mxu0 %v1438
    %1490 = vmatprep.subr.bf16.mxu0 0
    %1491 = vmatpush1.bf16.msra.mxu0 0
    %1492 = vmatprep.subr.bf16.mxu0 0
    %1493 = vmatpush1.bf16.msra.mxu0 0
    %1494 = vmatprep.subr.bf16.mxu0 0
    %1495 = vmatpush1.bf16.msra.mxu0 0
    %1496 = vmatprep.subr.bf16.mxu0 0
    %1497 = vmatpush1.bf16.msra.mxu0 0
    %1498 = vmatprep.subr.bf16.mxu0 0
    %1499 = vmatpush1.bf16.msra.mxu0 0
    %1500 = vmatprep.subr.bf16.mxu0 0
    %1501 = vmatpush1.bf16.msra.mxu0 0
    %1502 = vmatprep.subr.bf16.mxu0 0
    %1503 = vmatpush1.bf16.msra.mxu0 0
    %1504 = vmatprep.subr.bf16.mxu0 0
    %1505 = vmatpush1.bf16.msra.mxu0 0
    %1506 = vmatprep.mubr.bf16.mxu0 0
    %1507 = vmatmul.mubr.bf16.gmra.mrb[0].mxu0 %v1291
    %v1508 = vpop.f32.mrb[0].mxu0
    %v1509 = vadd.f32 %v1297, %v1508
    %v1510 = vpop.f32.mrb[0].mxu0
    %v1511 = vadd.f32 %v1301, %v1510
    %v1512 = vpop.f32.mrb[0].mxu0
    %v1513 = vpop.f32.mrb[0].mxu0
    %1514 = vdwg.mxu0
    %1515 = vmatprep.subr.bf16.mxu0 %v1413
    %1516 = vmatpush1.bf16.msra.mxu0 %v1412
    %1517 = vmatprep.subr.bf16.mxu0 %v1417
    %1518 = vmatpush1.bf16.msra.mxu0 %v1416
    %1519 = vmatprep.subr.bf16.mxu0 %v1421
    %1520 = vmatpush1.bf16.msra.mxu0 %v1420
    %1521 = vmatprep.subr.bf16.mxu0 %v1425
    %1522 = vmatpush1.bf16.msra.mxu0 %v1424
    %1523 = vmatprep.subr.bf16.mxu0 %v1429
    %1524 = vmatpush1.bf16.msra.mxu0 %v1428
    %1525 = vmatprep.subr.bf16.mxu0 %v1433
    %1526 = vmatpush1.bf16.msra.mxu0 %v1432
    %1527 = vmatprep.subr.bf16.mxu0 %v1437
    %1528 = vmatpush1.bf16.msra.mxu0 %v1436
    %1529 = vmatprep.subr.bf16.mxu0 %v1441
    %1530 = vmatpush1.bf16.msra.mxu0 %v1440
    %1531 = vmatprep.subr.bf16.mxu0 0
    %1532 = vmatpush1.bf16.msra.mxu0 0
    %1533 = vmatprep.subr.bf16.mxu0 0
    %1534 = vmatpush1.bf16.msra.mxu0 0
    %1535 = vmatprep.subr.bf16.mxu0 0
    %1536 = vmatpush1.bf16.msra.mxu0 0
    %1537 = vmatprep.subr.bf16.mxu0 0
    %1538 = vmatpush1.bf16.msra.mxu0 0
    %1539 = vmatprep.subr.bf16.mxu0 0
    %1540 = vmatpush1.bf16.msra.mxu0 0
    %1541 = vmatprep.subr.bf16.mxu0 0
    %1542 = vmatpush1.bf16.msra.mxu0 0
    %1543 = vmatprep.subr.bf16.mxu0 0
    %1544 = vmatpush1.bf16.msra.mxu0 0
    %1545 = vmatprep.subr.bf16.mxu0 0
    %1546 = vmatpush1.bf16.msra.mxu0 0
    %1547 = vmatprep.mubr.bf16.mxu0 0
    %1548 = vmatmul.mubr.bf16.gmra.mrb[0].mxu0 %v1291
    %v1549 = vpop.f32.mrb[0].mxu0
    %v1550 = vadd.f32 %v1305, %v1549
    %v1551 = vpop.f32.mrb[0].mxu0
    %v1552 = vadd.f32 %v1309, %v1551
    %v1553 = vpop.f32.mrb[0].mxu0
    %v1554 = vpop.f32.mrb[0].mxu0
    %1555 = vdwg.mxu0
    %v1556 = vmax.f32 %v1509, 0.0
    %v1557 = vmax.f32 %v1511, 0.0
    %v1558 = vmax.f32 %v1550, 0.0
    %v1559 = vmax.f32 %v1552, 0.0
    %v1560 = vld [vmem:[#allocation14] sm:$0xf]
    %v1561 = vld [vmem:[#allocation14 + $0x4] sm:$0xf]
    %v1562 = vld [vmem:[#allocation14 + $0x8] sm:$0xf]
    %v1563 = vld [vmem:[#allocation14 + $0xc] sm:$0xf]
    %v1564 = vld [vmem:[#allocation14 + $0x10] sm:$0xf]
    %v1565 = vld [vmem:[#allocation14 + $0x14] sm:$0xf]
    %v1566 = vld [vmem:[#allocation14 + $0x18] sm:$0xf]
    %v1567 = vld [vmem:[#allocation14 + $0x1c] sm:$0xf]
    %v1568 = vld [vmem:[#allocation14 + $0x20] sm:$0xf]
    %v1569 = vld [vmem:[#allocation14 + $0x24] sm:$0xf]
    %v1570 = vld [vmem:[#allocation14 + $0x28] sm:$0xf]
    %v1571 = vld [vmem:[#allocation14 + $0x2c] sm:$0xf]
    %v1572 = vld [vmem:[#allocation14 + $0x30] sm:$0xf]
    %v1573 = vld [vmem:[#allocation14 + $0x34] sm:$0xf]
    %v1574 = vld [vmem:[#allocation14 + $0x38] sm:$0xf]
    %v1575 = vld [vmem:[#allocation14 + $0x3c] sm:$0xf]
    %v1576 = vld [vmem:[#allocation14 + $0x40] sm:$0xf]
    %v1577 = vld [vmem:[#allocation14 + $0x44] sm:$0xf]
    %v1578 = vld [vmem:[#allocation14 + $0x48] sm:$0xf]
    %v1579 = vld [vmem:[#allocation14 + $0x4c] sm:$0xf]
    %v1580 = vld [vmem:[#allocation14 + $0x50] sm:$0xf]
    %v1581 = vld [vmem:[#allocation14 + $0x54] sm:$0xf]
    %v1582 = vld [vmem:[#allocation14 + $0x58] sm:$0xf]
    %v1583 = vld [vmem:[#allocation14 + $0x5c] sm:$0xf]
    %v1584 = vld [vmem:[#allocation14 + $0x60] sm:$0xf]
    %v1585 = vld [vmem:[#allocation14 + $0x64] sm:$0xf]
    %v1586 = vld [vmem:[#allocation14 + $0x68] sm:$0xf]
    %v1587 = vld [vmem:[#allocation14 + $0x6c] sm:$0xf]
    %v1588 = vld [vmem:[#allocation14 + $0x70] sm:$0xf]
    %v1589 = vld [vmem:[#allocation14 + $0x74] sm:$0xf]
    %v1590 = vld [vmem:[#allocation14 + $0x78] sm:$0xf]
    %v1591 = vld [vmem:[#allocation14 + $0x7c] sm:$0xf]
    %v1592 = vld [vmem:[#allocation14 + $0x80] sm:$0xf]
    %v1593 = vld [vmem:[#allocation14 + $0x84] sm:$0xf]
    %v1594 = vld [vmem:[#allocation14 + $0x88] sm:$0xf]
    %v1595 = vld [vmem:[#allocation14 + $0x8c] sm:$0xf]
    %v1596 = vld [vmem:[#allocation14 + $0x90] sm:$0xf]
    %v1597 = vld [vmem:[#allocation14 + $0x94] sm:$0xf]
    %v1598 = vld [vmem:[#allocation14 + $0x98] sm:$0xf]
    %v1599 = vld [vmem:[#allocation14 + $0x9c] sm:$0xf]
    %v1600 = vld [vmem:[#allocation14 + $0xa0] sm:$0xf]
    %v1601 = vld [vmem:[#allocation14 + $0xa4] sm:$0xf]
    %v1602 = vld [vmem:[#allocation14 + $0xa8] sm:$0xf]
    %v1603 = vld [vmem:[#allocation14 + $0xac] sm:$0xf]
    %v1604 = vld [vmem:[#allocation14 + $0xb0] sm:$0xf]
    %v1605 = vld [vmem:[#allocation14 + $0xb4] sm:$0xf]
    %v1606 = vld [vmem:[#allocation14 + $0xb8] sm:$0xf]
    %v1607 = vld [vmem:[#allocation14 + $0xbc] sm:$0xf]
    %v1608 = vld [vmem:[#allocation14 + $0xc0] sm:$0xf]
    %v1609 = vld [vmem:[#allocation14 + $0xc4] sm:$0xf]
    %v1610 = vld [vmem:[#allocation14 + $0xc8] sm:$0xf]
    %v1611 = vld [vmem:[#allocation14 + $0xcc] sm:$0xf]
    %v1612 = vld [vmem:[#allocation14 + $0xd0] sm:$0xf]
    %v1613 = vld [vmem:[#allocation14 + $0xd4] sm:$0xf]
    %v1614 = vld [vmem:[#allocation14 + $0xd8] sm:$0xf]
    %v1615 = vld [vmem:[#allocation14 + $0xdc] sm:$0xf]
    %v1616 = vld [vmem:[#allocation14 + $0xe0] sm:$0xf]
    %v1617 = vld [vmem:[#allocation14 + $0xe4] sm:$0xf]
    %v1618 = vld [vmem:[#allocation14 + $0xe8] sm:$0xf]
    %v1619 = vld [vmem:[#allocation14 + $0xec] sm:$0xf]
    %v1620 = vld [vmem:[#allocation14 + $0xf0] sm:$0xf]
    %v1621 = vld [vmem:[#allocation14 + $0xf4] sm:$0xf]
    %v1622 = vld [vmem:[#allocation14 + $0xf8] sm:$0xf]
    %v1623 = vld [vmem:[#allocation14 + $0xfc] sm:$0xf]
    %v1624 = vpack.c.bf16 %v1556, %v1556
    %v1625 = vpack.c.bf16 %v1557, %v1557
    %v1626 = vpack.c.bf16 %v1558, %v1558
    %v1627 = vpack.c.bf16 %v1559, %v1559
    %v1692 = vunpack.c.l.b16 %v1560
    %v1693 = vunpack.c.l.b16 %v1561
    %v1694 = vunpack.c.l.b16 %v1562
    %v1695 = vunpack.c.l.b16 %v1563
    %v1696 = vunpack.c.l.b16 %v1564
    %v1697 = vunpack.c.l.b16 %v1565
    %v1698 = vunpack.c.l.b16 %v1566
    %v1699 = vunpack.c.l.b16 %v1567
    %v1700 = vunpack.c.l.b16 %v1568
    %v1701 = vunpack.c.l.b16 %v1569
    %v1702 = vunpack.c.l.b16 %v1570
    %v1703 = vunpack.c.l.b16 %v1571
    %v1704 = vunpack.c.l.b16 %v1572
    %v1705 = vunpack.c.l.b16 %v1573
    %v1706 = vunpack.c.l.b16 %v1574
    %v1707 = vunpack.c.l.b16 %v1575
    %v1708 = vunpack.c.l.b16 %v1576
    %v1709 = vunpack.c.l.b16 %v1577
    %v1710 = vunpack.c.l.b16 %v1578
    %v1711 = vunpack.c.l.b16 %v1579
    %v1712 = vunpack.c.l.b16 %v1580
    %v1713 = vunpack.c.l.b16 %v1581
    %v1714 = vunpack.c.l.b16 %v1582
    %v1715 = vunpack.c.l.b16 %v1583
    %v1716 = vunpack.c.l.b16 %v1584
    %v1717 = vunpack.c.l.b16 %v1585
    %v1718 = vunpack.c.l.b16 %v1586
    %v1719 = vunpack.c.l.b16 %v1587
    %v1720 = vunpack.c.l.b16 %v1588
    %v1721 = vunpack.c.l.b16 %v1589
    %v1722 = vunpack.c.l.b16 %v1590
    %v1723 = vunpack.c.l.b16 %v1591
    %v1724 = vunpack.c.l.b16 %v1592
    %v1725 = vunpack.c.l.b16 %v1593
    %v1726 = vunpack.c.l.b16 %v1594
    %v1727 = vunpack.c.l.b16 %v1595
    %v1728 = vunpack.c.l.b16 %v1596
    %v1729 = vunpack.c.l.b16 %v1597
    %v1730 = vunpack.c.l.b16 %v1598
    %v1731 = vunpack.c.l.b16 %v1599
    %v1732 = vunpack.c.l.b16 %v1600
    %v1733 = vunpack.c.l.b16 %v1601
    %v1734 = vunpack.c.l.b16 %v1602
    %v1735 = vunpack.c.l.b16 %v1603
    %v1736 = vunpack.c.l.b16 %v1604
    %v1737 = vunpack.c.l.b16 %v1605
    %v1738 = vunpack.c.l.b16 %v1606
    %v1739 = vunpack.c.l.b16 %v1607
    %v1740 = vunpack.c.l.b16 %v1608
    %v1741 = vunpack.c.l.b16 %v1609
    %v1742 = vunpack.c.l.b16 %v1610
    %v1743 = vunpack.c.l.b16 %v1611
    %v1744 = vunpack.c.l.b16 %v1612
    %v1745 = vunpack.c.l.b16 %v1613
    %v1746 = vunpack.c.l.b16 %v1614
    %v1747 = vunpack.c.l.b16 %v1615
    %v1748 = vunpack.c.l.b16 %v1616
    %v1749 = vunpack.c.l.b16 %v1617
    %v1750 = vunpack.c.l.b16 %v1618
    %v1751 = vunpack.c.l.b16 %v1619
    %v1752 = vunpack.c.l.b16 %v1620
    %v1753 = vunpack.c.l.b16 %v1621
    %v1754 = vunpack.c.l.b16 %v1622
    %v1755 = vunpack.c.l.b16 %v1623
    %v1756 = vpack.c.b16 %v1693, %v1692
    %v1757 = vpack.c.b16 %v1695, %v1694
    %v1758 = vpack.c.b16 %v1697, %v1696
    %v1759 = vpack.c.b16 %v1699, %v1698
    %v1760 = vpack.c.b16 %v1701, %v1700
    %v1761 = vpack.c.b16 %v1703, %v1702
    %v1762 = vpack.c.b16 %v1705, %v1704
    %v1763 = vpack.c.b16 %v1707, %v1706
    %v1764 = vpack.c.b16 %v1709, %v1708
    %v1765 = vpack.c.b16 %v1711, %v1710
    %v1766 = vpack.c.b16 %v1713, %v1712
    %v1767 = vpack.c.b16 %v1715, %v1714
    %v1768 = vpack.c.b16 %v1717, %v1716
    %v1769 = vpack.c.b16 %v1719, %v1718
    %v1770 = vpack.c.b16 %v1721, %v1720
    %v1771 = vpack.c.b16 %v1723, %v1722
    %v1772 = vpack.c.b16 %v1725, %v1724
    %v1773 = vpack.c.b16 %v1727, %v1726
    %v1774 = vpack.c.b16 %v1729, %v1728
    %v1775 = vpack.c.b16 %v1731, %v1730
    %v1776 = vpack.c.b16 %v1733, %v1732
    %v1777 = vpack.c.b16 %v1735, %v1734
    %v1778 = vpack.c.b16 %v1737, %v1736
    %v1779 = vpack.c.b16 %v1739, %v1738
    %v1780 = vpack.c.b16 %v1741, %v1740
    %v1781 = vpack.c.b16 %v1743, %v1742
    %v1782 = vpack.c.b16 %v1745, %v1744
    %v1783 = vpack.c.b16 %v1747, %v1746
    %v1784 = vpack.c.b16 %v1749, %v1748
    %v1785 = vpack.c.b16 %v1751, %v1750
    %v1786 = vpack.c.b16 %v1753, %v1752
    %v1787 = vpack.c.b16 %v1755, %v1754
    %1820 = vmatprep.subr.bf16.mxu0 0
    %1821 = vmatpush1.bf16.msra.mxu0 %v1756
    %1822 = vmatprep.subr.bf16.mxu0 0
    %1823 = vmatpush1.bf16.msra.mxu0 %v1757
    %1824 = vmatprep.subr.bf16.mxu0 0
    %1825 = vmatpush1.bf16.msra.mxu0 %v1758
    %1826 = vmatprep.subr.bf16.mxu0 0
    %1827 = vmatpush1.bf16.msra.mxu0 %v1759
    %1828 = vmatprep.subr.bf16.mxu0 0
    %1829 = vmatpush1.bf16.msra.mxu0 %v1760
    %1830 = vmatprep.subr.bf16.mxu0 0
    %1831 = vmatpush1.bf16.msra.mxu0 %v1761
    %1832 = vmatprep.subr.bf16.mxu0 0
    %1833 = vmatpush1.bf16.msra.mxu0 %v1762
    %1834 = vmatprep.subr.bf16.mxu0 0
    %1835 = vmatpush1.bf16.msra.mxu0 %v1763
    %1836 = vmatprep.subr.bf16.mxu0 0
    %1837 = vmatpush1.bf16.msra.mxu0 %v1764
    %1838 = vmatprep.subr.bf16.mxu0 0
    %1839 = vmatpush1.bf16.msra.mxu0 %v1765
    %1840 = vmatprep.subr.bf16.mxu0 0
    %1841 = vmatpush1.bf16.msra.mxu0 %v1766
    %1842 = vmatprep.subr.bf16.mxu0 0
    %1843 = vmatpush1.bf16.msra.mxu0 %v1767
    %1844 = vmatprep.subr.bf16.mxu0 0
    %1845 = vmatpush1.bf16.msra.mxu0 %v1768
    %1846 = vmatprep.subr.bf16.mxu0 0
    %1847 = vmatpush1.bf16.msra.mxu0 %v1769
    %1848 = vmatprep.subr.bf16.mxu0 0
    %1849 = vmatpush1.bf16.msra.mxu0 %v1770
    %1850 = vmatprep.subr.bf16.mxu0 0
    %1851 = vmatpush1.bf16.msra.mxu0 %v1771
    %1852 = vmatprep.mubr.bf16.mxu0 %v1625
    %1853 = vmatmul.mubr.bf16.gmra.mrb[0].mxu0 %v1624
    %v1854 = vpop.f32.mrb[0].mxu0
    %v1855 = vadd.f32 0.0, %v1854
    %v1856 = vpop.f32.mrb[0].mxu0
    %v1857 = vpop.f32.mrb[0].mxu0
    %v1858 = vpop.f32.mrb[0].mxu0
    %1859 = vdwg.mxu0
    %1860 = vmatprep.subr.bf16.mxu0 0
    %1861 = vmatpush1.bf16.msra.mxu0 %v1772
    %1862 = vmatprep.subr.bf16.mxu0 0
    %1863 = vmatpush1.bf16.msra.mxu0 %v1773
    %1864 = vmatprep.subr.bf16.mxu0 0
    %1865 = vmatpush1.bf16.msra.mxu0 %v1774
    %1866 = vmatprep.subr.bf16.mxu0 0
    %1867 = vmatpush1.bf16.msra.mxu0 %v1775
    %1868 = vmatprep.subr.bf16.mxu0 0
    %1869 = vmatpush1.bf16.msra.mxu0 %v1776
    %1870 = vmatprep.subr.bf16.mxu0 0
    %1871 = vmatpush1.bf16.msra.mxu0 %v1777
    %1872 = vmatprep.subr.bf16.mxu0 0
    %1873 = vmatpush1.bf16.msra.mxu0 %v1778
    %1874 = vmatprep.subr.bf16.mxu0 0
    %1875 = vmatpush1.bf16.msra.mxu0 %v1779
    %1876 = vmatprep.subr.bf16.mxu0 0
    %1877 = vmatpush1.bf16.msra.mxu0 %v1780
    %1878 = vmatprep.subr.bf16.mxu0 0
    %1879 = vmatpush1.bf16.msra.mxu0 %v1781
    %1880 = vmatprep.subr.bf16.mxu0 0
    %1881 = vmatpush1.bf16.msra.mxu0 %v1782
    %1882 = vmatprep.subr.bf16.mxu0 0
    %1883 = vmatpush1.bf16.msra.mxu0 %v1783
    %1884 = vmatprep.subr.bf16.mxu0 0
    %1885 = vmatpush1.bf16.msra.mxu0 %v1784
    %1886 = vmatprep.subr.bf16.mxu0 0
    %1887 = vmatpush1.bf16.msra.mxu0 %v1785
    %1888 = vmatprep.subr.bf16.mxu0 0
    %1889 = vmatpush1.bf16.msra.mxu0 %v1786
    %1890 = vmatprep.subr.bf16.mxu0 0
    %1891 = vmatpush1.bf16.msra.mxu0 %v1787
    %1892 = vmatprep.mubr.bf16.mxu0 %v1627
    %1893 = vmatmul.mubr.bf16.gmra.mrb[0].mxu0 %v1626
    %v1894 = vpop.f32.mrb[0].mxu0
    %v1895 = vadd.f32 %v1855, %v1894
    %v1896 = vpop.f32.mrb[0].mxu0
    %v1897 = vpop.f32.mrb[0].mxu0
    %v1898 = vpop.f32.mrb[0].mxu0
    %1899 = vdwg.mxu0
    %v1900 = vadd.f32 %v1231, %v1895
    %v1901 = vld [vmem:[%s12] sm:$0x1]
    %v1903 = vlaneseq
    %v1904 = vshrl.u32 %v1903, 7
    %v1905 = vsub.s32 0, %v1904
    %v1906 = vrot.slane %v1901, %v1905
    %v1908 = vadd.f32 %v1900, %v1906
    %s1909 = scalar_lea.vmem [#allocation6], 1
    %v1910 = vld [vmem:[%s1909] sm:$0x1]
    %s1911 = scalar_lea.vmem [#allocation8], 1
    %v1912 = vld [vmem:[%s1911] sm:$0x1]
    %1913 = vadd.xlane.f32.xlu0 %v1908
    %v1914 = vpop.xlane.xlu0 %1913
    %v1915 = vmul.f32 %v1914, %v156
    %v1916 = vsub.f32 %v1908, %v1915
    %v1917 = vmul.f32 %v1916, %v1916
    %1918 = vadd.xlane.f32.xlu0 %v1917
    %v1919 = vpop.xlane.xlu0 %1918
    %v1920 = vmul.f32 %v1919, %v156
    %v1921 = vadd.f32 %v1920, 1e-05
    %v1922 = vrsqrt.pop %v1921
    %v1923 = vmul.f32 %v1916, %v1922
    %v1925 = vlaneseq
    %v1926 = vshrl.u32 %v1925, 7
    %v1927 = vsub.s32 0, %v1926
    %v1928 = vrot.slane %v1910, %v1927
    %v1930 = vmul.f32 %v1923, %v1928
    %v1932 = vlaneseq
    %v1933 = vshrl.u32 %v1932, 7
    %v1934 = vsub.s32 0, %v1933
    %v1935 = vrot.slane %v1912, %v1934
    %v1937 = vadd.f32 %v1930, %v1935
    %s1938 = scalar_lea.vmem [#allocation9], 192
    %v1939 = vld [vmem:[%s1938] sm:$0xff]
    %v1940 = vld [vmem:[%s1938 + $0x8] sm:$0xf]
    %v1941 = vld [vmem:[%s1938 + $0xc] sm:$0xff]
    %v1942 = vld [vmem:[%s1938 + $0x14] sm:$0xf]
    %v1943 = vld [vmem:[%s1938 + $0x18] sm:$0xff]
    %v1944 = vld [vmem:[%s1938 + $0x20] sm:$0xf]
    %v1945 = vld [vmem:[%s1938 + $0x24] sm:$0xff]
    %v1946 = vld [vmem:[%s1938 + $0x2c] sm:$0xf]
    %v1947 = vld [vmem:[%s1938 + $0x30] sm:$0xff]
    %v1948 = vld [vmem:[%s1938 + $0x38] sm:$0xf]
    %v1949 = vld [vmem:[%s1938 + $0x3c] sm:$0xff]
    %v1950 = vld [vmem:[%s1938 + $0x44] sm:$0xf]
    %v1951 = vld [vmem:[%s1938 + $0x48] sm:$0xff]
    %v1952 = vld [vmem:[%s1938 + $0x50] sm:$0xf]
    %v1953 = vld [vmem:[%s1938 + $0x54] sm:$0xff]
    %v1954 = vld [vmem:[%s1938 + $0x5c] sm:$0xf]
    %v1955 = vld [vmem:[%s1938 + $0x60] sm:$0xff]
    %v1956 = vld [vmem:[%s1938 + $0x68] sm:$0xf]
    %v1957 = vld [vmem:[%s1938 + $0x6c] sm:$0xff]
    %v1958 = vld [vmem:[%s1938 + $0x74] sm:$0xf]
    %v1959 = vld [vmem:[%s1938 + $0x78] sm:$0xff]
    %v1960 = vld [vmem:[%s1938 + $0x80] sm:$0xf]
    %v1961 = vld [vmem:[%s1938 + $0x84] sm:$0xff]
    %v1962 = vld [vmem:[%s1938 + $0x8c] sm:$0xf]
    %v1963 = vld [vmem:[%s1938 + $0x90] sm:$0xff]
    %v1964 = vld [vmem:[%s1938 + $0x98] sm:$0xf]
    %v1965 = vld [vmem:[%s1938 + $0x9c] sm:$0xff]
    %v1966 = vld [vmem:[%s1938 + $0xa4] sm:$0xf]
    %v1967 = vld [vmem:[%s1938 + $0xa8] sm:$0xff]
    %v1968 = vld [vmem:[%s1938 + $0xb0] sm:$0xf]
    %v1969 = vld [vmem:[%s1938 + $0xb4] sm:$0xff]
    %v1970 = vld [vmem:[%s1938 + $0xbc] sm:$0xf]
    %v1971 = vpack.c.bf16 %v1937, %v1937
    %s1972 = scalar_lea.vmem %s4, 3
    %v1973 = vld [vmem:[%s1972] sm:$0x7]
    %v1975 = vlaneseq
    %v1976 = vshrl.u32 %v1975, 7
    %v1977 = vsub.s32 0, %v1976
    %v1978 = vrot.slane %v1973, %v1977
    %v1979 = vlaneseq
    %v1980 = vshrl.u32 %v1979, 7
    %v1981 = vsub.s32 1, %v1980
    %v1982 = vrot.slane %v1973, %v1981
    %v1983 = vlaneseq
    %v1984 = vshrl.u32 %v1983, 7
    %v1985 = vsub.s32 2, %v1984
    %v1986 = vrot.slane %v1973, %v1985
    %v2022 = vunpack.c.l.b16 %v1939
    %v2023 = vunpack.c.h.b16 %v1939
    %v2024 = vunpack.c.l.b16 %v1940
    %v2025 = vunpack.c.l.b16 %v1941
    %v2026 = vunpack.c.h.b16 %v1941
    %v2027 = vunpack.c.l.b16 %v1942
    %v2028 = vunpack.c.l.b16 %v1943
    %v2029 = vunpack.c.h.b16 %v1943
    %v2030 = vunpack.c.l.b16 %v1944
    %v2031 = vunpack.c.l.b16 %v1945
    %v2032 = vunpack.c.h.b16 %v1945
    %v2033 = vunpack.c.l.b16 %v1946
    %v2034 = vunpack.c.l.b16 %v1947
    %v2035 = vunpack.c.h.b16 %v1947
    %v2036 = vunpack.c.l.b16 %v1948
    %v2037 = vunpack.c.l.b16 %v1949
    %v2038 = vunpack.c.h.b16 %v1949
    %v2039 = vunpack.c.l.b16 %v1950
    %v2040 = vunpack.c.l.b16 %v1951
    %v2041 = vunpack.c.h.b16 %v1951
    %v2042 = vunpack.c.l.b16 %v1952
    %v2043 = vunpack.c.l.b16 %v1953
    %v2044 = vunpack.c.h.b16 %v1953
    %v2045 = vunpack.c.l.b16 %v1954
    %v2046 = vunpack.c.l.b16 %v1955
    %v2047 = vunpack.c.h.b16 %v1955
    %v2048 = vunpack.c.l.b16 %v1956
    %v2049 = vunpack.c.l.b16 %v1957
    %v2050 = vunpack.c.h.b16 %v1957
    %v2051 = vunpack.c.l.b16 %v1958
    %v2052 = vunpack.c.l.b16 %v1959
    %v2053 = vunpack.c.h.b16 %v1959
    %v2054 = vunpack.c.l.b16 %v1960
    %v2055 = vunpack.c.l.b16 %v1961
    %v2056 = vunpack.c.h.b16 %v1961
    %v2057 = vunpack.c.l.b16 %v1962
    %v2058 = vunpack.c.l.b16 %v1963
    %v2059 = vunpack.c.h.b16 %v1963
    %v2060 = vunpack.c.l.b16 %v1964
    %v2061 = vunpack.c.l.b16 %v1965
    %v2062 = vunpack.c.h.b16 %v1965
    %v2063 = vunpack.c.l.b16 %v1966
    %v2064 = vunpack.c.l.b16 %v1967
    %v2065 = vunpack.c.h.b16 %v1967
    %v2066 = vunpack.c.l.b16 %v1968
    %v2067 = vunpack.c.l.b16 %v1969
    %v2068 = vunpack.c.h.b16 %v1969
    %v2069 = vunpack.c.l.b16 %v1970
    %v2070 = vpack.c.b16 %v2025, %v2022
    %v2071 = vpack.c.b16 %v2026, %v2023
    %v2072 = vpack.c.b16 %v2027, %v2024
    %v2073 = vpack.c.b16 %v2031, %v2028
    %v2074 = vpack.c.b16 %v2032, %v2029
    %v2075 = vpack.c.b16 %v2033, %v2030
    %v2076 = vpack.c.b16 %v2037, %v2034
    %v2077 = vpack.c.b16 %v2038, %v2035
    %v2078 = vpack.c.b16 %v2039, %v2036
    %v2079 = vpack.c.b16 %v2043, %v2040
    %v2080 = vpack.c.b16 %v2044, %v2041
    %v2081 = vpack.c.b16 %v2045, %v2042
    %v2082 = vpack.c.b16 %v2049, %v2046
    %v2083 = vpack.c.b16 %v2050, %v2047
    %v2084 = vpack.c.b16 %v2051, %v2048
    %v2085 = vpack.c.b16 %v2055, %v2052
    %v2086 = vpack.c.b16 %v2056, %v2053
    %v2087 = vpack.c.b16 %v2057, %v2054
    %v2088 = vpack.c.b16 %v2061, %v2058
    %v2089 = vpack.c.b16 %v2062, %v2059
    %v2090 = vpack.c.b16 %v2063, %v2060
    %v2091 = vpack.c.b16 %v2067, %v2064
    %v2092 = vpack.c.b16 %v2068, %v2065
    %v2093 = vpack.c.b16 %v2069, %v2066
    %2118 = vmatprep.subr.bf16.mxu0 %v2071
    %2119 = vmatpush1.bf16.msra.mxu0 %v2070
    %2120 = vmatprep.subr.bf16.mxu0 %v2074
    %2121 = vmatpush1.bf16.msra.mxu0 %v2073
    %2122 = vmatprep.subr.bf16.mxu0 %v2077
    %2123 = vmatpush1.bf16.msra.mxu0 %v2076
    %2124 = vmatprep.subr.bf16.mxu0 %v2080
    %2125 = vmatpush1.bf16.msra.mxu0 %v2079
    %2126 = vmatprep.subr.bf16.mxu0 %v2083
    %2127 = vmatpush1.bf16.msra.mxu0 %v2082
    %2128 = vmatprep.subr.bf16.mxu0 %v2086
    %2129 = vmatpush1.bf16.msra.mxu0 %v2085
    %2130 = vmatprep.subr.bf16.mxu0 %v2089
    %2131 = vmatpush1.bf16.msra.mxu0 %v2088
    %2132 = vmatprep.subr.bf16.mxu0 %v2092
    %2133 = vmatpush1.bf16.msra.mxu0 %v2091
    %2134 = vmatprep.subr.bf16.mxu0 0
    %2135 = vmatpush1.bf16.msra.mxu0 0
    %2136 = vmatprep.subr.bf16.mxu0 0
    %2137 = vmatpush1.bf16.msra.mxu0 0
    %2138 = vmatprep.subr.bf16.mxu0 0
    %2139 = vmatpush1.bf16.msra.mxu0 0
    %2140 = vmatprep.subr.bf16.mxu0 0
    %2141 = vmatpush1.bf16.msra.mxu0 0
    %2142 = vmatprep.subr.bf16.mxu0 0
    %2143 = vmatpush1.bf16.msra.mxu0 0
    %2144 = vmatprep.subr.bf16.mxu0 0
    %2145 = vmatpush1.bf16.msra.mxu0 0
    %2146 = vmatprep.subr.bf16.mxu0 0
    %2147 = vmatpush1.bf16.msra.mxu0 0
    %2148 = vmatprep.subr.bf16.mxu0 0
    %2149 = vmatpush1.bf16.msra.mxu0 0
    %2150 = vmatprep.mubr.bf16.mxu0 0
    %2151 = vmatmul.mubr.bf16.gmra.mrb[0].mxu0 %v1971
    %v2152 = vpop.f32.mrb[0].mxu0
    %v2153 = vadd.f32 %v1978, %v2152
    %v2154 = vpop.f32.mrb[0].mxu0
    %v2155 = vadd.f32 %v1982, %v2154
    %v2156 = vpop.f32.mrb[0].mxu0
    %v2157 = vpop.f32.mrb[0].mxu0
    %2158 = vdwg.mxu0
    %2159 = vmatprep.subr.bf16.mxu0 0
    %2160 = vmatpush1.bf16.msra.mxu0 %v2072
    %2161 = vmatprep.subr.bf16.mxu0 0
    %2162 = vmatpush1.bf16.msra.mxu0 %v2075
    %2163 = vmatprep.subr.bf16.mxu0 0
    %2164 = vmatpush1.bf16.msra.mxu0 %v2078
    %2165 = vmatprep.subr.bf16.mxu0 0
    %2166 = vmatpush1.bf16.msra.mxu0 %v2081
    %2167 = vmatprep.subr.bf16.mxu0 0
    %2168 = vmatpush1.bf16.msra.mxu0 %v2084
    %2169 = vmatprep.subr.bf16.mxu0 0
    %2170 = vmatpush1.bf16.msra.mxu0 %v2087
    %2171 = vmatprep.subr.bf16.mxu0 0
    %2172 = vmatpush1.bf16.msra.mxu0 %v2090
    %2173 = vmatprep.subr.bf16.mxu0 0
    %2174 = vmatpush1.bf16.msra.mxu0 %v2093
    %2175 = vmatprep.subr.bf16.mxu0 0
    %2176 = vmatpush1.bf16.msra.mxu0 0
    %2177 = vmatprep.subr.bf16.mxu0 0
    %2178 = vmatpush1.bf16.msra.mxu0 0
    %2179 = vmatprep.subr.bf16.mxu0 0
    %2180 = vmatpush1.bf16.msra.mxu0 0
    %2181 = vmatprep.subr.bf16.mxu0 0
    %2182 = vmatpush1.bf16.msra.mxu0 0
    %2183 = vmatprep.subr.bf16.mxu0 0
    %2184 = vmatpush1.bf16.msra.mxu0 0
    %2185 = vmatprep.subr.bf16.mxu0 0
    %2186 = vmatpush1.bf16.msra.mxu0 0
    %2187 = vmatprep.subr.bf16.mxu0 0
    %2188 = vmatpush1.bf16.msra.mxu0 0
    %2189 = vmatprep.subr.bf16.mxu0 0
    %2190 = vmatpush1.bf16.msra.mxu0 0
    %2191 = vmatprep.mubr.bf16.mxu0 0
    %2192 = vmatmul.mubr.bf16.gmra.mrb[0].mxu0 %v1971
    %v2193 = vpop.f32.mrb[0].mxu0
    %v2194 = vadd.f32 %v1986, %v2193
    %v2195 = vpop.f32.mrb[0].mxu0
    %v2196 = vpop.f32.mrb[0].mxu0
    %v2197 = vpop.f32.mrb[0].mxu0
    %2198 = vdwg.mxu0
    %v2199 = vmul.f32 %v2153, 0.17677669
    %v2201 = vsel %vm440, %v2199, 0
    %v2204 = vsel %vm440, %v2155, 0
    %2206 = vmatprep.subr.mxu0 0.0
    %2207 = vmatpush1.xpose.msra.mxu0 %v2204
    %2208 = vmatprep.subr.mxu0 0.0
    %2209 = vmatpush1.xpose.msra.mxu0 0.0
    %2210 = vmatprep.subr.mxu0 0.0
    %2211 = vmatpush1.xpose.msra.mxu0 0.0
    %2212 = vmatprep.subr.mxu0 0.0
    %2213 = vmatpush1.xpose.msra.mxu0 0.0
    %2214 = vmatprep.subr.mxu0 0.0
    %2215 = vmatpush1.xpose.msra.mxu0 0.0
    %2216 = vmatprep.subr.mxu0 0.0
    %2217 = vmatpush1.xpose.msra.mxu0 0.0
    %2218 = vmatprep.subr.mxu0 0.0
    %2219 = vmatpush1.xpose.msra.mxu0 0.0
    %2220 = vmatprep.subr.mxu0 0.0
    %2221 = vmatpush1.xpose.msra.mxu0 0.0
    %2222 = vmatprep.subr.mxu0 0.0
    %2223 = vmatpush1.xpose.msra.mxu0 0.0
    %2224 = vmatprep.subr.mxu0 0.0
    %2225 = vmatpush1.xpose.msra.mxu0 0.0
    %2226 = vmatprep.subr.mxu0 0.0
    %2227 = vmatpush1.xpose.msra.mxu0 0.0
    %2228 = vmatprep.subr.mxu0 0.0
    %2229 = vmatpush1.xpose.msra.mxu0 0.0
    %2230 = vmatprep.subr.mxu0 0.0
    %2231 = vmatpush1.xpose.msra.mxu0 0.0
    %2232 = vmatprep.subr.mxu0 0.0
    %2233 = vmatpush1.xpose.msra.mxu0 0.0
    %2234 = vmatprep.subr.mxu0 0.0
    %2235 = vmatpush1.xpose.msra.mxu0 0.0
    %2236 = vmatprep.subr.mxu0 0.0
    %2237 = vmatpush1.xpose.msra.mxu0 0.0
    %2238 = vmatprep.subr.mxu0 0.0
    %2239 = vmatpush1.xpose.msra.mxu0 0.0
    %2240 = vmatprep.subr.mxu0 0.0
    %2241 = vmatpush1.xpose.msra.mxu0 0.0
    %2242 = vmatprep.subr.mxu0 0.0
    %2243 = vmatpush1.xpose.msra.mxu0 0.0
    %2244 = vmatprep.subr.mxu0 0.0
    %2245 = vmatpush1.xpose.msra.mxu0 0.0
    %2246 = vmatprep.subr.mxu0 0.0
    %2247 = vmatpush1.xpose.msra.mxu0 0.0
    %2248 = vmatprep.subr.mxu0 0.0
    %2249 = vmatpush1.xpose.msra.mxu0 0.0
    %2250 = vmatprep.subr.mxu0 0.0
    %2251 = vmatpush1.xpose.msra.mxu0 0.0
    %2252 = vmatprep.subr.mxu0 0.0
    %2253 = vmatpush1.xpose.msra.mxu0 0.0
    %2254 = vmatprep.subr.mxu0 0.0
    %2255 = vmatpush1.xpose.msra.mxu0 0.0
    %2256 = vmatprep.subr.mxu0 0.0
    %2257 = vmatpush1.xpose.msra.mxu0 0.0
    %2258 = vmatprep.subr.mxu0 0.0
    %2259 = vmatpush1.xpose.msra.mxu0 0.0
    %2260 = vmatprep.subr.mxu0 0.0
    %2261 = vmatpush1.xpose.msra.mxu0 0.0
    %2262 = vmatprep.subr.mxu0 0.0
    %2263 = vmatpush1.xpose.msra.mxu0 0.0
    %2264 = vmatprep.subr.mxu0 0.0
    %2265 = vmatpush1.xpose.msra.mxu0 0.0
    %2266 = vmatprep.subr.mxu0 0.0
    %2267 = vmatpush1.xpose.msra.mxu0 0.0
    %2268 = vmatprep.subr.mxu0 0.0
    %2269 = vmatpush1.xpose.msra.mxu0 0.0
    %2270 = vmatprep.mubr.f32.mxu0 0.0
    %2271 = vmatmul.mubr.f32.gmra.mrb[0].mxu0 %v2201
    %v2272 = vpop.f32.mrb[0].mxu0
    %v2273 = vadd.f32 %v151, %v2272
    %v2274 = vpop.f32.mrb[0].mxu0
    %2275 = vdwg.mxu0
    %v2276 = vsel %vm517, %v2273, -inf
    %2277 = vmax.xlane.f32.xlu0 %v2276
    %v2278 = vpop.xlane.xlu0 %2277
    %v2279 = vsub.f32 %v2273, %v2278
    %v2280 = vmul.f32 %v2279, 1.442695
    %v2281 = vpow.pop %v2280
    %v2282 = vsel %vm517, %v2281, 0.0
    %2283 = vadd.xlane.f32.xlu0 %v2282
    %v2284 = vpop.xlane.xlu0 %2283
    %v2285 = vrcp.pop %v2284
    %v2286 = vmul.f32 %v2281, %v2285
    %v2288 = vsel %vm517, %v2286, 0
    %2290 = vmatprep.subr.mxu0 0.0
    %2291 = vmatpush1.msra.mxu0 %v2194
    %2292 = vmatprep.subr.mxu0 0.0
    %2293 = vmatpush1.msra.mxu0 0.0
    %2294 = vmatprep.subr.mxu0 0.0
    %2295 = vmatpush1.msra.mxu0 0.0
    %2296 = vmatprep.subr.mxu0 0.0
    %2297 = vmatpush1.msra.mxu0 0.0
    %2298 = vmatprep.subr.mxu0 0.0
    %2299 = vmatpush1.msra.mxu0 0.0
    %2300 = vmatprep.subr.mxu0 0.0
    %2301 = vmatpush1.msra.mxu0 0.0
    %2302 = vmatprep.subr.mxu0 0.0
    %2303 = vmatpush1.msra.mxu0 0.0
    %2304 = vmatprep.subr.mxu0 0.0
    %2305 = vmatpush1.msra.mxu0 0.0
    %2306 = vmatprep.subr.mxu0 0.0
    %2307 = vmatpush1.msra.mxu0 0.0
    %2308 = vmatprep.subr.mxu0 0.0
    %2309 = vmatpush1.msra.mxu0 0.0
    %2310 = vmatprep.subr.mxu0 0.0
    %2311 = vmatpush1.msra.mxu0 0.0
    %2312 = vmatprep.subr.mxu0 0.0
    %2313 = vmatpush1.msra.mxu0 0.0
    %2314 = vmatprep.subr.mxu0 0.0
    %2315 = vmatpush1.msra.mxu0 0.0
    %2316 = vmatprep.subr.mxu0 0.0
    %2317 = vmatpush1.msra.mxu0 0.0
    %2318 = vmatprep.subr.mxu0 0.0
    %2319 = vmatpush1.msra.mxu0 0.0
    %2320 = vmatprep.subr.mxu0 0.0
    %2321 = vmatpush1.msra.mxu0 0.0
    %2322 = vmatprep.subr.mxu0 0.0
    %2323 = vmatpush1.msra.mxu0 0.0
    %2324 = vmatprep.subr.mxu0 0.0
    %2325 = vmatpush1.msra.mxu0 0.0
    %2326 = vmatprep.subr.mxu0 0.0
    %2327 = vmatpush1.msra.mxu0 0.0
    %2328 = vmatprep.subr.mxu0 0.0
    %2329 = vmatpush1.msra.mxu0 0.0
    %2330 = vmatprep.subr.mxu0 0.0
    %2331 = vmatpush1.msra.mxu0 0.0
    %2332 = vmatprep.subr.mxu0 0.0
    %2333 = vmatpush1.msra.mxu0 0.0
    %2334 = vmatprep.subr.mxu0 0.0
    %2335 = vmatpush1.msra.mxu0 0.0
    %2336 = vmatprep.subr.mxu0 0.0
    %2337 = vmatpush1.msra.mxu0 0.0
    %2338 = vmatprep.subr.mxu0 0.0
    %2339 = vmatpush1.msra.mxu0 0.0
    %2340 = vmatprep.subr.mxu0 0.0
    %2341 = vmatpush1.msra.mxu0 0.0
    %2342 = vmatprep.subr.mxu0 0.0
    %2343 = vmatpush1.msra.mxu0 0.0
    %2344 = vmatprep.subr.mxu0 0.0
    %2345 = vmatpush1.msra.mxu0 0.0
    %2346 = vmatprep.subr.mxu0 0.0
    %2347 = vmatpush1.msra.mxu0 0.0
    %2348 = vmatprep.subr.mxu0 0.0
    %2349 = vmatpush1.msra.mxu0 0.0
    %2350 = vmatprep.subr.mxu0 0.0
    %2351 = vmatpush1.msra.mxu0 0.0
    %2352 = vmatprep.subr.mxu0 0.0
    %2353 = vmatpush1.msra.mxu0 0.0
    %2354 = vmatprep.mubr.f32.mxu0 0.0
    %2355 = vmatmul.mubr.f32.gmra.mrb[0].mxu0 %v2288
    %v2356 = vpop.f32.mrb[0].mxu0
    %v2357 = vadd.f32 0.0, %v2356
    %v2358 = vpop.f32.mrb[0].mxu0
    %2359 = vdwg.mxu0
    %2360 = vst.msk [vmem:[#allocation2] sm:$0xff] %vm440, %v2357
    %2361 = vrot.lane.b32.xlu0 %v2199, 96
    %v2362 = vpop.permute.xlu0 %2361
    %2363 = vrot.lane.b32.xlu0 %v2155, 96
    %v2364 = vpop.permute.xlu0 %2363
    %v2365 = vsel %vm440, %v2362, 0
    %v2367 = vsel %vm440, %v2364, 0
    %2369 = vmatprep.subr.mxu0 0.0
    %2370 = vmatpush1.xpose.msra.mxu0 %v2367
    %2371 = vmatprep.subr.mxu0 0.0
    %2372 = vmatpush1.xpose.msra.mxu0 0.0
    %2373 = vmatprep.subr.mxu0 0.0
    %2374 = vmatpush1.xpose.msra.mxu0 0.0
    %2375 = vmatprep.subr.mxu0 0.0
    %2376 = vmatpush1.xpose.msra.mxu0 0.0
    %2377 = vmatprep.subr.mxu0 0.0
    %2378 = vmatpush1.xpose.msra.mxu0 0.0
    %2379 = vmatprep.subr.mxu0 0.0
    %2380 = vmatpush1.xpose.msra.mxu0 0.0
    %2381 = vmatprep.subr.mxu0 0.0
    %2382 = vmatpush1.xpose.msra.mxu0 0.0
    %2383 = vmatprep.subr.mxu0 0.0
    %2384 = vmatpush1.xpose.msra.mxu0 0.0
    %2385 = vmatprep.subr.mxu0 0.0
    %2386 = vmatpush1.xpose.msra.mxu0 0.0
    %2387 = vmatprep.subr.mxu0 0.0
    %2388 = vmatpush1.xpose.msra.mxu0 0.0
    %2389 = vmatprep.subr.mxu0 0.0
    %2390 = vmatpush1.xpose.msra.mxu0 0.0
    %2391 = vmatprep.subr.mxu0 0.0
    %2392 = vmatpush1.xpose.msra.mxu0 0.0
    %2393 = vmatprep.subr.mxu0 0.0
    %2394 = vmatpush1.xpose.msra.mxu0 0.0
    %2395 = vmatprep.subr.mxu0 0.0
    %2396 = vmatpush1.xpose.msra.mxu0 0.0
    %2397 = vmatprep.subr.mxu0 0.0
    %2398 = vmatpush1.xpose.msra.mxu0 0.0
    %2399 = vmatprep.subr.mxu0 0.0
    %2400 = vmatpush1.xpose.msra.mxu0 0.0
    %2401 = vmatprep.subr.mxu0 0.0
    %2402 = vmatpush1.xpose.msra.mxu0 0.0
    %2403 = vmatprep.subr.mxu0 0.0
    %2404 = vmatpush1.xpose.msra.mxu0 0.0
    %2405 = vmatprep.subr.mxu0 0.0
    %2406 = vmatpush1.xpose.msra.mxu0 0.0
    %2407 = vmatprep.subr.mxu0 0.0
    %2408 = vmatpush1.xpose.msra.mxu0 0.0
    %2409 = vmatprep.subr.mxu0 0.0
    %2410 = vmatpush1.xpose.msra.mxu0 0.0
    %2411 = vmatprep.subr.mxu0 0.0
    %2412 = vmatpush1.xpose.msra.mxu0 0.0
    %2413 = vmatprep.subr.mxu0 0.0
    %2414 = vmatpush1.xpose.msra.mxu0 0.0
    %2415 = vmatprep.subr.mxu0 0.0
    %2416 = vmatpush1.xpose.msra.mxu0 0.0
    %2417 = vmatprep.subr.mxu0 0.0
    %2418 = vmatpush1.xpose.msra.mxu0 0.0
    %2419 = vmatprep.subr.mxu0 0.0
    %2420 = vmatpush1.xpose.msra.mxu0 0.0
    %2421 = vmatprep.subr.mxu0 0.0
    %2422 = vmatpush1.xpose.msra.mxu0 0.0
    %2423 = vmatprep.subr.mxu0 0.0
    %2424 = vmatpush1.xpose.msra.mxu0 0.0
    %2425 = vmatprep.subr.mxu0 0.0
    %2426 = vmatpush1.xpose.msra.mxu0 0.0
    %2427 = vmatprep.subr.mxu0 0.0
    %2428 = vmatpush1.xpose.msra.mxu0 0.0
    %2429 = vmatprep.subr.mxu0 0.0
    %2430 = vmatpush1.xpose.msra.mxu0 0.0
    %2431 = vmatprep.subr.mxu0 0.0
    %2432 = vmatpush1.xpose.msra.mxu0 0.0
    %2433 = vmatprep.mubr.f32.mxu0 0.0
    %2434 = vmatmul.mubr.f32.gmra.mrb[0].mxu0 %v2365
    %v2435 = vpop.f32.mrb[0].mxu0
    %v2436 = vadd.f32 %v151, %v2435
    %v2437 = vpop.f32.mrb[0].mxu0
    %2438 = vdwg.mxu0
    %v2439 = vsel %vm517, %v2436, -inf
    %2440 = vmax.xlane.f32.xlu0 %v2439
    %v2441 = vpop.xlane.xlu0 %2440
    %v2442 = vsub.f32 %v2436, %v2441
    %v2443 = vmul.f32 %v2442, 1.442695
    %v2444 = vpow.pop %v2443
    %v2445 = vsel %vm517, %v2444, 0.0
    %2446 = vadd.xlane.f32.xlu0 %v2445
    %v2447 = vpop.xlane.xlu0 %2446
    %v2448 = vrcp.pop %v2447
    %v2449 = vmul.f32 %v2444, %v2448
    %2451 = vrot.lane.b32.xlu0 %v2194, 96
    %v2452 = vpop.permute.xlu0 %2451
    %v2455 = vsel %vm517, %v2449, 0
    %2457 = vmatprep.subr.mxu0 0.0
    %2458 = vmatpush1.msra.mxu0 %v2452
    %2459 = vmatprep.subr.mxu0 0.0
    %2460 = vmatpush1.msra.mxu0 0.0
    %2461 = vmatprep.subr.mxu0 0.0
    %2462 = vmatpush1.msra.mxu0 0.0
    %2463 = vmatprep.subr.mxu0 0.0
    %2464 = vmatpush1.msra.mxu0 0.0
    %2465 = vmatprep.subr.mxu0 0.0
    %2466 = vmatpush1.msra.mxu0 0.0
    %2467 = vmatprep.subr.mxu0 0.0
    %2468 = vmatpush1.msra.mxu0 0.0
    %2469 = vmatprep.subr.mxu0 0.0
    %2470 = vmatpush1.msra.mxu0 0.0
    %2471 = vmatprep.subr.mxu0 0.0
    %2472 = vmatpush1.msra.mxu0 0.0
    %2473 = vmatprep.subr.mxu0 0.0
    %2474 = vmatpush1.msra.mxu0 0.0
    %2475 = vmatprep.subr.mxu0 0.0
    %2476 = vmatpush1.msra.mxu0 0.0
    %2477 = vmatprep.subr.mxu0 0.0
    %2478 = vmatpush1.msra.mxu0 0.0
    %2479 = vmatprep.subr.mxu0 0.0
    %2480 = vmatpush1.msra.mxu0 0.0
    %2481 = vmatprep.subr.mxu0 0.0
    %2482 = vmatpush1.msra.mxu0 0.0
    %2483 = vmatprep.subr.mxu0 0.0
    %2484 = vmatpush1.msra.mxu0 0.0
    %2485 = vmatprep.subr.mxu0 0.0
    %2486 = vmatpush1.msra.mxu0 0.0
    %2487 = vmatprep.subr.mxu0 0.0
    %2488 = vmatpush1.msra.mxu0 0.0
    %2489 = vmatprep.subr.mxu0 0.0
    %2490 = vmatpush1.msra.mxu0 0.0
    %2491 = vmatprep.subr.mxu0 0.0
    %2492 = vmatpush1.msra.mxu0 0.0
    %2493 = vmatprep.subr.mxu0 0.0
    %2494 = vmatpush1.msra.mxu0 0.0
    %2495 = vmatprep.subr.mxu0 0.0
    %2496 = vmatpush1.msra.mxu0 0.0
    %2497 = vmatprep.subr.mxu0 0.0
    %2498 = vmatpush1.msra.mxu0 0.0
    %2499 = vmatprep.subr.mxu0 0.0
    %2500 = vmatpush1.msra.mxu0 0.0
    %2501 = vmatprep.subr.mxu0 0.0
    %2502 = vmatpush1.msra.mxu0 0.0
    %2503 = vmatprep.subr.mxu0 0.0
    %2504 = vmatpush1.msra.mxu0 0.0
    %2505 = vmatprep.subr.mxu0 0.0
    %2506 = vmatpush1.msra.mxu0 0.0
    %2507 = vmatprep.subr.mxu0 0.0
    %2508 = vmatpush1.msra.mxu0 0.0
    %2509 = vmatprep.subr.mxu0 0.0
    %2510 = vmatpush1.msra.mxu0 0.0
    %2511 = vmatprep.subr.mxu0 0.0
    %2512 = vmatpush1.msra.mxu0 0.0
    %2513 = vmatprep.subr.mxu0 0.0
    %2514 = vmatpush1.msra.mxu0 0.0
    %2515 = vmatprep.subr.mxu0 0.0
    %2516 = vmatpush1.msra.mxu0 0.0
    %2517 = vmatprep.subr.mxu0 0.0
    %2518 = vmatpush1.msra.mxu0 0.0
    %2519 = vmatprep.subr.mxu0 0.0
    %2520 = vmatpush1.msra.mxu0 0.0
    %2521 = vmatprep.mubr.f32.mxu0 0.0
    %2522 = vmatmul.mubr.f32.gmra.mrb[0].mxu0 %v2455
    %v2523 = vpop.f32.mrb[0].mxu0
    %v2524 = vadd.f32 0.0, %v2523
    %v2525 = vpop.f32.mrb[0].mxu0
    %2526 = vdwg.mxu0
    %2528 = vrot.lane.b32.xlu0 %v2524, 32
    %v2529 = vpop.permute.xlu0 %2528
    %2531 = vst.msk [vmem:[#allocation2] sm:$0xff] %vm773, %v2529
    %2532 = vrot.lane.b32.xlu0 %v2199, 64
    %v2533 = vpop.permute.xlu0 %2532
    %2534 = vrot.lane.b32.xlu0 %v2155, 64
    %v2535 = vpop.permute.xlu0 %2534
    %v2536 = vsel %vm440, %v2533, 0
    %v2538 = vsel %vm440, %v2535, 0
    %2540 = vmatprep.subr.mxu0 0.0
    %2541 = vmatpush1.xpose.msra.mxu0 %v2538
    %2542 = vmatprep.subr.mxu0 0.0
    %2543 = vmatpush1.xpose.msra.mxu0 0.0
    %2544 = vmatprep.subr.mxu0 0.0
    %2545 = vmatpush1.xpose.msra.mxu0 0.0
    %2546 = vmatprep.subr.mxu0 0.0
    %2547 = vmatpush1.xpose.msra.mxu0 0.0
    %2548 = vmatprep.subr.mxu0 0.0
    %2549 = vmatpush1.xpose.msra.mxu0 0.0
    %2550 = vmatprep.subr.mxu0 0.0
    %2551 = vmatpush1.xpose.msra.mxu0 0.0
    %2552 = vmatprep.subr.mxu0 0.0
    %2553 = vmatpush1.xpose.msra.mxu0 0.0
    %2554 = vmatprep.subr.mxu0 0.0
    %2555 = vmatpush1.xpose.msra.mxu0 0.0
    %2556 = vmatprep.subr.mxu0 0.0
    %2557 = vmatpush1.xpose.msra.mxu0 0.0
    %2558 = vmatprep.subr.mxu0 0.0
    %2559 = vmatpush1.xpose.msra.mxu0 0.0
    %2560 = vmatprep.subr.mxu0 0.0
    %2561 = vmatpush1.xpose.msra.mxu0 0.0
    %2562 = vmatprep.subr.mxu0 0.0
    %2563 = vmatpush1.xpose.msra.mxu0 0.0
    %2564 = vmatprep.subr.mxu0 0.0
    %2565 = vmatpush1.xpose.msra.mxu0 0.0
    %2566 = vmatprep.subr.mxu0 0.0
    %2567 = vmatpush1.xpose.msra.mxu0 0.0
    %2568 = vmatprep.subr.mxu0 0.0
    %2569 = vmatpush1.xpose.msra.mxu0 0.0
    %2570 = vmatprep.subr.mxu0 0.0
    %2571 = vmatpush1.xpose.msra.mxu0 0.0
    %2572 = vmatprep.subr.mxu0 0.0
    %2573 = vmatpush1.xpose.msra.mxu0 0.0
    %2574 = vmatprep.subr.mxu0 0.0
    %2575 = vmatpush1.xpose.msra.mxu0 0.0
    %2576 = vmatprep.subr.mxu0 0.0
    %2577 = vmatpush1.xpose.msra.mxu0 0.0
    %2578 = vmatprep.subr.mxu0 0.0
    %2579 = vmatpush1.xpose.msra.mxu0 0.0
    %2580 = vmatprep.subr.mxu0 0.0
    %2581 = vmatpush1.xpose.msra.mxu0 0.0
    %2582 = vmatprep.subr.mxu0 0.0
    %2583 = vmatpush1.xpose.msra.mxu0 0.0
    %2584 = vmatprep.subr.mxu0 0.0
    %2585 = vmatpush1.xpose.msra.mxu0 0.0
    %2586 = vmatprep.subr.mxu0 0.0
    %2587 = vmatpush1.xpose.msra.mxu0 0.0
    %2588 = vmatprep.subr.mxu0 0.0
    %2589 = vmatpush1.xpose.msra.mxu0 0.0
    %2590 = vmatprep.subr.mxu0 0.0
    %2591 = vmatpush1.xpose.msra.mxu0 0.0
    %2592 = vmatprep.subr.mxu0 0.0
    %2593 = vmatpush1.xpose.msra.mxu0 0.0
    %2594 = vmatprep.subr.mxu0 0.0
    %2595 = vmatpush1.xpose.msra.mxu0 0.0
    %2596 = vmatprep.subr.mxu0 0.0
    %2597 = vmatpush1.xpose.msra.mxu0 0.0
    %2598 = vmatprep.subr.mxu0 0.0
    %2599 = vmatpush1.xpose.msra.mxu0 0.0
    %2600 = vmatprep.subr.mxu0 0.0
    %2601 = vmatpush1.xpose.msra.mxu0 0.0
    %2602 = vmatprep.subr.mxu0 0.0
    %2603 = vmatpush1.xpose.msra.mxu0 0.0
    %2604 = vmatprep.mubr.f32.mxu0 0.0
    %2605 = vmatmul.mubr.f32.gmra.mrb[0].mxu0 %v2536
    %v2606 = vpop.f32.mrb[0].mxu0
    %v2607 = vadd.f32 %v151, %v2606
    %v2608 = vpop.f32.mrb[0].mxu0
    %2609 = vdwg.mxu0
    %v2610 = vsel %vm517, %v2607, -inf
    %2611 = vmax.xlane.f32.xlu0 %v2610
    %v2612 = vpop.xlane.xlu0 %2611
    %v2613 = vsub.f32 %v2607, %v2612
    %v2614 = vmul.f32 %v2613, 1.442695
    %v2615 = vpow.pop %v2614
    %v2616 = vsel %vm517, %v2615, 0.0
    %2617 = vadd.xlane.f32.xlu0 %v2616
    %v2618 = vpop.xlane.xlu0 %2617
    %v2619 = vrcp.pop %v2618
    %v2620 = vmul.f32 %v2615, %v2619
    %2621 = vrot.lane.b32.xlu0 %v2194, 64
    %v2622 = vpop.permute.xlu0 %2621
    %v2625 = vsel %vm517, %v2620, 0
    %2627 = vmatprep.subr.mxu0 0.0
    %2628 = vmatpush1.msra.mxu0 %v2622
    %2629 = vmatprep.subr.mxu0 0.0
    %2630 = vmatpush1.msra.mxu0 0.0
    %2631 = vmatprep.subr.mxu0 0.0
    %2632 = vmatpush1.msra.mxu0 0.0
    %2633 = vmatprep.subr.mxu0 0.0
    %2634 = vmatpush1.msra.mxu0 0.0
    %2635 = vmatprep.subr.mxu0 0.0
    %2636 = vmatpush1.msra.mxu0 0.0
    %2637 = vmatprep.subr.mxu0 0.0
    %2638 = vmatpush1.msra.mxu0 0.0
    %2639 = vmatprep.subr.mxu0 0.0
    %2640 = vmatpush1.msra.mxu0 0.0
    %2641 = vmatprep.subr.mxu0 0.0
    %2642 = vmatpush1.msra.mxu0 0.0
    %2643 = vmatprep.subr.mxu0 0.0
    %2644 = vmatpush1.msra.mxu0 0.0
    %2645 = vmatprep.subr.mxu0 0.0
    %2646 = vmatpush1.msra.mxu0 0.0
    %2647 = vmatprep.subr.mxu0 0.0
    %2648 = vmatpush1.msra.mxu0 0.0
    %2649 = vmatprep.subr.mxu0 0.0
    %2650 = vmatpush1.msra.mxu0 0.0
    %2651 = vmatprep.subr.mxu0 0.0
    %2652 = vmatpush1.msra.mxu0 0.0
    %2653 = vmatprep.subr.mxu0 0.0
    %2654 = vmatpush1.msra.mxu0 0.0
    %2655 = vmatprep.subr.mxu0 0.0
    %2656 = vmatpush1.msra.mxu0 0.0
    %2657 = vmatprep.subr.mxu0 0.0
    %2658 = vmatpush1.msra.mxu0 0.0
    %2659 = vmatprep.subr.mxu0 0.0
    %2660 = vmatpush1.msra.mxu0 0.0
    %2661 = vmatprep.subr.mxu0 0.0
    %2662 = vmatpush1.msra.mxu0 0.0
    %2663 = vmatprep.subr.mxu0 0.0
    %2664 = vmatpush1.msra.mxu0 0.0
    %2665 = vmatprep.subr.mxu0 0.0
    %2666 = vmatpush1.msra.mxu0 0.0
    %2667 = vmatprep.subr.mxu0 0.0
    %2668 = vmatpush1.msra.mxu0 0.0
    %2669 = vmatprep.subr.mxu0 0.0
    %2670 = vmatpush1.msra.mxu0 0.0
    %2671 = vmatprep.subr.mxu0 0.0
    %2672 = vmatpush1.msra.mxu0 0.0
    %2673 = vmatprep.subr.mxu0 0.0
    %2674 = vmatpush1.msra.mxu0 0.0
    %2675 = vmatprep.subr.mxu0 0.0
    %2676 = vmatpush1.msra.mxu0 0.0
    %2677 = vmatprep.subr.mxu0 0.0
    %2678 = vmatpush1.msra.mxu0 0.0
    %2679 = vmatprep.subr.mxu0 0.0
    %2680 = vmatpush1.msra.mxu0 0.0
    %2681 = vmatprep.subr.mxu0 0.0
    %2682 = vmatpush1.msra.mxu0 0.0
    %2683 = vmatprep.subr.mxu0 0.0
    %2684 = vmatpush1.msra.mxu0 0.0
    %2685 = vmatprep.subr.mxu0 0.0
    %2686 = vmatpush1.msra.mxu0 0.0
    %2687 = vmatprep.subr.mxu0 0.0
    %2688 = vmatpush1.msra.mxu0 0.0
    %2689 = vmatprep.subr.mxu0 0.0
    %2690 = vmatpush1.msra.mxu0 0.0
    %2691 = vmatprep.mubr.f32.mxu0 0.0
    %2692 = vmatmul.mubr.f32.gmra.mrb[0].mxu0 %v2625
    %v2693 = vpop.f32.mrb[0].mxu0
    %v2694 = vadd.f32 0.0, %v2693
    %v2695 = vpop.f32.mrb[0].mxu0
    %2696 = vdwg.mxu0
    %2698 = vrot.lane.b32.xlu0 %v2694, 64
    %v2699 = vpop.permute.xlu0 %2698
    %2701 = vst.msk [vmem:[#allocation2] sm:$0xff] %vm944, %v2699
    %2702 = vrot.lane.b32.xlu0 %v2199, 32
    %v2703 = vpop.permute.xlu0 %2702
    %2704 = vrot.lane.b32.xlu0 %v2155, 32
    %v2705 = vpop.permute.xlu0 %2704
    %v2706 = vsel %vm440, %v2703, 0
    %v2708 = vsel %vm440, %v2705, 0
    %2710 = vmatprep.subr.mxu0 0.0
    %2711 = vmatpush1.xpose.msra.mxu0 %v2708
    %2712 = vmatprep.subr.mxu0 0.0
    %2713 = vmatpush1.xpose.msra.mxu0 0.0
    %2714 = vmatprep.subr.mxu0 0.0
    %2715 = vmatpush1.xpose.msra.mxu0 0.0
    %2716 = vmatprep.subr.mxu0 0.0
    %2717 = vmatpush1.xpose.msra.mxu0 0.0
    %2718 = vmatprep.subr.mxu0 0.0
    %2719 = vmatpush1.xpose.msra.mxu0 0.0
    %2720 = vmatprep.subr.mxu0 0.0
    %2721 = vmatpush1.xpose.msra.mxu0 0.0
    %2722 = vmatprep.subr.mxu0 0.0
    %2723 = vmatpush1.xpose.msra.mxu0 0.0
    %2724 = vmatprep.subr.mxu0 0.0
    %2725 = vmatpush1.xpose.msra.mxu0 0.0
    %2726 = vmatprep.subr.mxu0 0.0
    %2727 = vmatpush1.xpose.msra.mxu0 0.0
    %2728 = vmatprep.subr.mxu0 0.0
    %2729 = vmatpush1.xpose.msra.mxu0 0.0
    %2730 = vmatprep.subr.mxu0 0.0
    %2731 = vmatpush1.xpose.msra.mxu0 0.0
    %2732 = vmatprep.subr.mxu0 0.0
    %2733 = vmatpush1.xpose.msra.mxu0 0.0
    %2734 = vmatprep.subr.mxu0 0.0
    %2735 = vmatpush1.xpose.msra.mxu0 0.0
    %2736 = vmatprep.subr.mxu0 0.0
    %2737 = vmatpush1.xpose.msra.mxu0 0.0
    %2738 = vmatprep.subr.mxu0 0.0
    %2739 = vmatpush1.xpose.msra.mxu0 0.0
    %2740 = vmatprep.subr.mxu0 0.0
    %2741 = vmatpush1.xpose.msra.mxu0 0.0
    %2742 = vmatprep.subr.mxu0 0.0
    %2743 = vmatpush1.xpose.msra.mxu0 0.0
    %2744 = vmatprep.subr.mxu0 0.0
    %2745 = vmatpush1.xpose.msra.mxu0 0.0
    %2746 = vmatprep.subr.mxu0 0.0
    %2747 = vmatpush1.xpose.msra.mxu0 0.0
    %2748 = vmatprep.subr.mxu0 0.0
    %2749 = vmatpush1.xpose.msra.mxu0 0.0
    %2750 = vmatprep.subr.mxu0 0.0
    %2751 = vmatpush1.xpose.msra.mxu0 0.0
    %2752 = vmatprep.subr.mxu0 0.0
    %2753 = vmatpush1.xpose.msra.mxu0 0.0
    %2754 = vmatprep.subr.mxu0 0.0
    %2755 = vmatpush1.xpose.msra.mxu0 0.0
    %2756 = vmatprep.subr.mxu0 0.0
    %2757 = vmatpush1.xpose.msra.mxu0 0.0
    %2758 = vmatprep.subr.mxu0 0.0
    %2759 = vmatpush1.xpose.msra.mxu0 0.0
    %2760 = vmatprep.subr.mxu0 0.0
    %2761 = vmatpush1.xpose.msra.mxu0 0.0
    %2762 = vmatprep.subr.mxu0 0.0
    %2763 = vmatpush1.xpose.msra.mxu0 0.0
    %2764 = vmatprep.subr.mxu0 0.0
    %2765 = vmatpush1.xpose.msra.mxu0 0.0
    %2766 = vmatprep.subr.mxu0 0.0
    %2767 = vmatpush1.xpose.msra.mxu0 0.0
    %2768 = vmatprep.subr.mxu0 0.0
    %2769 = vmatpush1.xpose.msra.mxu0 0.0
    %2770 = vmatprep.subr.mxu0 0.0
    %2771 = vmatpush1.xpose.msra.mxu0 0.0
    %2772 = vmatprep.subr.mxu0 0.0
    %2773 = vmatpush1.xpose.msra.mxu0 0.0
    %2774 = vmatprep.mubr.f32.mxu0 0.0
    %2775 = vmatmul.mubr.f32.gmra.mrb[0].mxu0 %v2706
    %v2776 = vpop.f32.mrb[0].mxu0
    %v2777 = vadd.f32 %v151, %v2776
    %v2778 = vpop.f32.mrb[0].mxu0
    %2779 = vdwg.mxu0
    %v2780 = vsel %vm517, %v2777, -inf
    %2781 = vmax.xlane.f32.xlu0 %v2780
    %v2782 = vpop.xlane.xlu0 %2781
    %v2783 = vsub.f32 %v2777, %v2782
    %v2784 = vmul.f32 %v2783, 1.442695
    %v2785 = vpow.pop %v2784
    %v2786 = vsel %vm517, %v2785, 0.0
    %2787 = vadd.xlane.f32.xlu0 %v2786
    %v2788 = vpop.xlane.xlu0 %2787
    %v2789 = vrcp.pop %v2788
    %v2790 = vmul.f32 %v2785, %v2789
    %2791 = vrot.lane.b32.xlu0 %v2194, 32
    %v2792 = vpop.permute.xlu0 %2791
    %v2795 = vsel %vm517, %v2790, 0
    %2797 = vmatprep.subr.mxu0 0.0
    %2798 = vmatpush1.msra.mxu0 %v2792
    %2799 = vmatprep.subr.mxu0 0.0
    %2800 = vmatpush1.msra.mxu0 0.0
    %2801 = vmatprep.subr.mxu0 0.0
    %2802 = vmatpush1.msra.mxu0 0.0
    %2803 = vmatprep.subr.mxu0 0.0
    %2804 = vmatpush1.msra.mxu0 0.0
    %2805 = vmatprep.subr.mxu0 0.0
    %2806 = vmatpush1.msra.mxu0 0.0
    %2807 = vmatprep.subr.mxu0 0.0
    %2808 = vmatpush1.msra.mxu0 0.0
    %2809 = vmatprep.subr.mxu0 0.0
    %2810 = vmatpush1.msra.mxu0 0.0
    %2811 = vmatprep.subr.mxu0 0.0
    %2812 = vmatpush1.msra.mxu0 0.0
    %2813 = vmatprep.subr.mxu0 0.0
    %2814 = vmatpush1.msra.mxu0 0.0
    %2815 = vmatprep.subr.mxu0 0.0
    %2816 = vmatpush1.msra.mxu0 0.0
    %2817 = vmatprep.subr.mxu0 0.0
    %2818 = vmatpush1.msra.mxu0 0.0
    %2819 = vmatprep.subr.mxu0 0.0
    %2820 = vmatpush1.msra.mxu0 0.0
    %2821 = vmatprep.subr.mxu0 0.0
    %2822 = vmatpush1.msra.mxu0 0.0
    %2823 = vmatprep.subr.mxu0 0.0
    %2824 = vmatpush1.msra.mxu0 0.0
    %2825 = vmatprep.subr.mxu0 0.0
    %2826 = vmatpush1.msra.mxu0 0.0
    %2827 = vmatprep.subr.mxu0 0.0
    %2828 = vmatpush1.msra.mxu0 0.0
    %2829 = vmatprep.subr.mxu0 0.0
    %2830 = vmatpush1.msra.mxu0 0.0
    %2831 = vmatprep.subr.mxu0 0.0
    %2832 = vmatpush1.msra.mxu0 0.0
    %2833 = vmatprep.subr.mxu0 0.0
    %2834 = vmatpush1.msra.mxu0 0.0
    %2835 = vmatprep.subr.mxu0 0.0
    %2836 = vmatpush1.msra.mxu0 0.0
    %2837 = vmatprep.subr.mxu0 0.0
    %2838 = vmatpush1.msra.mxu0 0.0
    %2839 = vmatprep.subr.mxu0 0.0
    %2840 = vmatpush1.msra.mxu0 0.0
    %2841 = vmatprep.subr.mxu0 0.0
    %2842 = vmatpush1.msra.mxu0 0.0
    %2843 = vmatprep.subr.mxu0 0.0
    %2844 = vmatpush1.msra.mxu0 0.0
    %2845 = vmatprep.subr.mxu0 0.0
    %2846 = vmatpush1.msra.mxu0 0.0
    %2847 = vmatprep.subr.mxu0 0.0
    %2848 = vmatpush1.msra.mxu0 0.0
    %2849 = vmatprep.subr.mxu0 0.0
    %2850 = vmatpush1.msra.mxu0 0.0
    %2851 = vmatprep.subr.mxu0 0.0
    %2852 = vmatpush1.msra.mxu0 0.0
    %2853 = vmatprep.subr.mxu0 0.0
    %2854 = vmatpush1.msra.mxu0 0.0
    %2855 = vmatprep.subr.mxu0 0.0
    %2856 = vmatpush1.msra.mxu0 0.0
    %2857 = vmatprep.subr.mxu0 0.0
    %2858 = vmatpush1.msra.mxu0 0.0
    %2859 = vmatprep.subr.mxu0 0.0
    %2860 = vmatpush1.msra.mxu0 0.0
    %2861 = vmatprep.mubr.f32.mxu0 0.0
    %2862 = vmatmul.mubr.f32.gmra.mrb[0].mxu0 %v2795
    %v2863 = vpop.f32.mrb[0].mxu0
    %v2864 = vadd.f32 0.0, %v2863
    %v2865 = vpop.f32.mrb[0].mxu0
    %2866 = vdwg.mxu0
    %2868 = vrot.lane.b32.xlu0 %v2864, 96
    %v2869 = vpop.permute.xlu0 %2868
    %2871 = vst.msk [vmem:[#allocation2] sm:$0xff] %vm1115, %v2869
    %v2872 = vld [vmem:[#allocation2] sm:$0xff]
    %s2873 = scalar_lea.vmem [#allocation11], 64
    %v2874 = vld [vmem:[%s2873] sm:$0xf]
    %v2875 = vld [vmem:[%s2873 + $0x4] sm:$0xf]
    %v2876 = vld [vmem:[%s2873 + $0x8] sm:$0xf]
    %v2877 = vld [vmem:[%s2873 + $0xc] sm:$0xf]
    %v2878 = vld [vmem:[%s2873 + $0x10] sm:$0xf]
    %v2879 = vld [vmem:[%s2873 + $0x14] sm:$0xf]
    %v2880 = vld [vmem:[%s2873 + $0x18] sm:$0xf]
    %v2881 = vld [vmem:[%s2873 + $0x1c] sm:$0xf]
    %v2882 = vld [vmem:[%s2873 + $0x20] sm:$0xf]
    %v2883 = vld [vmem:[%s2873 + $0x24] sm:$0xf]
    %v2884 = vld [vmem:[%s2873 + $0x28] sm:$0xf]
    %v2885 = vld [vmem:[%s2873 + $0x2c] sm:$0xf]
    %v2886 = vld [vmem:[%s2873 + $0x30] sm:$0xf]
    %v2887 = vld [vmem:[%s2873 + $0x34] sm:$0xf]
    %v2888 = vld [vmem:[%s2873 + $0x38] sm:$0xf]
    %v2889 = vld [vmem:[%s2873 + $0x3c] sm:$0xf]
    %v2890 = vpack.c.bf16 %v2872, %v2872
    %v2907 = vunpack.c.l.b16 %v2874
    %v2908 = vunpack.c.l.b16 %v2875
    %v2909 = vunpack.c.l.b16 %v2876
    %v2910 = vunpack.c.l.b16 %v2877
    %v2911 = vunpack.c.l.b16 %v2878
    %v2912 = vunpack.c.l.b16 %v2879
    %v2913 = vunpack.c.l.b16 %v2880
    %v2914 = vunpack.c.l.b16 %v2881
    %v2915 = vunpack.c.l.b16 %v2882
    %v2916 = vunpack.c.l.b16 %v2883
    %v2917 = vunpack.c.l.b16 %v2884
    %v2918 = vunpack.c.l.b16 %v2885
    %v2919 = vunpack.c.l.b16 %v2886
    %v2920 = vunpack.c.l.b16 %v2887
    %v2921 = vunpack.c.l.b16 %v2888
    %v2922 = vunpack.c.l.b16 %v2889
    %v2923 = vpack.c.b16 %v2908, %v2907
    %v2924 = vpack.c.b16 %v2910, %v2909
    %v2925 = vpack.c.b16 %v2912, %v2911
    %v2926 = vpack.c.b16 %v2914, %v2913
    %v2927 = vpack.c.b16 %v2916, %v2915
    %v2928 = vpack.c.b16 %v2918, %v2917
    %v2929 = vpack.c.b16 %v2920, %v2919
    %v2930 = vpack.c.b16 %v2922, %v2921
    %2939 = vmatprep.subr.bf16.mxu0 0
    %2940 = vmatpush1.bf16.msra.mxu0 %v2923
    %2941 = vmatprep.subr.bf16.mxu0 0
    %2942 = vmatpush1.bf16.msra.mxu0 %v2924
    %2943 = vmatprep.subr.bf16.mxu0 0
    %2944 = vmatpush1.bf16.msra.mxu0 %v2925
    %2945 = vmatprep.subr.bf16.mxu0 0
    %2946 = vmatpush1.bf16.msra.mxu0 %v2926
    %2947 = vmatprep.subr.bf16.mxu0 0
    %2948 = vmatpush1.bf16.msra.mxu0 %v2927
    %2949 = vmatprep.subr.bf16.mxu0 0
    %2950 = vmatpush1.bf16.msra.mxu0 %v2928
    %2951 = vmatprep.subr.bf16.mxu0 0
    %2952 = vmatpush1.bf16.msra.mxu0 %v2929
    %2953 = vmatprep.subr.bf16.mxu0 0
    %2954 = vmatpush1.bf16.msra.mxu0 %v2930
    %2955 = vmatprep.subr.bf16.mxu0 0
    %2956 = vmatpush1.bf16.msra.mxu0 0
    %2957 = vmatprep.subr.bf16.mxu0 0
    %2958 = vmatpush1.bf16.msra.mxu0 0
    %2959 = vmatprep.subr.bf16.mxu0 0
    %2960 = vmatpush1.bf16.msra.mxu0 0
    %2961 = vmatprep.subr.bf16.mxu0 0
    %2962 = vmatpush1.bf16.msra.mxu0 0
    %2963 = vmatprep.subr.bf16.mxu0 0
    %2964 = vmatpush1.bf16.msra.mxu0 0
    %2965 = vmatprep.subr.bf16.mxu0 0
    %2966 = vmatpush1.bf16.msra.mxu0 0
    %2967 = vmatprep.subr.bf16.mxu0 0
    %2968 = vmatpush1.bf16.msra.mxu0 0
    %2969 = vmatprep.subr.bf16.mxu0 0
    %2970 = vmatpush1.bf16.msra.mxu0 0
    %2971 = vmatprep.mubr.bf16.mxu0 0
    %2972 = vmatmul.mubr.bf16.gmra.mrb[0].mxu0 %v2890
    %v2973 = vpop.f32.mrb[0].mxu0
    %v2974 = vadd.f32 0.0, %v2973
    %v2975 = vpop.f32.mrb[0].mxu0
    %v2976 = vpop.f32.mrb[0].mxu0
    %v2977 = vpop.f32.mrb[0].mxu0
    %2978 = vdwg.mxu0
    %v2979 = vadd.f32 %v1908, %v2974
    %s2980 = scalar_lea.vmem %s6, 1
    %v2981 = vld [vmem:[%s2980] sm:$0x1]
    %v2983 = vlaneseq
    %v2984 = vshrl.u32 %v2983, 7
    %v2985 = vsub.s32 0, %v2984
    %v2986 = vrot.slane %v2981, %v2985
    %v2988 = vadd.f32 %v2979, %v2986
    %s2989 = scalar_lea.vmem %s7, 1
    %v2990 = vld [vmem:[%s2989] sm:$0x1]
    %s2991 = scalar_lea.vmem %s8, 1
    %v2992 = vld [vmem:[%s2991] sm:$0x1]
    %2993 = vadd.xlane.f32.xlu0 %v2988
    %v2994 = vpop.xlane.xlu0 %2993
    %v2995 = vmul.f32 %v2994, %v156
    %v2996 = vsub.f32 %v2988, %v2995
    %v2997 = vmul.f32 %v2996, %v2996
    %2998 = vadd.xlane.f32.xlu0 %v2997
    %v2999 = vpop.xlane.xlu0 %2998
    %v3000 = vmul.f32 %v2999, %v156
    %v3001 = vadd.f32 %v3000, 1e-05
    %v3002 = vrsqrt.pop %v3001
    %v3003 = vmul.f32 %v2996, %v3002
    %v3005 = vlaneseq
    %v3006 = vshrl.u32 %v3005, 7
    %v3007 = vsub.s32 0, %v3006
    %v3008 = vrot.slane %v2990, %v3007
    %v3010 = vmul.f32 %v3003, %v3008
    %v3012 = vlaneseq
    %v3013 = vshrl.u32 %v3012, 7
    %v3014 = vsub.s32 0, %v3013
    %v3015 = vrot.slane %v2992, %v3014
    %v3017 = vadd.f32 %v3010, %v3015
    %s3018 = scalar_lea.vmem [#allocation12], 256
    %v3019 = vld [vmem:[%s3018] sm:$0xff]
    %v3020 = vld [vmem:[%s3018 + $0x8] sm:$0xff]
    %v3021 = vld [vmem:[%s3018 + $0x10] sm:$0xff]
    %v3022 = vld [vmem:[%s3018 + $0x18] sm:$0xff]
    %v3023 = vld [vmem:[%s3018 + $0x20] sm:$0xff]
    %v3024 = vld [vmem:[%s3018 + $0x28] sm:$0xff]
    %v3025 = vld [vmem:[%s3018 + $0x30] sm:$0xff]
    %v3026 = vld [vmem:[%s3018 + $0x38] sm:$0xff]
    %v3027 = vld [vmem:[%s3018 + $0x40] sm:$0xff]
    %v3028 = vld [vmem:[%s3018 + $0x48] sm:$0xff]
    %v3029 = vld [vmem:[%s3018 + $0x50] sm:$0xff]
    %v3030 = vld [vmem:[%s3018 + $0x58] sm:$0xff]
    %v3031 = vld [vmem:[%s3018 + $0x60] sm:$0xff]
    %v3032 = vld [vmem:[%s3018 + $0x68] sm:$0xff]
    %v3033 = vld [vmem:[%s3018 + $0x70] sm:$0xff]
    %v3034 = vld [vmem:[%s3018 + $0x78] sm:$0xff]
    %v3035 = vld [vmem:[%s3018 + $0x80] sm:$0xff]
    %v3036 = vld [vmem:[%s3018 + $0x88] sm:$0xff]
    %v3037 = vld [vmem:[%s3018 + $0x90] sm:$0xff]
    %v3038 = vld [vmem:[%s3018 + $0x98] sm:$0xff]
    %v3039 = vld [vmem:[%s3018 + $0xa0] sm:$0xff]
    %v3040 = vld [vmem:[%s3018 + $0xa8] sm:$0xff]
    %v3041 = vld [vmem:[%s3018 + $0xb0] sm:$0xff]
    %v3042 = vld [vmem:[%s3018 + $0xb8] sm:$0xff]
    %v3043 = vld [vmem:[%s3018 + $0xc0] sm:$0xff]
    %v3044 = vld [vmem:[%s3018 + $0xc8] sm:$0xff]
    %v3045 = vld [vmem:[%s3018 + $0xd0] sm:$0xff]
    %v3046 = vld [vmem:[%s3018 + $0xd8] sm:$0xff]
    %v3047 = vld [vmem:[%s3018 + $0xe0] sm:$0xff]
    %v3048 = vld [vmem:[%s3018 + $0xe8] sm:$0xff]
    %v3049 = vld [vmem:[%s3018 + $0xf0] sm:$0xff]
    %v3050 = vld [vmem:[%s3018 + $0xf8] sm:$0xff]
    %v3051 = vpack.c.bf16 %v3017, %v3017
    %s3052 = scalar_lea.vmem %s10, 4
    %v3053 = vld [vmem:[%s3052] sm:$0xf]
    %v3055 = vlaneseq
    %v3056 = vshrl.u32 %v3055, 7
    %v3057 = vsub.s32 0, %v3056
    %v3058 = vrot.slane %v3053, %v3057
    %v3059 = vlaneseq
    %v3060 = vshrl.u32 %v3059, 7
    %v3061 = vsub.s32 1, %v3060
    %v3062 = vrot.slane %v3053, %v3061
    %v3063 = vlaneseq
    %v3064 = vshrl.u32 %v3063, 7
    %v3065 = vsub.s32 2, %v3064
    %v3066 = vrot.slane %v3053, %v3065
    %v3067 = vlaneseq
    %v3068 = vshrl.u32 %v3067, 7
    %v3069 = vsub.s32 3, %v3068
    %v3070 = vrot.slane %v3053, %v3069
    %v3107 = vunpack.c.l.b16 %v3019
    %v3108 = vunpack.c.h.b16 %v3019
    %v3109 = vunpack.c.l.b16 %v3020
    %v3110 = vunpack.c.h.b16 %v3020
    %v3111 = vunpack.c.l.b16 %v3021
    %v3112 = vunpack.c.h.b16 %v3021
    %v3113 = vunpack.c.l.b16 %v3022
    %v3114 = vunpack.c.h.b16 %v3022
    %v3115 = vunpack.c.l.b16 %v3023
    %v3116 = vunpack.c.h.b16 %v3023
    %v3117 = vunpack.c.l.b16 %v3024
    %v3118 = vunpack.c.h.b16 %v3024
    %v3119 = vunpack.c.l.b16 %v3025
    %v3120 = vunpack.c.h.b16 %v3025
    %v3121 = vunpack.c.l.b16 %v3026
    %v3122 = vunpack.c.h.b16 %v3026
    %v3123 = vunpack.c.l.b16 %v3027
    %v3124 = vunpack.c.h.b16 %v3027
    %v3125 = vunpack.c.l.b16 %v3028
    %v3126 = vunpack.c.h.b16 %v3028
    %v3127 = vunpack.c.l.b16 %v3029
    %v3128 = vunpack.c.h.b16 %v3029
    %v3129 = vunpack.c.l.b16 %v3030
    %v3130 = vunpack.c.h.b16 %v3030
    %v3131 = vunpack.c.l.b16 %v3031
    %v3132 = vunpack.c.h.b16 %v3031
    %v3133 = vunpack.c.l.b16 %v3032
    %v3134 = vunpack.c.h.b16 %v3032
    %v3135 = vunpack.c.l.b16 %v3033
    %v3136 = vunpack.c.h.b16 %v3033
    %v3137 = vunpack.c.l.b16 %v3034
    %v3138 = vunpack.c.h.b16 %v3034
    %v3139 = vunpack.c.l.b16 %v3035
    %v3140 = vunpack.c.h.b16 %v3035
    %v3141 = vunpack.c.l.b16 %v3036
    %v3142 = vunpack.c.h.b16 %v3036
    %v3143 = vunpack.c.l.b16 %v3037
    %v3144 = vunpack.c.h.b16 %v3037
    %v3145 = vunpack.c.l.b16 %v3038
    %v3146 = vunpack.c.h.b16 %v3038
    %v3147 = vunpack.c.l.b16 %v3039
    %v3148 = vunpack.c.h.b16 %v3039
    %v3149 = vunpack.c.l.b16 %v3040
    %v3150 = vunpack.c.h.b16 %v3040
    %v3151 = vunpack.c.l.b16 %v3041
    %v3152 = vunpack.c.h.b16 %v3041
    %v3153 = vunpack.c.l.b16 %v3042
    %v3154 = vunpack.c.h.b16 %v3042
    %v3155 = vunpack.c.l.b16 %v3043
    %v3156 = vunpack.c.h.b16 %v3043
    %v3157 = vunpack.c.l.b16 %v3044
    %v3158 = vunpack.c.h.b16 %v3044
    %v3159 = vunpack.c.l.b16 %v3045
    %v3160 = vunpack.c.h.b16 %v3045
    %v3161 = vunpack.c.l.b16 %v3046
    %v3162 = vunpack.c.h.b16 %v3046
    %v3163 = vunpack.c.l.b16 %v3047
    %v3164 = vunpack.c.h.b16 %v3047
    %v3165 = vunpack.c.l.b16 %v3048
    %v3166 = vunpack.c.h.b16 %v3048
    %v3167 = vunpack.c.l.b16 %v3049
    %v3168 = vunpack.c.h.b16 %v3049
    %v3169 = vunpack.c.l.b16 %v3050
    %v3170 = vunpack.c.h.b16 %v3050
    %v3171 = vpack.c.b16 %v3111, %v3107
    %v3172 = vpack.c.b16 %v3112, %v3108
    %v3173 = vpack.c.b16 %v3113, %v3109
    %v3174 = vpack.c.b16 %v3114, %v3110
    %v3175 = vpack.c.b16 %v3119, %v3115
    %v3176 = vpack.c.b16 %v3120, %v3116
    %v3177 = vpack.c.b16 %v3121, %v3117
    %v3178 = vpack.c.b16 %v3122, %v3118
    %v3179 = vpack.c.b16 %v3127, %v3123
    %v3180 = vpack.c.b16 %v3128, %v3124
    %v3181 = vpack.c.b16 %v3129, %v3125
    %v3182 = vpack.c.b16 %v3130, %v3126
    %v3183 = vpack.c.b16 %v3135, %v3131
    %v3184 = vpack.c.b16 %v3136, %v3132
    %v3185 = vpack.c.b16 %v3137, %v3133
    %v3186 = vpack.c.b16 %v3138, %v3134
    %v3187 = vpack.c.b16 %v3143, %v3139
    %v3188 = vpack.c.b16 %v3144, %v3140
    %v3189 = vpack.c.b16 %v3145, %v3141
    %v3190 = vpack.c.b16 %v3146, %v3142
    %v3191 = vpack.c.b16 %v3151, %v3147
    %v3192 = vpack.c.b16 %v3152, %v3148
    %v3193 = vpack.c.b16 %v3153, %v3149
    %v3194 = vpack.c.b16 %v3154, %v3150
    %v3195 = vpack.c.b16 %v3159, %v3155
    %v3196 = vpack.c.b16 %v3160, %v3156
    %v3197 = vpack.c.b16 %v3161, %v3157
    %v3198 = vpack.c.b16 %v3162, %v3158
    %v3199 = vpack.c.b16 %v3167, %v3163
    %v3200 = vpack.c.b16 %v3168, %v3164
    %v3201 = vpack.c.b16 %v3169, %v3165
    %v3202 = vpack.c.b16 %v3170, %v3166
    %3235 = vmatprep.subr.bf16.mxu0 %v3172
    %3236 = vmatpush1.bf16.msra.mxu0 %v3171
    %3237 = vmatprep.subr.bf16.mxu0 %v3176
    %3238 = vmatpush1.bf16.msra.mxu0 %v3175
    %3239 = vmatprep.subr.bf16.mxu0 %v3180
    %3240 = vmatpush1.bf16.msra.mxu0 %v3179
    %3241 = vmatprep.subr.bf16.mxu0 %v3184
    %3242 = vmatpush1.bf16.msra.mxu0 %v3183
    %3243 = vmatprep.subr.bf16.mxu0 %v3188
    %3244 = vmatpush1.bf16.msra.mxu0 %v3187
    %3245 = vmatprep.subr.bf16.mxu0 %v3192
    %3246 = vmatpush1.bf16.msra.mxu0 %v3191
    %3247 = vmatprep.subr.bf16.mxu0 %v3196
    %3248 = vmatpush1.bf16.msra.mxu0 %v3195
    %3249 = vmatprep.subr.bf16.mxu0 %v3200
    %3250 = vmatpush1.bf16.msra.mxu0 %v3199
    %3251 = vmatprep.subr.bf16.mxu0 0
    %3252 = vmatpush1.bf16.msra.mxu0 0
    %3253 = vmatprep.subr.bf16.mxu0 0
    %3254 = vmatpush1.bf16.msra.mxu0 0
    %3255 = vmatprep.subr.bf16.mxu0 0
    %3256 = vmatpush1.bf16.msra.mxu0 0
    %3257 = vmatprep.subr.bf16.mxu0 0
    %3258 = vmatpush1.bf16.msra.mxu0 0
    %3259 = vmatprep.subr.bf16.mxu0 0
    %3260 = vmatpush1.bf16.msra.mxu0 0
    %3261 = vmatprep.subr.bf16.mxu0 0
    %3262 = vmatpush1.bf16.msra.mxu0 0
    %3263 = vmatprep.subr.bf16.mxu0 0
    %3264 = vmatpush1.bf16.msra.mxu0 0
    %3265 = vmatprep.subr.bf16.mxu0 0
    %3266 = vmatpush1.bf16.msra.mxu0 0
    %3267 = vmatprep.mubr.bf16.mxu0 0
    %3268 = vmatmul.mubr.bf16.gmra.mrb[0].mxu0 %v3051
    %v3269 = vpop.f32.mrb[0].mxu0
    %v3270 = vadd.f32 %v3058, %v3269
    %v3271 = vpop.f32.mrb[0].mxu0
    %v3272 = vadd.f32 %v3062, %v3271
    %v3273 = vpop.f32.mrb[0].mxu0
    %v3274 = vpop.f32.mrb[0].mxu0
    %3275 = vdwg.mxu0
    %3276 = vmatprep.subr.bf16.mxu0 %v3174
    %3277 = vmatpush1.bf16.msra.mxu0 %v3173
    %3278 = vmatprep.subr.bf16.mxu0 %v3178
    %3279 = vmatpush1.bf16.msra.mxu0 %v3177
    %3280 = vmatprep.subr.bf16.mxu0 %v3182
    %3281 = vmatpush1.bf16.msra.mxu0 %v3181
    %3282 = vmatprep.subr.bf16.mxu0 %v3186
    %3283 = vmatpush1.bf16.msra.mxu0 %v3185
    %3284 = vmatprep.subr.bf16.mxu0 %v3190
    %3285 = vmatpush1.bf16.msra.mxu0 %v3189
    %3286 = vmatprep.subr.bf16.mxu0 %v3194
    %3287 = vmatpush1.bf16.msra.mxu0 %v3193
    %3288 = vmatprep.subr.bf16.mxu0 %v3198
    %3289 = vmatpush1.bf16.msra.mxu0 %v3197
    %3290 = vmatprep.subr.bf16.mxu0 %v3202
    %3291 = vmatpush1.bf16.msra.mxu0 %v3201
    %3292 = vmatprep.subr.bf16.mxu0 0
    %3293 = vmatpush1.bf16.msra.mxu0 0
    %3294 = vmatprep.subr.bf16.mxu0 0
    %3295 = vmatpush1.bf16.msra.mxu0 0
    %3296 = vmatprep.subr.bf16.mxu0 0
    %3297 = vmatpush1.bf16.msra.mxu0 0
    %3298 = vmatprep.subr.bf16.mxu0 0
    %3299 = vmatpush1.bf16.msra.mxu0 0
    %3300 = vmatprep.subr.bf16.mxu0 0
    %3301 = vmatpush1.bf16.msra.mxu0 0
    %3302 = vmatprep.subr.bf16.mxu0 0
    %3303 = vmatpush1.bf16.msra.mxu0 0
    %3304 = vmatprep.subr.bf16.mxu0 0
    %3305 = vmatpush1.bf16.msra.mxu0 0
    %3306 = vmatprep.subr.bf16.mxu0 0
    %3307 = vmatpush1.bf16.msra.mxu0 0
    %3308 = vmatprep.mubr.bf16.mxu0 0
    %3309 = vmatmul.mubr.bf16.gmra.mrb[0].mxu0 %v3051
    %v3310 = vpop.f32.mrb[0].mxu0
    %v3311 = vadd.f32 %v3066, %v3310
    %v3312 = vpop.f32.mrb[0].mxu0
    %v3313 = vadd.f32 %v3070, %v3312
    %v3314 = vpop.f32.mrb[0].mxu0
    %v3315 = vpop.f32.mrb[0].mxu0
    %3316 = vdwg.mxu0
    %v3317 = vmax.f32 %v3270, 0.0
    %v3318 = vmax.f32 %v3272, 0.0
    %v3319 = vmax.f32 %v3311, 0.0
    %v3320 = vmax.f32 %v3313, 0.0
    %s3321 = scalar_lea.vmem [#allocation14], 256
    %v3322 = vld [vmem:[%s3321] sm:$0xf]
    %v3323 = vld [vmem:[%s3321 + $0x4] sm:$0xf]
    %v3324 = vld [vmem:[%s3321 + $0x8] sm:$0xf]
    %v3325 = vld [vmem:[%s3321 + $0xc] sm:$0xf]
    %v3326 = vld [vmem:[%s3321 + $0x10] sm:$0xf]
    %v3327 = vld [vmem:[%s3321 + $0x14] sm:$0xf]
    %v3328 = vld [vmem:[%s3321 + $0x18] sm:$0xf]
    %v3329 = vld [vmem:[%s3321 + $0x1c] sm:$0xf]
    %v3330 = vld [vmem:[%s3321 + $0x20] sm:$0xf]
    %v3331 = vld [vmem:[%s3321 + $0x24] sm:$0xf]
    %v3332 = vld [vmem:[%s3321 + $0x28] sm:$0xf]
    %v3333 = vld [vmem:[%s3321 + $0x2c] sm:$0xf]
    %v3334 = vld [vmem:[%s3321 + $0x30] sm:$0xf]
    %v3335 = vld [vmem:[%s3321 + $0x34] sm:$0xf]
    %v3336 = vld [vmem:[%s3321 + $0x38] sm:$0xf]
    %v3337 = vld [vmem:[%s3321 + $0x3c] sm:$0xf]
    %v3338 = vld [vmem:[%s3321 + $0x40] sm:$0xf]
    %v3339 = vld [vmem:[%s3321 + $0x44] sm:$0xf]
    %v3340 = vld [vmem:[%s3321 + $0x48] sm:$0xf]
    %v3341 = vld [vmem:[%s3321 + $0x4c] sm:$0xf]
    %v3342 = vld [vmem:[%s3321 + $0x50] sm:$0xf]
    %v3343 = vld [vmem:[%s3321 + $0x54] sm:$0xf]
    %v3344 = vld [vmem:[%s3321 + $0x58] sm:$0xf]
    %v3345 = vld [vmem:[%s3321 + $0x5c] sm:$0xf]
    %v3346 = vld [vmem:[%s3321 + $0x60] sm:$0xf]
    %v3347 = vld [vmem:[%s3321 + $0x64] sm:$0xf]
    %v3348 = vld [vmem:[%s3321 + $0x68] sm:$0xf]
    %v3349 = vld [vmem:[%s3321 + $0x6c] sm:$0xf]
    %v3350 = vld [vmem:[%s3321 + $0x70] sm:$0xf]
    %v3351 = vld [vmem:[%s3321 + $0x74] sm:$0xf]
    %v3352 = vld [vmem:[%s3321 + $0x78] sm:$0xf]
    %v3353 = vld [vmem:[%s3321 + $0x7c] sm:$0xf]
    %v3354 = vld [vmem:[%s3321 + $0x80] sm:$0xf]
    %v3355 = vld [vmem:[%s3321 + $0x84] sm:$0xf]
    %v3356 = vld [vmem:[%s3321 + $0x88] sm:$0xf]
    %v3357 = vld [vmem:[%s3321 + $0x8c] sm:$0xf]
    %v3358 = vld [vmem:[%s3321 + $0x90] sm:$0xf]
    %v3359 = vld [vmem:[%s3321 + $0x94] sm:$0xf]
    %v3360 = vld [vmem:[%s3321 + $0x98] sm:$0xf]
    %v3361 = vld [vmem:[%s3321 + $0x9c] sm:$0xf]
    %v3362 = vld [vmem:[%s3321 + $0xa0] sm:$0xf]
    %v3363 = vld [vmem:[%s3321 + $0xa4] sm:$0xf]
    %v3364 = vld [vmem:[%s3321 + $0xa8] sm:$0xf]
    %v3365 = vld [vmem:[%s3321 + $0xac] sm:$0xf]
    %v3366 = vld [vmem:[%s3321 + $0xb0] sm:$0xf]
    %v3367 = vld [vmem:[%s3321 + $0xb4] sm:$0xf]
    %v3368 = vld [vmem:[%s3321 + $0xb8] sm:$0xf]
    %v3369 = vld [vmem:[%s3321 + $0xbc] sm:$0xf]
    %v3370 = vld [vmem:[%s3321 + $0xc0] sm:$0xf]
    %v3371 = vld [vmem:[%s3321 + $0xc4] sm:$0xf]
    %v3372 = vld [vmem:[%s3321 + $0xc8] sm:$0xf]
    %v3373 = vld [vmem:[%s3321 + $0xcc] sm:$0xf]
    %v3374 = vld [vmem:[%s3321 + $0xd0] sm:$0xf]
    %v3375 = vld [vmem:[%s3321 + $0xd4] sm:$0xf]
    %v3376 = vld [vmem:[%s3321 + $0xd8] sm:$0xf]
    %v3377 = vld [vmem:[%s3321 + $0xdc] sm:$0xf]
    %v3378 = vld [vmem:[%s3321 + $0xe0] sm:$0xf]
    %v3379 = vld [vmem:[%s3321 + $0xe4] sm:$0xf]
    %v3380 = vld [vmem:[%s3321 + $0xe8] sm:$0xf]
    %v3381 = vld [vmem:[%s3321 + $0xec] sm:$0xf]
    %v3382 = vld [vmem:[%s3321 + $0xf0] sm:$0xf]
    %v3383 = vld [vmem:[%s3321 + $0xf4] sm:$0xf]
    %v3384 = vld [vmem:[%s3321 + $0xf8] sm:$0xf]
    %v3385 = vld [vmem:[%s3321 + $0xfc] sm:$0xf]
    %v3386 = vpack.c.bf16 %v3317, %v3317
    %v3387 = vpack.c.bf16 %v3318, %v3318
    %v3388 = vpack.c.bf16 %v3319, %v3319
    %v3389 = vpack.c.bf16 %v3320, %v3320
    %v3454 = vunpack.c.l.b16 %v3322
    %v3455 = vunpack.c.l.b16 %v3323
    %v3456 = vunpack.c.l.b16 %v3324
    %v3457 = vunpack.c.l.b16 %v3325
    %v3458 = vunpack.c.l.b16 %v3326
    %v3459 = vunpack.c.l.b16 %v3327
    %v3460 = vunpack.c.l.b16 %v3328
    %v3461 = vunpack.c.l.b16 %v3329
    %v3462 = vunpack.c.l.b16 %v3330
    %v3463 = vunpack.c.l.b16 %v3331
    %v3464 = vunpack.c.l.b16 %v3332
    %v3465 = vunpack.c.l.b16 %v3333
    %v3466 = vunpack.c.l.b16 %v3334
    %v3467 = vunpack.c.l.b16 %v3335
    %v3468 = vunpack.c.l.b16 %v3336
    %v3469 = vunpack.c.l.b16 %v3337
    %v3470 = vunpack.c.l.b16 %v3338
    %v3471 = vunpack.c.l.b16 %v3339
    %v3472 = vunpack.c.l.b16 %v3340
    %v3473 = vunpack.c.l.b16 %v3341
    %v3474 = vunpack.c.l.b16 %v3342
    %v3475 = vunpack.c.l.b16 %v3343
    %v3476 = vunpack.c.l.b16 %v3344
    %v3477 = vunpack.c.l.b16 %v3345
    %v3478 = vunpack.c.l.b16 %v3346
    %v3479 = vunpack.c.l.b16 %v3347
    %v3480 = vunpack.c.l.b16 %v3348
    %v3481 = vunpack.c.l.b16 %v3349
    %v3482 = vunpack.c.l.b16 %v3350
    %v3483 = vunpack.c.l.b16 %v3351
    %v3484 = vunpack.c.l.b16 %v3352
    %v3485 = vunpack.c.l.b16 %v3353
    %v3486 = vunpack.c.l.b16 %v3354
    %v3487 = vunpack.c.l.b16 %v3355
    %v3488 = vunpack.c.l.b16 %v3356
    %v3489 = vunpack.c.l.b16 %v3357
    %v3490 = vunpack.c.l.b16 %v3358
    %v3491 = vunpack.c.l.b16 %v3359
    %v3492 = vunpack.c.l.b16 %v3360
    %v3493 = vunpack.c.l.b16 %v3361
    %v3494 = vunpack.c.l.b16 %v3362
    %v3495 = vunpack.c.l.b16 %v3363
    %v3496 = vunpack.c.l.b16 %v3364
    %v3497 = vunpack.c.l.b16 %v3365
    %v3498 = vunpack.c.l.b16 %v3366
    %v3499 = vunpack.c.l.b16 %v3367
    %v3500 = vunpack.c.l.b16 %v3368
    %v3501 = vunpack.c.l.b16 %v3369
    %v3502 = vunpack.c.l.b16 %v3370
    %v3503 = vunpack.c.l.b16 %v3371
    %v3504 = vunpack.c.l.b16 %v3372
    %v3505 = vunpack.c.l.b16 %v3373
    %v3506 = vunpack.c.l.b16 %v3374
    %v3507 = vunpack.c.l.b16 %v3375
    %v3508 = vunpack.c.l.b16 %v3376
    %v3509 = vunpack.c.l.b16 %v3377
    %v3510 = vunpack.c.l.b16 %v3378
    %v3511 = vunpack.c.l.b16 %v3379
    %v3512 = vunpack.c.l.b16 %v3380
    %v3513 = vunpack.c.l.b16 %v3381
    %v3514 = vunpack.c.l.b16 %v3382
    %v3515 = vunpack.c.l.b16 %v3383
    %v3516 = vunpack.c.l.b16 %v3384
    %v3517 = vunpack.c.l.b16 %v3385
    %v3518 = vpack.c.b16 %v3455, %v3454
    %v3519 = vpack.c.b16 %v3457, %v3456
    %v3520 = vpack.c.b16 %v3459, %v3458
    %v3521 = vpack.c.b16 %v3461, %v3460
    %v3522 = vpack.c.b16 %v3463, %v3462
    %v3523 = vpack.c.b16 %v3465, %v3464
    %v3524 = vpack.c.b16 %v3467, %v3466
    %v3525 = vpack.c.b16 %v3469, %v3468
    %v3526 = vpack.c.b16 %v3471, %v3470
    %v3527 = vpack.c.b16 %v3473, %v3472
    %v3528 = vpack.c.b16 %v3475, %v3474
    %v3529 = vpack.c.b16 %v3477, %v3476
    %v3530 = vpack.c.b16 %v3479, %v3478
    %v3531 = vpack.c.b16 %v3481, %v3480
    %v3532 = vpack.c.b16 %v3483, %v3482
    %v3533 = vpack.c.b16 %v3485, %v3484
    %v3534 = vpack.c.b16 %v3487, %v3486
    %v3535 = vpack.c.b16 %v3489, %v3488
    %v3536 = vpack.c.b16 %v3491, %v3490
    %v3537 = vpack.c.b16 %v3493, %v3492
    %v3538 = vpack.c.b16 %v3495, %v3494
    %v3539 = vpack.c.b16 %v3497, %v3496
    %v3540 = vpack.c.b16 %v3499, %v3498
    %v3541 = vpack.c.b16 %v3501, %v3500
    %v3542 = vpack.c.b16 %v3503, %v3502
    %v3543 = vpack.c.b16 %v3505, %v3504
    %v3544 = vpack.c.b16 %v3507, %v3506
    %v3545 = vpack.c.b16 %v3509, %v3508
    %v3546 = vpack.c.b16 %v3511, %v3510
    %v3547 = vpack.c.b16 %v3513, %v3512
    %v3548 = vpack.c.b16 %v3515, %v3514
    %v3549 = vpack.c.b16 %v3517, %v3516
    %3582 = vmatprep.subr.bf16.mxu0 0
    %3583 = vmatpush1.bf16.msra.mxu0 %v3518
    %3584 = vmatprep.subr.bf16.mxu0 0
    %3585 = vmatpush1.bf16.msra.mxu0 %v3519
    %3586 = vmatprep.subr.bf16.mxu0 0
    %3587 = vmatpush1.bf16.msra.mxu0 %v3520
    %3588 = vmatprep.subr.bf16.mxu0 0
    %3589 = vmatpush1.bf16.msra.mxu0 %v3521
    %3590 = vmatprep.subr.bf16.mxu0 0
    %3591 = vmatpush1.bf16.msra.mxu0 %v3522
    %3592 = vmatprep.subr.bf16.mxu0 0
    %3593 = vmatpush1.bf16.msra.mxu0 %v3523
    %3594 = vmatprep.subr.bf16.mxu0 0
    %3595 = vmatpush1.bf16.msra.mxu0 %v3524
    %3596 = vmatprep.subr.bf16.mxu0 0
    %3597 = vmatpush1.bf16.msra.mxu0 %v3525
    %3598 = vmatprep.subr.bf16.mxu0 0
    %3599 = vmatpush1.bf16.msra.mxu0 %v3526
    %3600 = vmatprep.subr.bf16.mxu0 0
    %3601 = vmatpush1.bf16.msra.mxu0 %v3527
    %3602 = vmatprep.subr.bf16.mxu0 0
    %3603 = vmatpush1.bf16.msra.mxu0 %v3528
    %3604 = vmatprep.subr.bf16.mxu0 0
    %3605 = vmatpush1.bf16.msra.mxu0 %v3529
    %3606 = vmatprep.subr.bf16.mxu0 0
    %3607 = vmatpush1.bf16.msra.mxu0 %v3530
    %3608 = vmatprep.subr.bf16.mxu0 0
    %3609 = vmatpush1.bf16.msra.mxu0 %v3531
    %3610 = vmatprep.subr.bf16.mxu0 0
    %3611 = vmatpush1.bf16.msra.mxu0 %v3532
    %3612 = vmatprep.subr.bf16.mxu0 0
    %3613 = vmatpush1.bf16.msra.mxu0 %v3533
    %3614 = vmatprep.mubr.bf16.mxu0 %v3387
    %3615 = vmatmul.mubr.bf16.gmra.mrb[0].mxu0 %v3386
    %v3616 = vpop.f32.mrb[0].mxu0
    %v3617 = vadd.f32 0.0, %v3616
    %v3618 = vpop.f32.mrb[0].mxu0
    %v3619 = vpop.f32.mrb[0].mxu0
    %v3620 = vpop.f32.mrb[0].mxu0
    %3621 = vdwg.mxu0
    %3622 = vmatprep.subr.bf16.mxu0 0
    %3623 = vmatpush1.bf16.msra.mxu0 %v3534
    %3624 = vmatprep.subr.bf16.mxu0 0
    %3625 = vmatpush1.bf16.msra.mxu0 %v3535
    %3626 = vmatprep.subr.bf16.mxu0 0
    %3627 = vmatpush1.bf16.msra.mxu0 %v3536
    %3628 = vmatprep.subr.bf16.mxu0 0
    %3629 = vmatpush1.bf16.msra.mxu0 %v3537
    %3630 = vmatprep.subr.bf16.mxu0 0
    %3631 = vmatpush1.bf16.msra.mxu0 %v3538
    %3632 = vmatprep.subr.bf16.mxu0 0
    %3633 = vmatpush1.bf16.msra.mxu0 %v3539
    %3634 = vmatprep.subr.bf16.mxu0 0
    %3635 = vmatpush1.bf16.msra.mxu0 %v3540
    %3636 = vmatprep.subr.bf16.mxu0 0
    %3637 = vmatpush1.bf16.msra.mxu0 %v3541
    %3638 = vmatprep.subr.bf16.mxu0 0
    %3639 = vmatpush1.bf16.msra.mxu0 %v3542
    %3640 = vmatprep.subr.bf16.mxu0 0
    %3641 = vmatpush1.bf16.msra.mxu0 %v3543
    %3642 = vmatprep.subr.bf16.mxu0 0
    %3643 = vmatpush1.bf16.msra.mxu0 %v3544
    %3644 = vmatprep.subr.bf16.mxu0 0
    %3645 = vmatpush1.bf16.msra.mxu0 %v3545
    %3646 = vmatprep.subr.bf16.mxu0 0
    %3647 = vmatpush1.bf16.msra.mxu0 %v3546
    %3648 = vmatprep.subr.bf16.mxu0 0
    %3649 = vmatpush1.bf16.msra.mxu0 %v3547
    %3650 = vmatprep.subr.bf16.mxu0 0
    %3651 = vmatpush1.bf16.msra.mxu0 %v3548
    %3652 = vmatprep.subr.bf16.mxu0 0
    %3653 = vmatpush1.bf16.msra.mxu0 %v3549
    %3654 = vmatprep.mubr.bf16.mxu0 %v3389
    %3655 = vmatmul.mubr.bf16.gmra.mrb[0].mxu0 %v3388
    %v3656 = vpop.f32.mrb[0].mxu0
    %v3657 = vadd.f32 %v3617, %v3656
    %v3658 = vpop.f32.mrb[0].mxu0
    %v3659 = vpop.f32.mrb[0].mxu0
    %v3660 = vpop.f32.mrb[0].mxu0
    %3661 = vdwg.mxu0
    %v3662 = vadd.f32 %v2988, %v3657
    %s3663 = scalar_lea.vmem %s12, 1
    %v3664 = vld [vmem:[%s3663] sm:$0x1]
    %v3666 = vlaneseq
    %v3667 = vshrl.u32 %v3666, 7
    %v3668 = vsub.s32 0, %v3667
    %v3669 = vrot.slane %v3664, %v3668
    %v3671 = vadd.f32 %v3662, %v3669
    %v3672 = vld [vmem:[%s13] sm:$0x1]
    %v3673 = vld [vmem:[%s14] sm:$0x1]
    %3674 = vadd.xlane.f32.xlu0 %v3671
    %v3675 = vpop.xlane.xlu0 %3674
    %v3676 = vmul.f32 %v3675, %v156
    %v3677 = vsub.f32 %v3671, %v3676
    %v3678 = vmul.f32 %v3677, %v3677
    %3679 = vadd.xlane.f32.xlu0 %v3678
    %v3680 = vpop.xlane.xlu0 %3679
    %v3681 = vmul.f32 %v3680, %v156
    %v3682 = vadd.f32 %v3681, 1e-05
    %v3683 = vrsqrt.pop %v3682
    %v3684 = vmul.f32 %v3677, %v3683
    %v3686 = vlaneseq
    %v3687 = vshrl.u32 %v3686, 7
    %v3688 = vsub.s32 0, %v3687
    %v3689 = vrot.slane %v3672, %v3688
    %v3691 = vmul.f32 %v3684, %v3689
    %v3693 = vlaneseq
    %v3694 = vshrl.u32 %v3693, 7
    %v3695 = vsub.s32 0, %v3694
    %v3696 = vrot.slane %v3673, %v3695
    %v3698 = vadd.f32 %v3691, %v3696
    %3699 = vst [vmem:[#allocation15] sm:$0xff] %v3698
    // Predicated region
    $region90: #{tpu_custom_call.1} parent=1 // pred_check
      _
    $region91: #{tpu_custom_call.1} parent=1 // pred_check_branch
      %3701 = sbr.rel (0) target = $region93
    $region92: #{tpu_custom_call.1} parent=1 // pred_region
      %s3703 = ssub.s32 128, 128
      %3704 = vsyncadd [#allocation5], %s3703
      %s3706 = sshll.u32 [#allocation15], 4
      %s3707 = int_to_ptr.vmem [resolvable:$true] %s3706
      %3709 = dma.vmem_to_hbm [thread:$0]  %s3707, 128, %s15, [#allocation5]
    $region93: #{tpu_custom_call.1} parent=1 // pred_fallthru
      _
    // Predicated region
    $region94: #{tpu_custom_call.1} parent=1 // pred_check
      _
    $region95: #{tpu_custom_call.1} parent=1 // pred_check_branch
      %3711 = sbr.rel (0) target = $region97
    $region96: #{tpu_custom_call.1} parent=1 // pred_region
      %3712 = dma.done [#allocation5], 128
    $region97: #{tpu_custom_call.1} parent=1 // pred_fallthru
      _
    %3713 = vsyncpa [#allocation4], 1
    %3714 = vsyncpa [#allocation7], 1
    %3715 = vsyncpa [#allocation10], 1
    %3716 = vsyncpa [#allocation13], 1
    %3717 = vsyncpa [#allocation5], 1

</llo_original>
